<compile_context>
chip_gen: v5e
topology: v5e:2x2
jax: 0.10.0
libtpu: 0.0.40
codegen_flags: <defaults>
</compile_context>

<pallas_src>
import jax
import jax.numpy as jnp
import numpy as np
from jax.experimental import pallas as pl
from jax.experimental.pallas import tpu as pltpu


# ------------------------------ fused kernel --------------------------------

def encoder_fused_kernel(xp_ref, w1_ref, s1_ref, w2_ref, s2_ref, w3_ref, s3_ref,
                         w4_ref, s4_ref, fcw_ref, fcb_ref, o_ref,
                         p2_ref, p3_ref, p4_ref):
    cd = w1_ref.dtype                                # MXU operand dtype (f32/bf16)

    def gemm_bn_relu(patch, w_ref, s_ref):
        # patch: (oh, ow, nb, K) already in compute dtype.  Single long-K GEMM.
        oh, ow, nbb, k = patch.shape
        y = jnp.dot(patch.reshape(oh * ow * nbb, k), w_ref[...],
                    preferred_element_type=jnp.float32)
        # BN scale folded into the weights at pack time; only shift remains.
        return jnp.maximum(y + s_ref[...], 0.0)      # (oh*ow*nb, 128) f32

    def im2col4x4s2(xpad):
        # xpad: (hp, wp, nb, c) spatially padded activation (leading spatial).
        hp, wp, nbb, c = xpad.shape
        oh, ow = hp // 2 - 1, wp // 2 - 1
        # Even/odd phase split = free leading-dim reshape; taps are contiguous
        # leading-dim slices; concat along lanes in 128-aligned pieces.
        xr = xpad.astype(cd).reshape(hp // 2, 2, wp // 2, 2, nbb, c)
        taps = [xr[i // 2:i // 2 + oh, i % 2, j // 2:j // 2 + ow, j % 2]
                for i in range(4) for j in range(4)]
        return jnp.concatenate(taps, axis=-1)        # (oh, ow, nb, 16*c)

    def pad_into(pref, y, oh, ow, nbb):
        # Write activation y into pre-allocated padded VMEM scratch: zero only
        # the 1-pixel border, store the interior once (no concat copies).
        c = pref.shape[-1]
        zrow = jnp.zeros((1, ow + 2, nbb, c), jnp.float32)
        zcol = jnp.zeros((oh, 1, nbb, c), jnp.float32)
        pref[0:1] = zrow
        pref[oh + 1:oh + 2] = zrow
        pref[1:oh + 1, 0:1] = zcol
        pref[1:oh + 1, ow + 1:ow + 2] = zcol
        pref[1:oh + 1, 1:ow + 1] = y.reshape(oh, ow, nbb, c)
        return pref[...]

    xp = xp_ref[...]                                 # conv1 patch (oh1, ow1, nb, 128)
    oh1, ow1, nb, _ = xp.shape

    a1 = gemm_bn_relu(xp, w1_ref, s1_ref)                                    # 8x8
    a2 = gemm_bn_relu(im2col4x4s2(pad_into(p2_ref, a1, oh1, ow1, nb)),
                      w2_ref, s2_ref)                                        # 4x4
    oh2, ow2 = oh1 // 2, ow1 // 2
    a3 = gemm_bn_relu(im2col4x4s2(pad_into(p3_ref, a2, oh2, ow2, nb)),
                      w3_ref, s3_ref)                                        # 2x2
    oh3, ow3 = oh2 // 2, ow2 // 2
    a4 = gemm_bn_relu(im2col4x4s2(pad_into(p4_ref, a3, oh3, ow3, nb)),
                      w4_ref, s4_ref)                                        # (nb, 128)

    o_ref[...] = (jnp.dot(a4.astype(cd), fcw_ref[...],
                          preferred_element_type=jnp.float32)
                  + fcb_ref[...]).astype(o_ref.dtype)


# ----------------------------- parameter packing ----------------------------

def pack_params(params, c_pad=128, dtype=jnp.float32):
    """One-time repack (outside jit): fold BN scale into conv weights, lay out
    each conv weight as a (16*cin_pad, c_pad) GEMM slab (K index = tap*cin + c),
    zero-pad channels, optionally cast matmul operands to bf16."""
    cin1 = params["w1"].shape[1]
    cin1_p = max(8, ((cin1 + 7) // 8) * 8)           # 16*cin1_p == 128 for MNIST-ish

    def pack_conv(w_oihw, scale, cin_p):
        cout, ci, kh, kw = w_oihw.shape
        wf = w_oihw * scale[:, None, None, None]                 # fold BN scale
        wk = jnp.transpose(wf, (2, 3, 1, 0)).reshape(kh * kw, ci, cout)
        wk = jnp.pad(wk, ((0, 0), (0, cin_p - ci), (0, c_pad - cout)))
        return wk.reshape(kh * kw * cin_p, c_pad).astype(dtype)

    def pack_shift(shift):
        c = shift.shape[0]
        return jnp.pad(shift.reshape(1, c),
                       ((0, 0), (0, c_pad - c))).astype(jnp.float32)

    return {
        "w1": pack_conv(params["w1"], params["s1"], cin1_p),
        "s1": pack_shift(params["b1"]),
        "w2": pack_conv(params["w2"], params["s2"], c_pad),
        "s2": pack_shift(params["b2"]),
        "w3": pack_conv(params["w3"], params["s3"], c_pad),
        "s3": pack_shift(params["b3"]),
        "w4": pack_conv(params["w4"], params["s4"], c_pad),
        "s4": pack_shift(params["b4"]),
        "fc_w": jnp.pad(params["fc_w"],
                        ((0, c_pad - params["fc_w"].shape[0]),
                         (0, c_pad - params["fc_w"].shape[1]))).astype(dtype),
        "fc_b": jnp.pad(params["fc_b"].reshape(1, -1),
                        ((0, 0), (0, c_pad - params["fc_b"].shape[0]))
                        ).astype(jnp.float32),
    }


# ------------------------------ JAX wrapper ----------------------------------

def encoder_forward(packed, x_nchw, n_z, nb_cap=128):
    n, cin, h, w = x_nchw.shape
    assert h == 16 and w == 16, "encoder expects 16x16 spatial (16->8->4->2->1)"
    cin_p = packed["w1"].shape[0] // 16
    c_pad = packed["fc_w"].shape[1]
    wdtype = packed["w1"].dtype

    # Batch block: multiple of 8 sublanes, capped at 128 so deep-layer GEMMs get
    # M >= 128 MXU rows while the per-block working set stays within v7x's
    # 64 MiB VMEM (and grid >= 2 on large batches keeps both v7x TCs busy).
    nb = min(nb_cap, ((n + 7) // 8) * 8)
    n_pad = ((n + nb - 1) // nb) * nb
    oh1, ow1 = h // 2, w // 2

    # NCHW -> (H+2, W+2, N_pad, Cin_pad), then conv1 im2col in the wrapper so
    # the kernel's first-layer patch is lane-dense (K = 16*cin_p = 128).
    xt = jnp.transpose(x_nchw, (2, 3, 0, 1))
    xt = jnp.pad(xt, ((1, 1), (1, 1), (0, n_pad - n), (0, cin_p - cin)))
    taps = [xt[i:i + 2 * oh1:2, j:j + 2 * ow1:2]
            for i in range(4) for j in range(4)]
    xp = jnp.concatenate(taps, axis=-1).astype(wdtype)   # (oh1, ow1, N_pad, 128)

    def wspec(a):
        return pl.BlockSpec(a.shape, lambda b: (0, 0))   # resident constants

    out = pl.pallas_call(
        encoder_fused_kernel,
        out_shape=jax.ShapeDtypeStruct((n_pad, c_pad), jnp.float32),
        grid=(n_pad // nb,),
        in_specs=[
            pl.BlockSpec((oh1, ow1, nb, 16 * cin_p), lambda b: (0, 0, b, 0)),
            wspec(packed["w1"]), wspec(packed["s1"]),
            wspec(packed["w2"]), wspec(packed["s2"]),
            wspec(packed["w3"]), wspec(packed["s3"]),
            wspec(packed["w4"]), wspec(packed["s4"]),
            wspec(packed["fc_w"]), wspec(packed["fc_b"]),
        ],
        out_specs=pl.BlockSpec((nb, c_pad), lambda b: (b, 0)),
        scratch_shapes=[  # persistent padded-activation buffers (border stays 0)
            pltpu.VMEM((oh1 + 2, ow1 + 2, nb, c_pad), jnp.float32),
            pltpu.VMEM((oh1 // 2 + 2, ow1 // 2 + 2, nb, c_pad), jnp.float32),
            pltpu.VMEM((oh1 // 4 + 2, ow1 // 4 + 2, nb, c_pad), jnp.float32),
        ],
        compiler_params=pltpu.CompilerParams(
            dimension_semantics=("parallel",),
            vmem_limit_bytes=(64 if nb > 32 else 32) * 1024 * 1024),
    )(xp, packed["w1"], packed["s1"], packed["w2"], packed["s2"],
      packed["w3"], packed["s3"], packed["w4"], packed["s4"],
      packed["fc_w"], packed["fc_b"])
    return out[:n, :n_z]


# ------------------------- deterministic parameters --------------------------

def init_params(key, n_channel, dim_h, n_z, eps=1e-5):
    ks = jax.random.split(key, 16)
    p = {}
    p["w1"] = 0.1 * jax.random.normal(ks[0], (dim_h, n_channel, 4, 4), jnp.float32)
    p["s1"] = jnp.ones((dim_h,), jnp.float32)            # no BN after conv1
    p["b1"] = jnp.zeros((dim_h,), jnp.float32)           # conv bias=False per spec

    def bn_fold(kg, kb, km, kv, c):
        gamma = 1.0 + 0.1 * jax.random.normal(kg, (c,), jnp.float32)
        beta = 0.1 * jax.random.normal(kb, (c,), jnp.float32)
        rmean = 0.05 * jax.random.normal(km, (c,), jnp.float32)
        rvar = 1.0 + 0.1 * jax.random.uniform(kv, (c,), jnp.float32)
        scale = gamma / jnp.sqrt(rvar + eps)
        shift = beta - rmean * scale
        return scale, shift

    p["w2"] = 0.1 * jax.random.normal(ks[1], (dim_h * 2, dim_h, 4, 4), jnp.float32)
    p["s2"], p["b2"] = bn_fold(ks[2], ks[3], ks[4], ks[5], dim_h * 2)

    p["w3"] = 0.1 * jax.random.normal(ks[6], (dim_h * 4, dim_h * 2, 4, 4), jnp.float32)
    p["s3"], p["b3"] = bn_fold(ks[7], ks[8], ks[9], ks[10], dim_h * 4)

    p["w4"] = 0.1 * jax.random.normal(ks[11], (dim_h * 8, dim_h * 4, 4, 4), jnp.float32)
    p["s4"], p["b4"] = bn_fold(ks[12], ks[13], ks[14], ks[15], dim_h * 8)

    kfc = jax.random.fold_in(key, 123)
    kfb = jax.random.fold_in(key, 456)
    p["fc_w"] = 0.1 * jax.random.normal(kfc, (dim_h * 8, n_z), jnp.float32)
    p["fc_b"] = 0.1 * jax.random.normal(kfb, (n_z,), jnp.float32)
    return p


# ------------------------------ pure-JAX reference ---------------------------

def ref_forward(params, x_nchw):
    def conv(x, w):
        return jax.lax.conv_general_dilated(
            x, w, window_strides=(2, 2), padding=((1, 1), (1, 1)),
            dimension_numbers=("NCHW", "OIHW", "NCHW"))

    def bnrelu(x, s, b):
        return jnp.maximum(x * s[None, :, None, None] + b[None, :, None, None], 0.0)

    x = bnrelu(conv(x_nchw, params["w1"]), params["s1"], params["b1"])
    x = bnrelu(conv(x, params["w2"]), params["s2"], params["b2"])
    x = bnrelu(conv(x, params["w3"]), params["s3"], params["b3"])
    x = bnrelu(conv(x, params["w4"]), params["s4"], params["b4"])
    x = x.reshape(x.shape[0], -1)                        # squeeze to (N, 8*dim_h)
    return x @ params["fc_w"] + params["fc_b"]


# ------------------------------------ main -----------------------------------

if __name__ == "__main__":
    N, n_channel, H, W = 2, 4, 16, 16     # 16 -> 8 -> 4 -> 2 -> 1 spatially
    dim_h, n_z = 8, 8

    key = jax.random.PRNGKey(0)
    params = init_params(key, n_channel, dim_h, n_z)
    x = jax.random.normal(jax.random.fold_in(key, 999),
                          (N, n_channel, H, W), jnp.float32)
    ref = np.asarray(ref_forward(params, x))

    # f32 MXU operands: strict reference check.
    packed_f32 = pack_params(params, dtype=jnp.float32)
    fwd_f32 = jax.jit(lambda p, xx: encoder_forward(p, xx, n_z))
    out_f32 = jax.block_until_ready(fwd_f32(packed_f32, x))
    assert out_f32.shape == (N, n_z), out_f32.shape
    assert np.allclose(np.asarray(out_f32), ref, rtol=1e-4, atol=1e-4), \
        float(np.max(np.abs(np.asarray(out_f32) - ref)))

    # bf16 MXU operands (v6e/v7x fast path, f32 accumulation): loose check.
    packed_bf16 = pack_params(params, dtype=jnp.bfloat16)
    fwd_bf16 = jax.jit(lambda p, xx: encoder_forward(p, xx, n_z))
    out_bf16 = jax.block_until_ready(fwd_bf16(packed_bf16, x))
    assert out_bf16.shape == (N, n_z), out_bf16.shape
    assert np.allclose(np.asarray(out_bf16), ref, rtol=5e-2, atol=5e-2), \
        float(np.max(np.abs(np.asarray(out_bf16) - ref)))

    print("KERNEL_OK")
</pallas_src>

<mosaic_0001>
module attributes {stable_mosaic.version = 11 : i64} {
  func.func @encoder_fused_kernel(%arg0: i32, %arg1: memref<8x8x8x128xf32, #tpu.memory_space<vmem>>, %arg2: memref<128x128xf32, #tpu.memory_space<vmem>>, %arg3: memref<1x128xf32, #tpu.memory_space<vmem>>, %arg4: memref<2048x128xf32, #tpu.memory_space<vmem>>, %arg5: memref<1x128xf32, #tpu.memory_space<vmem>>, %arg6: memref<2048x128xf32, #tpu.memory_space<vmem>>, %arg7: memref<1x128xf32, #tpu.memory_space<vmem>>, %arg8: memref<2048x128xf32, #tpu.memory_space<vmem>>, %arg9: memref<1x128xf32, #tpu.memory_space<vmem>>, %arg10: memref<128x128xf32, #tpu.memory_space<vmem>>, %arg11: memref<1x128xf32, #tpu.memory_space<vmem>>, %arg12: memref<8x128xf32, #tpu.memory_space<vmem>>, %arg13: memref<10x10x8x128xf32, #tpu.memory_space<vmem>>, %arg14: memref<6x6x8x128xf32, #tpu.memory_space<vmem>>, %arg15: memref<4x4x8x128xf32, #tpu.memory_space<vmem>>) attributes {dimension_semantics = [#tpu.dimension_semantics<parallel>], iteration_bounds = array<i64: 1>, scalar_prefetch = 0 : i64, scratch_operands = 3 : i64, tpu.core_type = #tpu.core_type<tc>, window_params = [{transform_indices = @transform_0, window_bounds = array<i64: 8, 8, 8, 128>}, {pipeline_mode = #tpu.pipeline_mode<synchronous>, transform_indices = @transform_1, window_bounds = array<i64: 128, 128>}, {pipeline_mode = #tpu.pipeline_mode<synchronous>, transform_indices = @transform_2, window_bounds = array<i64: 1, 128>}, {pipeline_mode = #tpu.pipeline_mode<synchronous>, transform_indices = @transform_3, window_bounds = array<i64: 2048, 128>}, {pipeline_mode = #tpu.pipeline_mode<synchronous>, transform_indices = @transform_4, window_bounds = array<i64: 1, 128>}, {pipeline_mode = #tpu.pipeline_mode<synchronous>, transform_indices = @transform_5, window_bounds = array<i64: 2048, 128>}, {pipeline_mode = #tpu.pipeline_mode<synchronous>, transform_indices = @transform_6, window_bounds = array<i64: 1, 128>}, {pipeline_mode = #tpu.pipeline_mode<synchronous>, transform_indices = @transform_7, window_bounds = array<i64: 2048, 128>}, {pipeline_mode = #tpu.pipeline_mode<synchronous>, transform_indices = @transform_8, window_bounds = array<i64: 1, 128>}, {pipeline_mode = #tpu.pipeline_mode<synchronous>, transform_indices = @transform_9, window_bounds = array<i64: 128, 128>}, {pipeline_mode = #tpu.pipeline_mode<synchronous>, transform_indices = @transform_10, window_bounds = array<i64: 1, 128>}, {transform_indices = @transform_11, window_bounds = array<i64: 8, 128>}]} {
    %c0 = arith.constant 0 : index
    %c0_0 = arith.constant 0 : index
    %c0_1 = arith.constant 0 : index
    %c0_2 = arith.constant 0 : index
    %0 = vector.load %arg1[%c0, %c0_0, %c0_1, %c0_2] : memref<8x8x8x128xf32, #tpu.memory_space<vmem>>, vector<8x8x8x128xf32>
    %1 = vector.shape_cast %0 : vector<8x8x8x128xf32> to vector<512x128xf32>
    %c0_3 = arith.constant 0 : index
    %c0_4 = arith.constant 0 : index
    %2 = vector.load %arg2[%c0_3, %c0_4] : memref<128x128xf32, #tpu.memory_space<vmem>>, vector<128x128xf32>
    %cst = arith.constant dense<0.000000e+00> : vector<512x128xf32>
    %3 = tpu.matmul %1, %2, %cst {dimension_numbers = #tpu.dot_dimension_numbers<[1], [0], [0], [1], [0, 0, 1, 1], [], []>} : vector<512x128xf32>, vector<128x128xf32>, vector<512x128xf32> -> vector<512x128xf32>
    %c0_5 = arith.constant 0 : index
    %c0_6 = arith.constant 0 : index
    %4 = vector.load %arg3[%c0_5, %c0_6] : memref<1x128xf32, #tpu.memory_space<vmem>>, vector<1x128xf32>
    %5 = vector.broadcast %4 : vector<1x128xf32> to vector<512x128xf32>
    %6 = arith.addf %3, %5 : vector<512x128xf32>
    %cst_7 = arith.constant 0.000000e+00 : f32
    %7 = vector.broadcast %cst_7 : f32 to vector<512x128xf32>
    %8 = arith.maximumf %6, %7 : vector<512x128xf32>
    %cst_8 = arith.constant 0.000000e+00 : f32
    %9 = vector.broadcast %cst_8 : f32 to vector<1x10x8x128xf32>
    %cst_9 = arith.constant 0.000000e+00 : f32
    %10 = vector.broadcast %cst_9 : f32 to vector<8x1x8x128xf32>
    %c0_10 = arith.constant 0 : index
    %c0_11 = arith.constant 0 : index
    %c0_12 = arith.constant 0 : index
    %c0_13 = arith.constant 0 : index
    %11 = vector.load %arg13[%c0_10, %c0_11, %c0_12, %c0_13] : memref<10x10x8x128xf32, #tpu.memory_space<vmem>>, vector<1x10x8x128xf32>
    tpu.vector_store %arg13[%c0_10, %c0_11, %c0_12, %c0_13], %9 {strides = array<i32>} : memref<10x10x8x128xf32, #tpu.memory_space<vmem>>, vector<1x10x8x128xf32>,
    %c9 = arith.constant 9 : index
    %c0_14 = arith.constant 0 : index
    %c0_15 = arith.constant 0 : index
    %c0_16 = arith.constant 0 : index
    %12 = vector.load %arg13[%c9, %c0_14, %c0_15, %c0_16] : memref<10x10x8x128xf32, #tpu.memory_space<vmem>>, vector<1x10x8x128xf32>
    tpu.vector_store %arg13[%c9, %c0_14, %c0_15, %c0_16], %9 {strides = array<i32>} : memref<10x10x8x128xf32, #tpu.memory_space<vmem>>, vector<1x10x8x128xf32>,
    %c1 = arith.constant 1 : index
    %c0_17 = arith.constant 0 : index
    %c0_18 = arith.constant 0 : index
    %c0_19 = arith.constant 0 : index
    %13 = vector.load %arg13[%c1, %c0_17, %c0_18, %c0_19] : memref<10x10x8x128xf32, #tpu.memory_space<vmem>>, vector<8x1x8x128xf32>
    tpu.vector_store %arg13[%c1, %c0_17, %c0_18, %c0_19], %10 {strides = array<i32>} : memref<10x10x8x128xf32, #tpu.memory_space<vmem>>, vector<8x1x8x128xf32>,
    %c1_20 = arith.constant 1 : index
    %c9_21 = arith.constant 9 : index
    %c0_22 = arith.constant 0 : index
    %c0_23 = arith.constant 0 : index
    %14 = vector.load %arg13[%c1_20, %c9_21, %c0_22, %c0_23] : memref<10x10x8x128xf32, #tpu.memory_space<vmem>>, vector<8x1x8x128xf32>
    tpu.vector_store %arg13[%c1_20, %c9_21, %c0_22, %c0_23], %10 {strides = array<i32>} : memref<10x10x8x128xf32, #tpu.memory_space<vmem>>, vector<8x1x8x128xf32>,
    %15 = vector.shape_cast %8 : vector<512x128xf32> to vector<8x8x8x128xf32>
    %c1_24 = arith.constant 1 : index
    %c1_25 = arith.constant 1 : index
    %c0_26 = arith.constant 0 : index
    %c0_27 = arith.constant 0 : index
    %16 = vector.load %arg13[%c1_24, %c1_25, %c0_26, %c0_27] : memref<10x10x8x128xf32, #tpu.memory_space<vmem>>, vector<8x8x8x128xf32>
    tpu.vector_store %arg13[%c1_24, %c1_25, %c0_26, %c0_27], %15 {strides = array<i32>} : memref<10x10x8x128xf32, #tpu.memory_space<vmem>>, vector<8x8x8x128xf32>,
    %c0_28 = arith.constant 0 : index
    %c0_29 = arith.constant 0 : index
    %c0_30 = arith.constant 0 : index
    %c0_31 = arith.constant 0 : index
    %17 = vector.load %arg13[%c0_28, %c0_29, %c0_30, %c0_31] : memref<10x10x8x128xf32, #tpu.memory_space<vmem>>, vector<10x10x8x128xf32>
    %18 = vector.shape_cast %17 : vector<10x10x8x128xf32> to vector<5x2x5x2x8x128xf32>
    %19 = vector.extract_strided_slice %18 {offsets = [0, 0, 0, 0, 0, 0], sizes = [4, 1, 4, 1, 8, 128], strides = [1, 1, 1, 1, 1, 1]} : vector<5x2x5x2x8x128xf32> to vector<4x1x4x1x8x128xf32>
    %20 = vector.shape_cast %19 : vector<4x1x4x1x8x128xf32> to vector<4x4x8x128xf32>
    %21 = vector.extract_strided_slice %18 {offsets = [0, 0, 0, 1, 0, 0], sizes = [4, 1, 4, 1, 8, 128], strides = [1, 1, 1, 1, 1, 1]} : vector<5x2x5x2x8x128xf32> to vector<4x1x4x1x8x128xf32>
    %22 = vector.shape_cast %21 : vector<4x1x4x1x8x128xf32> to vector<4x4x8x128xf32>
    %23 = vector.extract_strided_slice %18 {offsets = [0, 0, 1, 0, 0, 0], sizes = [4, 1, 4, 1, 8, 128], strides = [1, 1, 1, 1, 1, 1]} : vector<5x2x5x2x8x128xf32> to vector<4x1x4x1x8x128xf32>
    %24 = vector.shape_cast %23 : vector<4x1x4x1x8x128xf32> to vector<4x4x8x128xf32>
    %25 = vector.extract_strided_slice %18 {offsets = [0, 0, 1, 1, 0, 0], sizes = [4, 1, 4, 1, 8, 128], strides = [1, 1, 1, 1, 1, 1]} : vector<5x2x5x2x8x128xf32> to vector<4x1x4x1x8x128xf32>
    %26 = vector.shape_cast %25 : vector<4x1x4x1x8x128xf32> to vector<4x4x8x128xf32>
    %27 = vector.extract_strided_slice %18 {offsets = [0, 1, 0, 0, 0, 0], sizes = [4, 1, 4, 1, 8, 128], strides = [1, 1, 1, 1, 1, 1]} : vector<5x2x5x2x8x128xf32> to vector<4x1x4x1x8x128xf32>
    %28 = vector.shape_cast %27 : vector<4x1x4x1x8x128xf32> to vector<4x4x8x128xf32>
    %29 = vector.extract_strided_slice %18 {offsets = [0, 1, 0, 1, 0, 0], sizes = [4, 1, 4, 1, 8, 128], strides = [1, 1, 1, 1, 1, 1]} : vector<5x2x5x2x8x128xf32> to vector<4x1x4x1x8x128xf32>
    %30 = vector.shape_cast %29 : vector<4x1x4x1x8x128xf32> to vector<4x4x8x128xf32>
    %31 = vector.extract_strided_slice %18 {offsets = [0, 1, 1, 0, 0, 0], sizes = [4, 1, 4, 1, 8, 128], strides = [1, 1, 1, 1, 1, 1]} : vector<5x2x5x2x8x128xf32> to vector<4x1x4x1x8x128xf32>
    %32 = vector.shape_cast %31 : vector<4x1x4x1x8x128xf32> to vector<4x4x8x128xf32>
    %33 = vector.extract_strided_slice %18 {offsets = [0, 1, 1, 1, 0, 0], sizes = [4, 1, 4, 1, 8, 128], strides = [1, 1, 1, 1, 1, 1]} : vector<5x2x5x2x8x128xf32> to vector<4x1x4x1x8x128xf32>
    %34 = vector.shape_cast %33 : vector<4x1x4x1x8x128xf32> to vector<4x4x8x128xf32>
    %35 = vector.extract_strided_slice %18 {offsets = [1, 0, 0, 0, 0, 0], sizes = [4, 1, 4, 1, 8, 128], strides = [1, 1, 1, 1, 1, 1]} : vector<5x2x5x2x8x128xf32> to vector<4x1x4x1x8x128xf32>
    %36 = vector.shape_cast %35 : vector<4x1x4x1x8x128xf32> to vector<4x4x8x128xf32>
    %37 = vector.extract_strided_slice %18 {offsets = [1, 0, 0, 1, 0, 0], sizes = [4, 1, 4, 1, 8, 128], strides = [1, 1, 1, 1, 1, 1]} : vector<5x2x5x2x8x128xf32> to vector<4x1x4x1x8x128xf32>
    %38 = vector.shape_cast %37 : vector<4x1x4x1x8x128xf32> to vector<4x4x8x128xf32>
    %39 = vector.extract_strided_slice %18 {offsets = [1, 0, 1, 0, 0, 0], sizes = [4, 1, 4, 1, 8, 128], strides = [1, 1, 1, 1, 1, 1]} : vector<5x2x5x2x8x128xf32> to vector<4x1x4x1x8x128xf32>
    %40 = vector.shape_cast %39 : vector<4x1x4x1x8x128xf32> to vector<4x4x8x128xf32>
    %41 = vector.extract_strided_slice %18 {offsets = [1, 0, 1, 1, 0, 0], sizes = [4, 1, 4, 1, 8, 128], strides = [1, 1, 1, 1, 1, 1]} : vector<5x2x5x2x8x128xf32> to vector<4x1x4x1x8x128xf32>
    %42 = vector.shape_cast %41 : vector<4x1x4x1x8x128xf32> to vector<4x4x8x128xf32>
    %43 = vector.extract_strided_slice %18 {offsets = [1, 1, 0, 0, 0, 0], sizes = [4, 1, 4, 1, 8, 128], strides = [1, 1, 1, 1, 1, 1]} : vector<5x2x5x2x8x128xf32> to vector<4x1x4x1x8x128xf32>
    %44 = vector.shape_cast %43 : vector<4x1x4x1x8x128xf32> to vector<4x4x8x128xf32>
    %45 = vector.extract_strided_slice %18 {offsets = [1, 1, 0, 1, 0, 0], sizes = [4, 1, 4, 1, 8, 128], strides = [1, 1, 1, 1, 1, 1]} : vector<5x2x5x2x8x128xf32> to vector<4x1x4x1x8x128xf32>
    %46 = vector.shape_cast %45 : vector<4x1x4x1x8x128xf32> to vector<4x4x8x128xf32>
    %47 = vector.extract_strided_slice %18 {offsets = [1, 1, 1, 0, 0, 0], sizes = [4, 1, 4, 1, 8, 128], strides = [1, 1, 1, 1, 1, 1]} : vector<5x2x5x2x8x128xf32> to vector<4x1x4x1x8x128xf32>
    %48 = vector.shape_cast %47 : vector<4x1x4x1x8x128xf32> to vector<4x4x8x128xf32>
    %49 = vector.extract_strided_slice %18 {offsets = [1, 1, 1, 1, 0, 0], sizes = [4, 1, 4, 1, 8, 128], strides = [1, 1, 1, 1, 1, 1]} : vector<5x2x5x2x8x128xf32> to vector<4x1x4x1x8x128xf32>
    %50 = vector.shape_cast %49 : vector<4x1x4x1x8x128xf32> to vector<4x4x8x128xf32>
    %51 = tpu.concatenate %20, %22, %24, %26, %28, %30, %32, %34, %36, %38, %40, %42, %44, %46, %48, %50 in 3 : vector<4x4x8x128xf32>, vector<4x4x8x128xf32>, vector<4x4x8x128xf32>, vector<4x4x8x128xf32>, vector<4x4x8x128xf32>, vector<4x4x8x128xf32>, vector<4x4x8x128xf32>, vector<4x4x8x128xf32>, vector<4x4x8x128xf32>, vector<4x4x8x128xf32>, vector<4x4x8x128xf32>, vector<4x4x8x128xf32>, vector<4x4x8x128xf32>, vector<4x4x8x128xf32>, vector<4x4x8x128xf32>, vector<4x4x8x128xf32> -> vector<4x4x8x2048xf32>
    %52 = vector.shape_cast %51 : vector<4x4x8x2048xf32> to vector<128x2048xf32>
    %c0_32 = arith.constant 0 : index
    %c0_33 = arith.constant 0 : index
    %53 = vector.load %arg4[%c0_32, %c0_33] : memref<2048x128xf32, #tpu.memory_space<vmem>>, vector<2048x128xf32>
    %cst_34 = arith.constant dense<0.000000e+00> : vector<128x128xf32>
    %54 = tpu.matmul %52, %53, %cst_34 {dimension_numbers = #tpu.dot_dimension_numbers<[1], [0], [0], [1], [0, 0, 1, 1], [], []>} : vector<128x2048xf32>, vector<2048x128xf32>, vector<128x128xf32> -> vector<128x128xf32>
    %c0_35 = arith.constant 0 : index
    %c0_36 = arith.constant 0 : index
    %55 = vector.load %arg5[%c0_35, %c0_36] : memref<1x128xf32, #tpu.memory_space<vmem>>, vector<1x128xf32>
    %56 = vector.broadcast %55 : vector<1x128xf32> to vector<128x128xf32>
    %57 = arith.addf %54, %56 : vector<128x128xf32>
    %cst_37 = arith.constant 0.000000e+00 : f32
    %58 = vector.broadcast %cst_37 : f32 to vector<128x128xf32>
    %59 = arith.maximumf %57, %58 : vector<128x128xf32>
    %cst_38 = arith.constant 0.000000e+00 : f32
    %60 = vector.broadcast %cst_38 : f32 to vector<1x6x8x128xf32>
    %cst_39 = arith.constant 0.000000e+00 : f32
    %61 = vector.broadcast %cst_39 : f32 to vector<4x1x8x128xf32>
    %c0_40 = arith.constant 0 : index
    %c0_41 = arith.constant 0 : index
    %c0_42 = arith.constant 0 : index
    %c0_43 = arith.constant 0 : index
    %62 = vector.load %arg14[%c0_40, %c0_41, %c0_42, %c0_43] : memref<6x6x8x128xf32, #tpu.memory_space<vmem>>, vector<1x6x8x128xf32>
    tpu.vector_store %arg14[%c0_40, %c0_41, %c0_42, %c0_43], %60 {strides = array<i32>} : memref<6x6x8x128xf32, #tpu.memory_space<vmem>>, vector<1x6x8x128xf32>,
    %c5 = arith.constant 5 : index
    %c0_44 = arith.constant 0 : index
    %c0_45 = arith.constant 0 : index
    %c0_46 = arith.constant 0 : index
    %63 = vector.load %arg14[%c5, %c0_44, %c0_45, %c0_46] : memref<6x6x8x128xf32, #tpu.memory_space<vmem>>, vector<1x6x8x128xf32>
    tpu.vector_store %arg14[%c5, %c0_44, %c0_45, %c0_46], %60 {strides = array<i32>} : memref<6x6x8x128xf32, #tpu.memory_space<vmem>>, vector<1x6x8x128xf32>,
    %c1_47 = arith.constant 1 : index
    %c0_48 = arith.constant 0 : index
    %c0_49 = arith.constant 0 : index
    %c0_50 = arith.constant 0 : index
    %64 = vector.load %arg14[%c1_47, %c0_48, %c0_49, %c0_50] : memref<6x6x8x128xf32, #tpu.memory_space<vmem>>, vector<4x1x8x128xf32>
    tpu.vector_store %arg14[%c1_47, %c0_48, %c0_49, %c0_50], %61 {strides = array<i32>} : memref<6x6x8x128xf32, #tpu.memory_space<vmem>>, vector<4x1x8x128xf32>,
    %c1_51 = arith.constant 1 : index
    %c5_52 = arith.constant 5 : index
    %c0_53 = arith.constant 0 : index
    %c0_54 = arith.constant 0 : index
    %65 = vector.load %arg14[%c1_51, %c5_52, %c0_53, %c0_54] : memref<6x6x8x128xf32, #tpu.memory_space<vmem>>, vector<4x1x8x128xf32>
    tpu.vector_store %arg14[%c1_51, %c5_52, %c0_53, %c0_54], %61 {strides = array<i32>} : memref<6x6x8x128xf32, #tpu.memory_space<vmem>>, vector<4x1x8x128xf32>,
    %66 = vector.shape_cast %59 : vector<128x128xf32> to vector<4x4x8x128xf32>
    %c1_55 = arith.constant 1 : index
    %c1_56 = arith.constant 1 : index
    %c0_57 = arith.constant 0 : index
    %c0_58 = arith.constant 0 : index
    %67 = vector.load %arg14[%c1_55, %c1_56, %c0_57, %c0_58] : memref<6x6x8x128xf32, #tpu.memory_space<vmem>>, vector<4x4x8x128xf32>
    tpu.vector_store %arg14[%c1_55, %c1_56, %c0_57, %c0_58], %66 {strides = array<i32>} : memref<6x6x8x128xf32, #tpu.memory_space<vmem>>, vector<4x4x8x128xf32>,
    %c0_59 = arith.constant 0 : index
    %c0_60 = arith.constant 0 : index
    %c0_61 = arith.constant 0 : index
    %c0_62 = arith.constant 0 : index
    %68 = vector.load %arg14[%c0_59, %c0_60, %c0_61, %c0_62] : memref<6x6x8x128xf32, #tpu.memory_space<vmem>>, vector<6x6x8x128xf32>
    %69 = vector.shape_cast %68 : vector<6x6x8x128xf32> to vector<3x2x3x2x8x128xf32>
    %70 = vector.extract_strided_slice %69 {offsets = [0, 0, 0, 0, 0, 0], sizes = [2, 1, 2, 1, 8, 128], strides = [1, 1, 1, 1, 1, 1]} : vector<3x2x3x2x8x128xf32> to vector<2x1x2x1x8x128xf32>
    %71 = vector.shape_cast %70 : vector<2x1x2x1x8x128xf32> to vector<2x2x8x128xf32>
    %72 = vector.extract_strided_slice %69 {offsets = [0, 0, 0, 1, 0, 0], sizes = [2, 1, 2, 1, 8, 128], strides = [1, 1, 1, 1, 1, 1]} : vector<3x2x3x2x8x128xf32> to vector<2x1x2x1x8x128xf32>
    %73 = vector.shape_cast %72 : vector<2x1x2x1x8x128xf32> to vector<2x2x8x128xf32>
    %74 = vector.extract_strided_slice %69 {offsets = [0, 0, 1, 0, 0, 0], sizes = [2, 1, 2, 1, 8, 128], strides = [1, 1, 1, 1, 1, 1]} : vector<3x2x3x2x8x128xf32> to vector<2x1x2x1x8x128xf32>
    %75 = vector.shape_cast %74 : vector<2x1x2x1x8x128xf32> to vector<2x2x8x128xf32>
    %76 = vector.extract_strided_slice %69 {offsets = [0, 0, 1, 1, 0, 0], sizes = [2, 1, 2, 1, 8, 128], strides = [1, 1, 1, 1, 1, 1]} : vector<3x2x3x2x8x128xf32> to vector<2x1x2x1x8x128xf32>
    %77 = vector.shape_cast %76 : vector<2x1x2x1x8x128xf32> to vector<2x2x8x128xf32>
    %78 = vector.extract_strided_slice %69 {offsets = [0, 1, 0, 0, 0, 0], sizes = [2, 1, 2, 1, 8, 128], strides = [1, 1, 1, 1, 1, 1]} : vector<3x2x3x2x8x128xf32> to vector<2x1x2x1x8x128xf32>
    %79 = vector.shape_cast %78 : vector<2x1x2x1x8x128xf32> to vector<2x2x8x128xf32>
    %80 = vector.extract_strided_slice %69 {offsets = [0, 1, 0, 1, 0, 0], sizes = [2, 1, 2, 1, 8, 128], strides = [1, 1, 1, 1, 1, 1]} : vector<3x2x3x2x8x128xf32> to vector<2x1x2x1x8x128xf32>
    %81 = vector.shape_cast %80 : vector<2x1x2x1x8x128xf32> to vector<2x2x8x128xf32>
    %82 = vector.extract_strided_slice %69 {offsets = [0, 1, 1, 0, 0, 0], sizes = [2, 1, 2, 1, 8, 128], strides = [1, 1, 1, 1, 1, 1]} : vector<3x2x3x2x8x128xf32> to vector<2x1x2x1x8x128xf32>
    %83 = vector.shape_cast %82 : vector<2x1x2x1x8x128xf32> to vector<2x2x8x128xf32>
    %84 = vector.extract_strided_slice %69 {offsets = [0, 1, 1, 1, 0, 0], sizes = [2, 1, 2, 1, 8, 128], strides = [1, 1, 1, 1, 1, 1]} : vector<3x2x3x2x8x128xf32> to vector<2x1x2x1x8x128xf32>
    %85 = vector.shape_cast %84 : vector<2x1x2x1x8x128xf32> to vector<2x2x8x128xf32>
    %86 = vector.extract_strided_slice %69 {offsets = [1, 0, 0, 0, 0, 0], sizes = [2, 1, 2, 1, 8, 128], strides = [1, 1, 1, 1, 1, 1]} : vector<3x2x3x2x8x128xf32> to vector<2x1x2x1x8x128xf32>
    %87 = vector.shape_cast %86 : vector<2x1x2x1x8x128xf32> to vector<2x2x8x128xf32>
    %88 = vector.extract_strided_slice %69 {offsets = [1, 0, 0, 1, 0, 0], sizes = [2, 1, 2, 1, 8, 128], strides = [1, 1, 1, 1, 1, 1]} : vector<3x2x3x2x8x128xf32> to vector<2x1x2x1x8x128xf32>
    %89 = vector.shape_cast %88 : vector<2x1x2x1x8x128xf32> to vector<2x2x8x128xf32>
    %90 = vector.extract_strided_slice %69 {offsets = [1, 0, 1, 0, 0, 0], sizes = [2, 1, 2, 1, 8, 128], strides = [1, 1, 1, 1, 1, 1]} : vector<3x2x3x2x8x128xf32> to vector<2x1x2x1x8x128xf32>
    %91 = vector.shape_cast %90 : vector<2x1x2x1x8x128xf32> to vector<2x2x8x128xf32>
    %92 = vector.extract_strided_slice %69 {offsets = [1, 0, 1, 1, 0, 0], sizes = [2, 1, 2, 1, 8, 128], strides = [1, 1, 1, 1, 1, 1]} : vector<3x2x3x2x8x128xf32> to vector<2x1x2x1x8x128xf32>
    %93 = vector.shape_cast %92 : vector<2x1x2x1x8x128xf32> to vector<2x2x8x128xf32>
    %94 = vector.extract_strided_slice %69 {offsets = [1, 1, 0, 0, 0, 0], sizes = [2, 1, 2, 1, 8, 128], strides = [1, 1, 1, 1, 1, 1]} : vector<3x2x3x2x8x128xf32> to vector<2x1x2x1x8x128xf32>
    %95 = vector.shape_cast %94 : vector<2x1x2x1x8x128xf32> to vector<2x2x8x128xf32>
    %96 = vector.extract_strided_slice %69 {offsets = [1, 1, 0, 1, 0, 0], sizes = [2, 1, 2, 1, 8, 128], strides = [1, 1, 1, 1, 1, 1]} : vector<3x2x3x2x8x128xf32> to vector<2x1x2x1x8x128xf32>
    %97 = vector.shape_cast %96 : vector<2x1x2x1x8x128xf32> to vector<2x2x8x128xf32>
    %98 = vector.extract_strided_slice %69 {offsets = [1, 1, 1, 0, 0, 0], sizes = [2, 1, 2, 1, 8, 128], strides = [1, 1, 1, 1, 1, 1]} : vector<3x2x3x2x8x128xf32> to vector<2x1x2x1x8x128xf32>
    %99 = vector.shape_cast %98 : vector<2x1x2x1x8x128xf32> to vector<2x2x8x128xf32>
    %100 = vector.extract_strided_slice %69 {offsets = [1, 1, 1, 1, 0, 0], sizes = [2, 1, 2, 1, 8, 128], strides = [1, 1, 1, 1, 1, 1]} : vector<3x2x3x2x8x128xf32> to vector<2x1x2x1x8x128xf32>
    %101 = vector.shape_cast %100 : vector<2x1x2x1x8x128xf32> to vector<2x2x8x128xf32>
    %102 = tpu.concatenate %71, %73, %75, %77, %79, %81, %83, %85, %87, %89, %91, %93, %95, %97, %99, %101 in 3 : vector<2x2x8x128xf32>, vector<2x2x8x128xf32>, vector<2x2x8x128xf32>, vector<2x2x8x128xf32>, vector<2x2x8x128xf32>, vector<2x2x8x128xf32>, vector<2x2x8x128xf32>, vector<2x2x8x128xf32>, vector<2x2x8x128xf32>, vector<2x2x8x128xf32>, vector<2x2x8x128xf32>, vector<2x2x8x128xf32>, vector<2x2x8x128xf32>, vector<2x2x8x128xf32>, vector<2x2x8x128xf32>, vector<2x2x8x128xf32> -> vector<2x2x8x2048xf32>
    %103 = vector.shape_cast %102 : vector<2x2x8x2048xf32> to vector<32x2048xf32>
    %c0_63 = arith.constant 0 : index
    %c0_64 = arith.constant 0 : index
    %104 = vector.load %arg6[%c0_63, %c0_64] : memref<2048x128xf32, #tpu.memory_space<vmem>>, vector<2048x128xf32>
    %cst_65 = arith.constant dense<0.000000e+00> : vector<32x128xf32>
    %105 = tpu.matmul %103, %104, %cst_65 {dimension_numbers = #tpu.dot_dimension_numbers<[1], [0], [0], [1], [0, 0, 1, 1], [], []>} : vector<32x2048xf32>, vector<2048x128xf32>, vector<32x128xf32> -> vector<32x128xf32>
    %c0_66 = arith.constant 0 : index
    %c0_67 = arith.constant 0 : index
    %106 = vector.load %arg7[%c0_66, %c0_67] : memref<1x128xf32, #tpu.memory_space<vmem>>, vector<1x128xf32>
    %107 = vector.broadcast %106 : vector<1x128xf32> to vector<32x128xf32>
    %108 = arith.addf %105, %107 : vector<32x128xf32>
    %cst_68 = arith.constant 0.000000e+00 : f32
    %109 = vector.broadcast %cst_68 : f32 to vector<32x128xf32>
    %110 = arith.maximumf %108, %109 : vector<32x128xf32>
    %cst_69 = arith.constant 0.000000e+00 : f32
    %111 = vector.broadcast %cst_69 : f32 to vector<1x4x8x128xf32>
    %cst_70 = arith.constant 0.000000e+00 : f32
    %112 = vector.broadcast %cst_70 : f32 to vector<2x1x8x128xf32>
    %c0_71 = arith.constant 0 : index
    %c0_72 = arith.constant 0 : index
    %c0_73 = arith.constant 0 : index
    %c0_74 = arith.constant 0 : index
    %113 = vector.load %arg15[%c0_71, %c0_72, %c0_73, %c0_74] : memref<4x4x8x128xf32, #tpu.memory_space<vmem>>, vector<1x4x8x128xf32>
    tpu.vector_store %arg15[%c0_71, %c0_72, %c0_73, %c0_74], %111 {strides = array<i32>} : memref<4x4x8x128xf32, #tpu.memory_space<vmem>>, vector<1x4x8x128xf32>,
    %c3 = arith.constant 3 : index
    %c0_75 = arith.constant 0 : index
    %c0_76 = arith.constant 0 : index
    %c0_77 = arith.constant 0 : index
    %114 = vector.load %arg15[%c3, %c0_75, %c0_76, %c0_77] : memref<4x4x8x128xf32, #tpu.memory_space<vmem>>, vector<1x4x8x128xf32>
    tpu.vector_store %arg15[%c3, %c0_75, %c0_76, %c0_77], %111 {strides = array<i32>} : memref<4x4x8x128xf32, #tpu.memory_space<vmem>>, vector<1x4x8x128xf32>,
    %c1_78 = arith.constant 1 : index
    %c0_79 = arith.constant 0 : index
    %c0_80 = arith.constant 0 : index
    %c0_81 = arith.constant 0 : index
    %115 = vector.load %arg15[%c1_78, %c0_79, %c0_80, %c0_81] : memref<4x4x8x128xf32, #tpu.memory_space<vmem>>, vector<2x1x8x128xf32>
    tpu.vector_store %arg15[%c1_78, %c0_79, %c0_80, %c0_81], %112 {strides = array<i32>} : memref<4x4x8x128xf32, #tpu.memory_space<vmem>>, vector<2x1x8x128xf32>,
    %c1_82 = arith.constant 1 : index
    %c3_83 = arith.constant 3 : index
    %c0_84 = arith.constant 0 : index
    %c0_85 = arith.constant 0 : index
    %116 = vector.load %arg15[%c1_82, %c3_83, %c0_84, %c0_85] : memref<4x4x8x128xf32, #tpu.memory_space<vmem>>, vector<2x1x8x128xf32>
    tpu.vector_store %arg15[%c1_82, %c3_83, %c0_84, %c0_85], %112 {strides = array<i32>} : memref<4x4x8x128xf32, #tpu.memory_space<vmem>>, vector<2x1x8x128xf32>,
    %117 = vector.shape_cast %110 : vector<32x128xf32> to vector<2x2x8x128xf32>
    %c1_86 = arith.constant 1 : index
    %c1_87 = arith.constant 1 : index
    %c0_88 = arith.constant 0 : index
    %c0_89 = arith.constant 0 : index
    %118 = vector.load %arg15[%c1_86, %c1_87, %c0_88, %c0_89] : memref<4x4x8x128xf32, #tpu.memory_space<vmem>>, vector<2x2x8x128xf32>
    tpu.vector_store %arg15[%c1_86, %c1_87, %c0_88, %c0_89], %117 {strides = array<i32>} : memref<4x4x8x128xf32, #tpu.memory_space<vmem>>, vector<2x2x8x128xf32>,
    %c0_90 = arith.constant 0 : index
    %c0_91 = arith.constant 0 : index
    %c0_92 = arith.constant 0 : index
    %c0_93 = arith.constant 0 : index
    %119 = vector.load %arg15[%c0_90, %c0_91, %c0_92, %c0_93] : memref<4x4x8x128xf32, #tpu.memory_space<vmem>>, vector<4x4x8x128xf32>
    %120 = vector.shape_cast %119 : vector<4x4x8x128xf32> to vector<2x2x2x2x8x128xf32>
    %121 = vector.extract_strided_slice %120 {offsets = [0, 0, 0, 0, 0, 0], sizes = [1, 1, 1, 1, 8, 128], strides = [1, 1, 1, 1, 1, 1]} : vector<2x2x2x2x8x128xf32> to vector<1x1x1x1x8x128xf32>
    %122 = vector.shape_cast %121 : vector<1x1x1x1x8x128xf32> to vector<1x1x8x128xf32>
    %123 = vector.extract_strided_slice %120 {offsets = [0, 0, 0, 1, 0, 0], sizes = [1, 1, 1, 1, 8, 128], strides = [1, 1, 1, 1, 1, 1]} : vector<2x2x2x2x8x128xf32> to vector<1x1x1x1x8x128xf32>
    %124 = vector.shape_cast %123 : vector<1x1x1x1x8x128xf32> to vector<1x1x8x128xf32>
    %125 = vector.extract_strided_slice %120 {offsets = [0, 0, 1, 0, 0, 0], sizes = [1, 1, 1, 1, 8, 128], strides = [1, 1, 1, 1, 1, 1]} : vector<2x2x2x2x8x128xf32> to vector<1x1x1x1x8x128xf32>
    %126 = vector.shape_cast %125 : vector<1x1x1x1x8x128xf32> to vector<1x1x8x128xf32>
    %127 = vector.extract_strided_slice %120 {offsets = [0, 0, 1, 1, 0, 0], sizes = [1, 1, 1, 1, 8, 128], strides = [1, 1, 1, 1, 1, 1]} : vector<2x2x2x2x8x128xf32> to vector<1x1x1x1x8x128xf32>
    %128 = vector.shape_cast %127 : vector<1x1x1x1x8x128xf32> to vector<1x1x8x128xf32>
    %129 = vector.extract_strided_slice %120 {offsets = [0, 1, 0, 0, 0, 0], sizes = [1, 1, 1, 1, 8, 128], strides = [1, 1, 1, 1, 1, 1]} : vector<2x2x2x2x8x128xf32> to vector<1x1x1x1x8x128xf32>
    %130 = vector.shape_cast %129 : vector<1x1x1x1x8x128xf32> to vector<1x1x8x128xf32>
    %131 = vector.extract_strided_slice %120 {offsets = [0, 1, 0, 1, 0, 0], sizes = [1, 1, 1, 1, 8, 128], strides = [1, 1, 1, 1, 1, 1]} : vector<2x2x2x2x8x128xf32> to vector<1x1x1x1x8x128xf32>
    %132 = vector.shape_cast %131 : vector<1x1x1x1x8x128xf32> to vector<1x1x8x128xf32>
    %133 = vector.extract_strided_slice %120 {offsets = [0, 1, 1, 0, 0, 0], sizes = [1, 1, 1, 1, 8, 128], strides = [1, 1, 1, 1, 1, 1]} : vector<2x2x2x2x8x128xf32> to vector<1x1x1x1x8x128xf32>
    %134 = vector.shape_cast %133 : vector<1x1x1x1x8x128xf32> to vector<1x1x8x128xf32>
    %135 = vector.extract_strided_slice %120 {offsets = [0, 1, 1, 1, 0, 0], sizes = [1, 1, 1, 1, 8, 128], strides = [1, 1, 1, 1, 1, 1]} : vector<2x2x2x2x8x128xf32> to vector<1x1x1x1x8x128xf32>
    %136 = vector.shape_cast %135 : vector<1x1x1x1x8x128xf32> to vector<1x1x8x128xf32>
    %137 = vector.extract_strided_slice %120 {offsets = [1, 0, 0, 0, 0, 0], sizes = [1, 1, 1, 1, 8, 128], strides = [1, 1, 1, 1, 1, 1]} : vector<2x2x2x2x8x128xf32> to vector<1x1x1x1x8x128xf32>
    %138 = vector.shape_cast %137 : vector<1x1x1x1x8x128xf32> to vector<1x1x8x128xf32>
    %139 = vector.extract_strided_slice %120 {offsets = [1, 0, 0, 1, 0, 0], sizes = [1, 1, 1, 1, 8, 128], strides = [1, 1, 1, 1, 1, 1]} : vector<2x2x2x2x8x128xf32> to vector<1x1x1x1x8x128xf32>
    %140 = vector.shape_cast %139 : vector<1x1x1x1x8x128xf32> to vector<1x1x8x128xf32>
    %141 = vector.extract_strided_slice %120 {offsets = [1, 0, 1, 0, 0, 0], sizes = [1, 1, 1, 1, 8, 128], strides = [1, 1, 1, 1, 1, 1]} : vector<2x2x2x2x8x128xf32> to vector<1x1x1x1x8x128xf32>
    %142 = vector.shape_cast %141 : vector<1x1x1x1x8x128xf32> to vector<1x1x8x128xf32>
    %143 = vector.extract_strided_slice %120 {offsets = [1, 0, 1, 1, 0, 0], sizes = [1, 1, 1, 1, 8, 128], strides = [1, 1, 1, 1, 1, 1]} : vector<2x2x2x2x8x128xf32> to vector<1x1x1x1x8x128xf32>
    %144 = vector.shape_cast %143 : vector<1x1x1x1x8x128xf32> to vector<1x1x8x128xf32>
    %145 = vector.extract_strided_slice %120 {offsets = [1, 1, 0, 0, 0, 0], sizes = [1, 1, 1, 1, 8, 128], strides = [1, 1, 1, 1, 1, 1]} : vector<2x2x2x2x8x128xf32> to vector<1x1x1x1x8x128xf32>
    %146 = vector.shape_cast %145 : vector<1x1x1x1x8x128xf32> to vector<1x1x8x128xf32>
    %147 = vector.extract_strided_slice %120 {offsets = [1, 1, 0, 1, 0, 0], sizes = [1, 1, 1, 1, 8, 128], strides = [1, 1, 1, 1, 1, 1]} : vector<2x2x2x2x8x128xf32> to vector<1x1x1x1x8x128xf32>
    %148 = vector.shape_cast %147 : vector<1x1x1x1x8x128xf32> to vector<1x1x8x128xf32>
    %149 = vector.extract_strided_slice %120 {offsets = [1, 1, 1, 0, 0, 0], sizes = [1, 1, 1, 1, 8, 128], strides = [1, 1, 1, 1, 1, 1]} : vector<2x2x2x2x8x128xf32> to vector<1x1x1x1x8x128xf32>
    %150 = vector.shape_cast %149 : vector<1x1x1x1x8x128xf32> to vector<1x1x8x128xf32>
    %151 = vector.extract_strided_slice %120 {offsets = [1, 1, 1, 1, 0, 0], sizes = [1, 1, 1, 1, 8, 128], strides = [1, 1, 1, 1, 1, 1]} : vector<2x2x2x2x8x128xf32> to vector<1x1x1x1x8x128xf32>
    %152 = vector.shape_cast %151 : vector<1x1x1x1x8x128xf32> to vector<1x1x8x128xf32>
    %153 = tpu.concatenate %122, %124, %126, %128, %130, %132, %134, %136, %138, %140, %142, %144, %146, %148, %150, %152 in 3 : vector<1x1x8x128xf32>, vector<1x1x8x128xf32>, vector<1x1x8x128xf32>, vector<1x1x8x128xf32>, vector<1x1x8x128xf32>, vector<1x1x8x128xf32>, vector<1x1x8x128xf32>, vector<1x1x8x128xf32>, vector<1x1x8x128xf32>, vector<1x1x8x128xf32>, vector<1x1x8x128xf32>, vector<1x1x8x128xf32>, vector<1x1x8x128xf32>, vector<1x1x8x128xf32>, vector<1x1x8x128xf32>, vector<1x1x8x128xf32> -> vector<1x1x8x2048xf32>
    %154 = vector.shape_cast %153 : vector<1x1x8x2048xf32> to vector<8x2048xf32>
    %c0_94 = arith.constant 0 : index
    %c0_95 = arith.constant 0 : index
    %155 = vector.load %arg8[%c0_94, %c0_95] : memref<2048x128xf32, #tpu.memory_space<vmem>>, vector<2048x128xf32>
    %cst_96 = arith.constant dense<0.000000e+00> : vector<8x128xf32>
    %156 = tpu.matmul %154, %155, %cst_96 {dimension_numbers = #tpu.dot_dimension_numbers<[1], [0], [0], [1], [0, 0, 1, 1], [], []>} : vector<8x2048xf32>, vector<2048x128xf32>, vector<8x128xf32> -> vector<8x128xf32>
    %c0_97 = arith.constant 0 : index
    %c0_98 = arith.constant 0 : index
    %157 = vector.load %arg9[%c0_97, %c0_98] : memref<1x128xf32, #tpu.memory_space<vmem>>, vector<1x128xf32>
    %158 = vector.broadcast %157 : vector<1x128xf32> to vector<8x128xf32>
    %159 = arith.addf %156, %158 : vector<8x128xf32>
    %cst_99 = arith.constant 0.000000e+00 : f32
    %160 = vector.broadcast %cst_99 : f32 to vector<8x128xf32>
    %161 = arith.maximumf %159, %160 : vector<8x128xf32>
    %c0_100 = arith.constant 0 : index
    %c0_101 = arith.constant 0 : index
    %162 = vector.load %arg10[%c0_100, %c0_101] : memref<128x128xf32, #tpu.memory_space<vmem>>, vector<128x128xf32>
    %cst_102 = arith.constant dense<0.000000e+00> : vector<8x128xf32>
    %163 = tpu.matmul %161, %162, %cst_102 {dimension_numbers = #tpu.dot_dimension_numbers<[1], [0], [0], [1], [0, 0, 1, 1], [], []>} : vector<8x128xf32>, vector<128x128xf32>, vector<8x128xf32> -> vector<8x128xf32>
    %c0_103 = arith.constant 0 : index
    %c0_104 = arith.constant 0 : index
    %164 = vector.load %arg11[%c0_103, %c0_104] : memref<1x128xf32, #tpu.memory_space<vmem>>, vector<1x128xf32>
    %165 = vector.broadcast %164 : vector<1x128xf32> to vector<8x128xf32>
    %166 = arith.addf %163, %165 : vector<8x128xf32>
    %c0_105 = arith.constant 0 : index
    %c0_106 = arith.constant 0 : index
    %167 = vector.load %arg12[%c0_105, %c0_106] : memref<8x128xf32, #tpu.memory_space<vmem>>, vector<8x128xf32>
    tpu.vector_store %arg12[%c0_105, %c0_106], %166 {strides = array<i32>} : memref<8x128xf32, #tpu.memory_space<vmem>>, vector<8x128xf32>,
    return
  }
  func.func @transform_0(%arg0: i32) -> (i32, i32, i32, i32) {
    %c0_i32 = arith.constant 0 : i32
    %c0_i32_0 = arith.constant 0 : i32
    %c0_i32_1 = arith.constant 0 : i32
    %c0_i32_2 = arith.constant 0 : i32
    return %c0_i32, %c0_i32_0, %arg0, %c0_i32_1 : i32, i32, i32, i32
  }
  func.func @transform_1(%arg0: i32) -> (i32, i32) {
    %c0_i32 = arith.constant 0 : i32
    %c0_i32_0 = arith.constant 0 : i32
    %c0_i32_1 = arith.constant 0 : i32
    return %c0_i32, %c0_i32_0 : i32, i32
  }
  func.func @transform_2(%arg0: i32) -> (i32, i32) {
    %c0_i32 = arith.constant 0 : i32
    %c0_i32_0 = arith.constant 0 : i32
    %c0_i32_1 = arith.constant 0 : i32
    return %c0_i32, %c0_i32_0 : i32, i32
  }
  func.func @transform_3(%arg0: i32) -> (i32, i32) {
    %c0_i32 = arith.constant 0 : i32
    %c0_i32_0 = arith.constant 0 : i32
    %c0_i32_1 = arith.constant 0 : i32
    return %c0_i32, %c0_i32_0 : i32, i32
  }
  func.func @transform_4(%arg0: i32) -> (i32, i32) {
    %c0_i32 = arith.constant 0 : i32
    %c0_i32_0 = arith.constant 0 : i32
    %c0_i32_1 = arith.constant 0 : i32
    return %c0_i32, %c0_i32_0 : i32, i32
  }
  func.func @transform_5(%arg0: i32) -> (i32, i32) {
    %c0_i32 = arith.constant 0 : i32
    %c0_i32_0 = arith.constant 0 : i32
    %c0_i32_1 = arith.constant 0 : i32
    return %c0_i32, %c0_i32_0 : i32, i32
  }
  func.func @transform_6(%arg0: i32) -> (i32, i32) {
    %c0_i32 = arith.constant 0 : i32
    %c0_i32_0 = arith.constant 0 : i32
    %c0_i32_1 = arith.constant 0 : i32
    return %c0_i32, %c0_i32_0 : i32, i32
  }
  func.func @transform_7(%arg0: i32) -> (i32, i32) {
    %c0_i32 = arith.constant 0 : i32
    %c0_i32_0 = arith.constant 0 : i32
    %c0_i32_1 = arith.constant 0 : i32
    return %c0_i32, %c0_i32_0 : i32, i32
  }
  func.func @transform_8(%arg0: i32) -> (i32, i32) {
    %c0_i32 = arith.constant 0 : i32
    %c0_i32_0 = arith.constant 0 : i32
    %c0_i32_1 = arith.constant 0 : i32
    return %c0_i32, %c0_i32_0 : i32, i32
  }
  func.func @transform_9(%arg0: i32) -> (i32, i32) {
    %c0_i32 = arith.constant 0 : i32
    %c0_i32_0 = arith.constant 0 : i32
    %c0_i32_1 = arith.constant 0 : i32
    return %c0_i32, %c0_i32_0 : i32, i32
  }
  func.func @transform_10(%arg0: i32) -> (i32, i32) {
    %c0_i32 = arith.constant 0 : i32
    %c0_i32_0 = arith.constant 0 : i32
    %c0_i32_1 = arith.constant 0 : i32
    return %c0_i32, %c0_i32_0 : i32, i32
  }
  func.func @transform_11(%arg0: i32) -> (i32, i32) {
    %c0_i32 = arith.constant 0 : i32
    %c0_i32_0 = arith.constant 0 : i32
    return %arg0, %c0_i32 : i32, i32
  }
}

</mosaic_0001>

<llo_original>
// kernel: _lambda_.1
$region0: #{_lambda_.1}
  #allocation0 [shape = 'u32[]', space=smem, size = 0x4, offset = 0x4, fixed_abs, tag = 'smem constant byte address 0x4 - core index']
  #allocation1 [shape = 'u32[72,128]{1,0:T(1,128)}', space=vmem, size = 0x9000, scoped, tag = 'internal scratch']
  #allocation2 [shape = 'f32[10,10,8,128]{3,2,1,0:T(8,128)}', space=vmem, size = 0x64000, scoped, tag = 'scratch operand']
  #allocation3 [shape = 'f32[6,6,8,128]{3,2,1,0:T(8,128)}', space=vmem, size = 0x24000, scoped, tag = 'scratch operand']
  #allocation4 [shape = 'f32[4,4,8,128]{3,2,1,0:T(8,128)}', space=vmem, size = 0x10000, scoped, tag = 'scratch operand']
  %s0 = inlined_call_operand.vmem [shape: f32[8,8,8,128], index: 0, kind: input, shape index: {}]
  %s1 = inlined_call_operand.vmem [shape: f32[128,128], index: 1, kind: input, shape index: {}]
  %s2 = inlined_call_operand.vmem [shape: f32[1,128], index: 2, kind: input, shape index: {}]
  %s3 = inlined_call_operand.vmem [shape: f32[2048,128], index: 3, kind: input, shape index: {}]
  %s4 = inlined_call_operand.vmem [shape: f32[1,128], index: 4, kind: input, shape index: {}]
  %s5 = inlined_call_operand.vmem [shape: f32[2048,128], index: 5, kind: input, shape index: {}]
  %s6 = inlined_call_operand.vmem [shape: f32[1,128], index: 6, kind: input, shape index: {}]
  %s7 = inlined_call_operand.vmem [shape: f32[2048,128], index: 7, kind: input, shape index: {}]
  %s8 = inlined_call_operand.vmem [shape: f32[1,128], index: 8, kind: input, shape index: {}]
  %s9 = inlined_call_operand.vmem [shape: f32[128,128], index: 9, kind: input, shape index: {}]
  %s10 = inlined_call_operand.vmem [shape: f32[1,128], index: 10, kind: input, shape index: {}]
  %s11 = inlined_call_operand.vmem [shape: f32[8,128], index: 11, kind: output, shape index: {}]
  %s12 = sld [smem:[#allocation0]]
  $region54: #{_lambda_.1} parent=0
    _
  %s14 = ssub.s32 1, %s12
  %s15 = scalar_select 0, %s14, %s12
  // Predicated region
  $region2: #{_lambda_.1} parent=0 // pred_check
    _
  $region3: #{_lambda_.1} parent=0 // pred_check_branch
    %17 = sbr.rel (0) target = $region5
  $region4: #{_lambda_.1} parent=0 // pred_region
    _
  $region5: #{_lambda_.1} parent=0 // pred_fallthru
    _
  // Predicated region
  $region6: #{_lambda_.1} parent=0 // pred_check
    _
  $region7: #{_lambda_.1} parent=0 // pred_check_branch
    %19 = sbr.rel (0) target = $region9
  $region8: #{_lambda_.1} parent=0 // pred_region
    _
  $region9: #{_lambda_.1} parent=0 // pred_fallthru
    _
  // Predicated region
  $region10: #{_lambda_.1} parent=0 // pred_check
    _
  $region11: #{_lambda_.1} parent=0 // pred_check_branch
    %21 = sbr.rel (0) target = $region13
  $region12: #{_lambda_.1} parent=0 // pred_region
    _
  $region13: #{_lambda_.1} parent=0 // pred_fallthru
    _
  // Predicated region
  $region14: #{_lambda_.1} parent=0 // pred_check
    _
  $region15: #{_lambda_.1} parent=0 // pred_check_branch
    %23 = sbr.rel (0) target = $region17
  $region16: #{_lambda_.1} parent=0 // pred_region
    _
  $region17: #{_lambda_.1} parent=0 // pred_fallthru
    _
  // Predicated region
  $region18: #{_lambda_.1} parent=0 // pred_check
    _
  $region19: #{_lambda_.1} parent=0 // pred_check_branch
    %25 = sbr.rel (0) target = $region21
  $region20: #{_lambda_.1} parent=0 // pred_region
    _
  $region21: #{_lambda_.1} parent=0 // pred_fallthru
    _
  // Predicated region
  $region22: #{_lambda_.1} parent=0 // pred_check
    _
  $region23: #{_lambda_.1} parent=0 // pred_check_branch
    %27 = sbr.rel (0) target = $region25
  $region24: #{_lambda_.1} parent=0 // pred_region
    _
  $region25: #{_lambda_.1} parent=0 // pred_fallthru
    _
  // Predicated region
  $region26: #{_lambda_.1} parent=0 // pred_check
    _
  $region27: #{_lambda_.1} parent=0 // pred_check_branch
    %29 = sbr.rel (0) target = $region29
  $region28: #{_lambda_.1} parent=0 // pred_region
    _
  $region29: #{_lambda_.1} parent=0 // pred_fallthru
    _
  // Predicated region
  $region30: #{_lambda_.1} parent=0 // pred_check
    _
  $region31: #{_lambda_.1} parent=0 // pred_check_branch
    %31 = sbr.rel (0) target = $region33
  $region32: #{_lambda_.1} parent=0 // pred_region
    _
  $region33: #{_lambda_.1} parent=0 // pred_fallthru
    _
  // Predicated region
  $region34: #{_lambda_.1} parent=0 // pred_check
    _
  $region35: #{_lambda_.1} parent=0 // pred_check_branch
    %33 = sbr.rel (0) target = $region37
  $region36: #{_lambda_.1} parent=0 // pred_region
    _
  $region37: #{_lambda_.1} parent=0 // pred_fallthru
    _
  // Predicated region
  $region38: #{_lambda_.1} parent=0 // pred_check
    _
  $region39: #{_lambda_.1} parent=0 // pred_check_branch
    %35 = sbr.rel (0) target = $region41
  $region40: #{_lambda_.1} parent=0 // pred_region
    _
  $region41: #{_lambda_.1} parent=0 // pred_fallthru
    _
  // Predicated region
  $region42: #{_lambda_.1} parent=0 // pred_check
    _
  $region43: #{_lambda_.1} parent=0 // pred_check_branch
    %37 = sbr.rel (0) target = $region45
  $region44: #{_lambda_.1} parent=0 // pred_region
    _
  $region45: #{_lambda_.1} parent=0 // pred_fallthru
    _
  %v38 = vld [vmem:[%s0] sm:$0xff]
  %v39 = vld [vmem:[%s0 + $0x8] sm:$0xff]
  %v40 = vld [vmem:[%s0 + $0x10] sm:$0xff]
  %v41 = vld [vmem:[%s0 + $0x18] sm:$0xff]
  %v42 = vld [vmem:[%s0 + $0x20] sm:$0xff]
  %v43 = vld [vmem:[%s0 + $0x28] sm:$0xff]
  %v44 = vld [vmem:[%s0 + $0x30] sm:$0xff]
  %v45 = vld [vmem:[%s0 + $0x38] sm:$0xff]
  %v46 = vld [vmem:[%s0 + $0x40] sm:$0xff]
  %v47 = vld [vmem:[%s0 + $0x48] sm:$0xff]
  %v48 = vld [vmem:[%s0 + $0x50] sm:$0xff]
  %v49 = vld [vmem:[%s0 + $0x58] sm:$0xff]
  %v50 = vld [vmem:[%s0 + $0x60] sm:$0xff]
  %v51 = vld [vmem:[%s0 + $0x68] sm:$0xff]
  %v52 = vld [vmem:[%s0 + $0x70] sm:$0xff]
  %v53 = vld [vmem:[%s0 + $0x78] sm:$0xff]
  %v54 = vld [vmem:[%s0 + $0x80] sm:$0xff]
  %v55 = vld [vmem:[%s0 + $0x88] sm:$0xff]
  %v56 = vld [vmem:[%s0 + $0x90] sm:$0xff]
  %v57 = vld [vmem:[%s0 + $0x98] sm:$0xff]
  %v58 = vld [vmem:[%s0 + $0xa0] sm:$0xff]
  %v59 = vld [vmem:[%s0 + $0xa8] sm:$0xff]
  %v60 = vld [vmem:[%s0 + $0xb0] sm:$0xff]
  %v61 = vld [vmem:[%s0 + $0xb8] sm:$0xff]
  %v62 = vld [vmem:[%s0 + $0xc0] sm:$0xff]
  %v63 = vld [vmem:[%s0 + $0xc8] sm:$0xff]
  %v64 = vld [vmem:[%s0 + $0xd0] sm:$0xff]
  %v65 = vld [vmem:[%s0 + $0xd8] sm:$0xff]
  %v66 = vld [vmem:[%s0 + $0xe0] sm:$0xff]
  %v67 = vld [vmem:[%s0 + $0xe8] sm:$0xff]
  %v68 = vld [vmem:[%s0 + $0xf0] sm:$0xff]
  %v69 = vld [vmem:[%s0 + $0xf8] sm:$0xff]
  %v70 = vld [vmem:[%s0 + $0x100] sm:$0xff]
  %v71 = vld [vmem:[%s0 + $0x108] sm:$0xff]
  %v72 = vld [vmem:[%s0 + $0x110] sm:$0xff]
  %v73 = vld [vmem:[%s0 + $0x118] sm:$0xff]
  %v74 = vld [vmem:[%s0 + $0x120] sm:$0xff]
  %v75 = vld [vmem:[%s0 + $0x128] sm:$0xff]
  %v76 = vld [vmem:[%s0 + $0x130] sm:$0xff]
  %v77 = vld [vmem:[%s0 + $0x138] sm:$0xff]
  %v78 = vld [vmem:[%s0 + $0x140] sm:$0xff]
  %v79 = vld [vmem:[%s0 + $0x148] sm:$0xff]
  %v80 = vld [vmem:[%s0 + $0x150] sm:$0xff]
  %v81 = vld [vmem:[%s0 + $0x158] sm:$0xff]
  %v82 = vld [vmem:[%s0 + $0x160] sm:$0xff]
  %v83 = vld [vmem:[%s0 + $0x168] sm:$0xff]
  %v84 = vld [vmem:[%s0 + $0x170] sm:$0xff]
  %v85 = vld [vmem:[%s0 + $0x178] sm:$0xff]
  %v86 = vld [vmem:[%s0 + $0x180] sm:$0xff]
  %v87 = vld [vmem:[%s0 + $0x188] sm:$0xff]
  %v88 = vld [vmem:[%s0 + $0x190] sm:$0xff]
  %v89 = vld [vmem:[%s0 + $0x198] sm:$0xff]
  %v90 = vld [vmem:[%s0 + $0x1a0] sm:$0xff]
  %v91 = vld [vmem:[%s0 + $0x1a8] sm:$0xff]
  %v92 = vld [vmem:[%s0 + $0x1b0] sm:$0xff]
  %v93 = vld [vmem:[%s0 + $0x1b8] sm:$0xff]
  %v94 = vld [vmem:[%s0 + $0x1c0] sm:$0xff]
  %v95 = vld [vmem:[%s0 + $0x1c8] sm:$0xff]
  %v96 = vld [vmem:[%s0 + $0x1d0] sm:$0xff]
  %v97 = vld [vmem:[%s0 + $0x1d8] sm:$0xff]
  %v98 = vld [vmem:[%s0 + $0x1e0] sm:$0xff]
  %v99 = vld [vmem:[%s0 + $0x1e8] sm:$0xff]
  %v100 = vld [vmem:[%s0 + $0x1f0] sm:$0xff]
  %v101 = vld [vmem:[%s0 + $0x1f8] sm:$0xff]
  %v102 = vld [vmem:[%s1] sm:$0xff]
  %v103 = vld [vmem:[%s1 + $0x8] sm:$0xff]
  %v104 = vld [vmem:[%s1 + $0x10] sm:$0xff]
  %v105 = vld [vmem:[%s1 + $0x18] sm:$0xff]
  %v106 = vld [vmem:[%s1 + $0x20] sm:$0xff]
  %v107 = vld [vmem:[%s1 + $0x28] sm:$0xff]
  %v108 = vld [vmem:[%s1 + $0x30] sm:$0xff]
  %v109 = vld [vmem:[%s1 + $0x38] sm:$0xff]
  %v110 = vld [vmem:[%s1 + $0x40] sm:$0xff]
  %v111 = vld [vmem:[%s1 + $0x48] sm:$0xff]
  %v112 = vld [vmem:[%s1 + $0x50] sm:$0xff]
  %v113 = vld [vmem:[%s1 + $0x58] sm:$0xff]
  %v114 = vld [vmem:[%s1 + $0x60] sm:$0xff]
  %v115 = vld [vmem:[%s1 + $0x68] sm:$0xff]
  %v116 = vld [vmem:[%s1 + $0x70] sm:$0xff]
  %v117 = vld [vmem:[%s1 + $0x78] sm:$0xff]
  %v118 = vld [vmem:[%s2] sm:$0x1]
  %v120 = vperm.slane %v118, 0
  %122 = vmatpush.msra.mxu0 %v117
  %123 = vmatpush.msra.mxu0 %v116
  %124 = vmatpush.msra.mxu0 %v115
  %125 = vmatpush.msra.mxu0 %v114
  %126 = vmatpush.msra.mxu0 %v113
  %127 = vmatpush.msra.mxu0 %v112
  %128 = vmatpush.msra.mxu0 %v111
  %129 = vmatpush.msra.mxu0 %v110
  %130 = vmatpush.msra.mxu0 %v109
  %131 = vmatpush.msra.mxu0 %v108
  %132 = vmatpush.msra.mxu0 %v107
  %133 = vmatpush.msra.mxu0 %v106
  %134 = vmatpush.msra.mxu0 %v105
  %135 = vmatpush.msra.mxu0 %v104
  %136 = vmatpush.msra.mxu0 %v103
  %137 = vmatpush.msra.mxu0 %v102
  %138 = vmatmul.f32.gmra.mxu0 %v38
  %v139 = vpop.f32.mrf.mxu0
  %v140 = vadd.f32 %v120, %v139
  %141 = vmatmul.f32.gmra.mxu0 %v39
  %v142 = vpop.f32.mrf.mxu0
  %v143 = vadd.f32 %v120, %v142
  %144 = vmatmul.f32.gmra.mxu0 %v40
  %v145 = vpop.f32.mrf.mxu0
  %v146 = vadd.f32 %v120, %v145
  %147 = vmatmul.f32.gmra.mxu0 %v41
  %v148 = vpop.f32.mrf.mxu0
  %v149 = vadd.f32 %v120, %v148
  %150 = vmatmul.f32.gmra.mxu0 %v42
  %v151 = vpop.f32.mrf.mxu0
  %v152 = vadd.f32 %v120, %v151
  %153 = vmatmul.f32.gmra.mxu0 %v43
  %v154 = vpop.f32.mrf.mxu0
  %v155 = vadd.f32 %v120, %v154
  %156 = vmatmul.f32.gmra.mxu0 %v44
  %v157 = vpop.f32.mrf.mxu0
  %v158 = vadd.f32 %v120, %v157
  %159 = vmatmul.f32.gmra.mxu0 %v45
  %v160 = vpop.f32.mrf.mxu0
  %v161 = vadd.f32 %v120, %v160
  %162 = vmatmul.f32.gmra.mxu0 %v46
  %v163 = vpop.f32.mrf.mxu0
  %v164 = vadd.f32 %v120, %v163
  %165 = vmatmul.f32.gmra.mxu0 %v47
  %v166 = vpop.f32.mrf.mxu0
  %v167 = vadd.f32 %v120, %v166
  %168 = vmatmul.f32.gmra.mxu0 %v48
  %v169 = vpop.f32.mrf.mxu0
  %v170 = vadd.f32 %v120, %v169
  %171 = vmatmul.f32.gmra.mxu0 %v49
  %v172 = vpop.f32.mrf.mxu0
  %v173 = vadd.f32 %v120, %v172
  %174 = vmatmul.f32.gmra.mxu0 %v50
  %v175 = vpop.f32.mrf.mxu0
  %v176 = vadd.f32 %v120, %v175
  %177 = vmatmul.f32.gmra.mxu0 %v51
  %v178 = vpop.f32.mrf.mxu0
  %v179 = vadd.f32 %v120, %v178
  %180 = vmatmul.f32.gmra.mxu0 %v52
  %v181 = vpop.f32.mrf.mxu0
  %v182 = vadd.f32 %v120, %v181
  %183 = vmatmul.f32.gmra.mxu0 %v53
  %v184 = vpop.f32.mrf.mxu0
  %v185 = vadd.f32 %v120, %v184
  %186 = vmatmul.f32.gmra.mxu0 %v54
  %v187 = vpop.f32.mrf.mxu0
  %v188 = vadd.f32 %v120, %v187
  %189 = vmatmul.f32.gmra.mxu0 %v55
  %v190 = vpop.f32.mrf.mxu0
  %v191 = vadd.f32 %v120, %v190
  %192 = vmatmul.f32.gmra.mxu0 %v56
  %v193 = vpop.f32.mrf.mxu0
  %v194 = vadd.f32 %v120, %v193
  %195 = vmatmul.f32.gmra.mxu0 %v57
  %v196 = vpop.f32.mrf.mxu0
  %v197 = vadd.f32 %v120, %v196
  %198 = vmatmul.f32.gmra.mxu0 %v58
  %v199 = vpop.f32.mrf.mxu0
  %v200 = vadd.f32 %v120, %v199
  %201 = vmatmul.f32.gmra.mxu0 %v59
  %v202 = vpop.f32.mrf.mxu0
  %v203 = vadd.f32 %v120, %v202
  %204 = vmatmul.f32.gmra.mxu0 %v60
  %v205 = vpop.f32.mrf.mxu0
  %v206 = vadd.f32 %v120, %v205
  %207 = vmatmul.f32.gmra.mxu0 %v61
  %v208 = vpop.f32.mrf.mxu0
  %v209 = vadd.f32 %v120, %v208
  %210 = vmatmul.f32.gmra.mxu0 %v62
  %v211 = vpop.f32.mrf.mxu0
  %v212 = vadd.f32 %v120, %v211
  %213 = vmatmul.f32.gmra.mxu0 %v63
  %v214 = vpop.f32.mrf.mxu0
  %v215 = vadd.f32 %v120, %v214
  %216 = vmatmul.f32.gmra.mxu0 %v64
  %v217 = vpop.f32.mrf.mxu0
  %v218 = vadd.f32 %v120, %v217
  %219 = vmatmul.f32.gmra.mxu0 %v65
  %v220 = vpop.f32.mrf.mxu0
  %v221 = vadd.f32 %v120, %v220
  %222 = vmatmul.f32.gmra.mxu0 %v66
  %v223 = vpop.f32.mrf.mxu0
  %v224 = vadd.f32 %v120, %v223
  %225 = vmatmul.f32.gmra.mxu0 %v67
  %v226 = vpop.f32.mrf.mxu0
  %v227 = vadd.f32 %v120, %v226
  %228 = vmatmul.f32.gmra.mxu0 %v68
  %v229 = vpop.f32.mrf.mxu0
  %v230 = vadd.f32 %v120, %v229
  %231 = vmatmul.f32.gmra.mxu0 %v69
  %v232 = vpop.f32.mrf.mxu0
  %v233 = vadd.f32 %v120, %v232
  %234 = vmatmul.f32.gmra.mxu0 %v70
  %v235 = vpop.f32.mrf.mxu0
  %v236 = vadd.f32 %v120, %v235
  %237 = vmatmul.f32.gmra.mxu0 %v71
  %v238 = vpop.f32.mrf.mxu0
  %v239 = vadd.f32 %v120, %v238
  %240 = vmatmul.f32.gmra.mxu0 %v72
  %v241 = vpop.f32.mrf.mxu0
  %v242 = vadd.f32 %v120, %v241
  %243 = vmatmul.f32.gmra.mxu0 %v73
  %v244 = vpop.f32.mrf.mxu0
  %v245 = vadd.f32 %v120, %v244
  %246 = vmatmul.f32.gmra.mxu0 %v74
  %v247 = vpop.f32.mrf.mxu0
  %v248 = vadd.f32 %v120, %v247
  %249 = vmatmul.f32.gmra.mxu0 %v75
  %v250 = vpop.f32.mrf.mxu0
  %v251 = vadd.f32 %v120, %v250
  %252 = vmatmul.f32.gmra.mxu0 %v76
  %v253 = vpop.f32.mrf.mxu0
  %v254 = vadd.f32 %v120, %v253
  %255 = vmatmul.f32.gmra.mxu0 %v77
  %v256 = vpop.f32.mrf.mxu0
  %v257 = vadd.f32 %v120, %v256
  %258 = vmatmul.f32.gmra.mxu0 %v78
  %v259 = vpop.f32.mrf.mxu0
  %v260 = vadd.f32 %v120, %v259
  %261 = vmatmul.f32.gmra.mxu0 %v79
  %v262 = vpop.f32.mrf.mxu0
  %v263 = vadd.f32 %v120, %v262
  %264 = vmatmul.f32.gmra.mxu0 %v80
  %v265 = vpop.f32.mrf.mxu0
  %v266 = vadd.f32 %v120, %v265
  %267 = vmatmul.f32.gmra.mxu0 %v81
  %v268 = vpop.f32.mrf.mxu0
  %v269 = vadd.f32 %v120, %v268
  %270 = vmatmul.f32.gmra.mxu0 %v82
  %v271 = vpop.f32.mrf.mxu0
  %v272 = vadd.f32 %v120, %v271
  %273 = vmatmul.f32.gmra.mxu0 %v83
  %v274 = vpop.f32.mrf.mxu0
  %v275 = vadd.f32 %v120, %v274
  %276 = vmatmul.f32.gmra.mxu0 %v84
  %v277 = vpop.f32.mrf.mxu0
  %v278 = vadd.f32 %v120, %v277
  %279 = vmatmul.f32.gmra.mxu0 %v85
  %v280 = vpop.f32.mrf.mxu0
  %v281 = vadd.f32 %v120, %v280
  %282 = vmatmul.f32.gmra.mxu0 %v86
  %v283 = vpop.f32.mrf.mxu0
  %v284 = vadd.f32 %v120, %v283
  %285 = vmatmul.f32.gmra.mxu0 %v87
  %v286 = vpop.f32.mrf.mxu0
  %v287 = vadd.f32 %v120, %v286
  %288 = vmatmul.f32.gmra.mxu0 %v88
  %v289 = vpop.f32.mrf.mxu0
  %v290 = vadd.f32 %v120, %v289
  %291 = vmatmul.f32.gmra.mxu0 %v89
  %v292 = vpop.f32.mrf.mxu0
  %v293 = vadd.f32 %v120, %v292
  %294 = vmatmul.f32.gmra.mxu0 %v90
  %v295 = vpop.f32.mrf.mxu0
  %v296 = vadd.f32 %v120, %v295
  %297 = vmatmul.f32.gmra.mxu0 %v91
  %v298 = vpop.f32.mrf.mxu0
  %v299 = vadd.f32 %v120, %v298
  %300 = vmatmul.f32.gmra.mxu0 %v92
  %v301 = vpop.f32.mrf.mxu0
  %v302 = vadd.f32 %v120, %v301
  %303 = vmatmul.f32.gmra.mxu0 %v93
  %v304 = vpop.f32.mrf.mxu0
  %v305 = vadd.f32 %v120, %v304
  %306 = vmatmul.f32.gmra.mxu0 %v94
  %v307 = vpop.f32.mrf.mxu0
  %v308 = vadd.f32 %v120, %v307
  %309 = vmatmul.f32.gmra.mxu0 %v95
  %v310 = vpop.f32.mrf.mxu0
  %v311 = vadd.f32 %v120, %v310
  %312 = vmatmul.f32.gmra.mxu0 %v96
  %v313 = vpop.f32.mrf.mxu0
  %v314 = vadd.f32 %v120, %v313
  %315 = vmatmul.f32.gmra.mxu0 %v97
  %v316 = vpop.f32.mrf.mxu0
  %v317 = vadd.f32 %v120, %v316
  %318 = vmatmul.f32.gmra.mxu0 %v98
  %v319 = vpop.f32.mrf.mxu0
  %v320 = vadd.f32 %v120, %v319
  %321 = vmatmul.f32.gmra.mxu0 %v99
  %v322 = vpop.f32.mrf.mxu0
  %v323 = vadd.f32 %v120, %v322
  %324 = vmatmul.f32.gmra.mxu0 %v100
  %v325 = vpop.f32.mrf.mxu0
  %v326 = vadd.f32 %v120, %v325
  %327 = vmatmul.f32.gmra.mxu0 %v101
  %v328 = vpop.f32.mrf.mxu0
  %v329 = vadd.f32 %v120, %v328
  %330 = vdwg.mxu0
  %v331 = vmax.f32 %v140, 0.0
  %v332 = vmax.f32 %v143, 0.0
  %v333 = vmax.f32 %v146, 0.0
  %v334 = vmax.f32 %v149, 0.0
  %v335 = vmax.f32 %v152, 0.0
  %v336 = vmax.f32 %v155, 0.0
  %v337 = vmax.f32 %v158, 0.0
  %v338 = vmax.f32 %v161, 0.0
  %v339 = vmax.f32 %v164, 0.0
  %v340 = vmax.f32 %v167, 0.0
  %v341 = vmax.f32 %v170, 0.0
  %v342 = vmax.f32 %v173, 0.0
  %v343 = vmax.f32 %v176, 0.0
  %v344 = vmax.f32 %v179, 0.0
  %v345 = vmax.f32 %v182, 0.0
  %v346 = vmax.f32 %v185, 0.0
  %v347 = vmax.f32 %v188, 0.0
  %v348 = vmax.f32 %v191, 0.0
  %v349 = vmax.f32 %v194, 0.0
  %v350 = vmax.f32 %v197, 0.0
  %v351 = vmax.f32 %v200, 0.0
  %v352 = vmax.f32 %v203, 0.0
  %v353 = vmax.f32 %v206, 0.0
  %v354 = vmax.f32 %v209, 0.0
  %v355 = vmax.f32 %v212, 0.0
  %v356 = vmax.f32 %v215, 0.0
  %v357 = vmax.f32 %v218, 0.0
  %v358 = vmax.f32 %v221, 0.0
  %v359 = vmax.f32 %v224, 0.0
  %v360 = vmax.f32 %v227, 0.0
  %v361 = vmax.f32 %v230, 0.0
  %v362 = vmax.f32 %v233, 0.0
  %v363 = vmax.f32 %v236, 0.0
  %v364 = vmax.f32 %v239, 0.0
  %v365 = vmax.f32 %v242, 0.0
  %v366 = vmax.f32 %v245, 0.0
  %v367 = vmax.f32 %v248, 0.0
  %v368 = vmax.f32 %v251, 0.0
  %v369 = vmax.f32 %v254, 0.0
  %v370 = vmax.f32 %v257, 0.0
  %v371 = vmax.f32 %v260, 0.0
  %v372 = vmax.f32 %v263, 0.0
  %v373 = vmax.f32 %v266, 0.0
  %v374 = vmax.f32 %v269, 0.0
  %v375 = vmax.f32 %v272, 0.0
  %v376 = vmax.f32 %v275, 0.0
  %v377 = vmax.f32 %v278, 0.0
  %v378 = vmax.f32 %v281, 0.0
  %v379 = vmax.f32 %v284, 0.0
  %v380 = vmax.f32 %v287, 0.0
  %v381 = vmax.f32 %v290, 0.0
  %v382 = vmax.f32 %v293, 0.0
  %v383 = vmax.f32 %v296, 0.0
  %v384 = vmax.f32 %v299, 0.0
  %v385 = vmax.f32 %v302, 0.0
  %v386 = vmax.f32 %v305, 0.0
  %v387 = vmax.f32 %v308, 0.0
  %v388 = vmax.f32 %v311, 0.0
  %v389 = vmax.f32 %v314, 0.0
  %v390 = vmax.f32 %v317, 0.0
  %v391 = vmax.f32 %v320, 0.0
  %v392 = vmax.f32 %v323, 0.0
  %v393 = vmax.f32 %v326, 0.0
  %v394 = vmax.f32 %v329, 0.0
  %395 = vst [vmem:[#allocation2] sm:$0xff] 0.0
  %396 = vst [vmem:[#allocation2 + $0x8] sm:$0xff] 0.0
  %397 = vst [vmem:[#allocation2 + $0x10] sm:$0xff] 0.0
  %398 = vst [vmem:[#allocation2 + $0x18] sm:$0xff] 0.0
  %399 = vst [vmem:[#allocation2 + $0x20] sm:$0xff] 0.0
  %400 = vst [vmem:[#allocation2 + $0x28] sm:$0xff] 0.0
  %401 = vst [vmem:[#allocation2 + $0x30] sm:$0xff] 0.0
  %402 = vst [vmem:[#allocation2 + $0x38] sm:$0xff] 0.0
  %403 = vst [vmem:[#allocation2 + $0x40] sm:$0xff] 0.0
  %404 = vst [vmem:[#allocation2 + $0x48] sm:$0xff] 0.0
  %s405 = scalar_lea.vmem [#allocation2], 720
  %406 = vst [vmem:[%s405] sm:$0xff] 0.0
  %407 = vst [vmem:[%s405 + $0x8] sm:$0xff] 0.0
  %408 = vst [vmem:[%s405 + $0x10] sm:$0xff] 0.0
  %409 = vst [vmem:[%s405 + $0x18] sm:$0xff] 0.0
  %410 = vst [vmem:[%s405 + $0x20] sm:$0xff] 0.0
  %411 = vst [vmem:[%s405 + $0x28] sm:$0xff] 0.0
  %412 = vst [vmem:[%s405 + $0x30] sm:$0xff] 0.0
  %413 = vst [vmem:[%s405 + $0x38] sm:$0xff] 0.0
  %414 = vst [vmem:[%s405 + $0x40] sm:$0xff] 0.0
  %415 = vst [vmem:[%s405 + $0x48] sm:$0xff] 0.0
  %s416 = scalar_lea.vmem [#allocation2], 80
  %417 = vst [vmem:[%s416] sm:$0xff] 0.0
  %418 = vst [vmem:[%s416 + $0x50] sm:$0xff] 0.0
  %419 = vst [vmem:[%s416 + $0xa0] sm:$0xff] 0.0
  %420 = vst [vmem:[%s416 + $0xf0] sm:$0xff] 0.0
  %421 = vst [vmem:[%s416 + $0x140] sm:$0xff] 0.0
  %422 = vst [vmem:[%s416 + $0x190] sm:$0xff] 0.0
  %423 = vst [vmem:[%s416 + $0x1e0] sm:$0xff] 0.0
  %424 = vst [vmem:[%s416 + $0x230] sm:$0xff] 0.0
  %s425 = scalar_lea.vmem [#allocation2], 152
  %426 = vst [vmem:[%s425] sm:$0xff] 0.0
  %427 = vst [vmem:[%s425 + $0x50] sm:$0xff] 0.0
  %428 = vst [vmem:[%s425 + $0xa0] sm:$0xff] 0.0
  %429 = vst [vmem:[%s425 + $0xf0] sm:$0xff] 0.0
  %430 = vst [vmem:[%s425 + $0x140] sm:$0xff] 0.0
  %431 = vst [vmem:[%s425 + $0x190] sm:$0xff] 0.0
  %432 = vst [vmem:[%s425 + $0x1e0] sm:$0xff] 0.0
  %433 = vst [vmem:[%s425 + $0x230] sm:$0xff] 0.0
  %s434 = scalar_lea.vmem [#allocation2], 88
  %435 = vst [vmem:[%s434] sm:$0xff] %v331
  %436 = vst [vmem:[%s434 + $0x8] sm:$0xff] %v332
  %437 = vst [vmem:[%s434 + $0x10] sm:$0xff] %v333
  %438 = vst [vmem:[%s434 + $0x18] sm:$0xff] %v334
  %439 = vst [vmem:[%s434 + $0x20] sm:$0xff] %v335
  %440 = vst [vmem:[%s434 + $0x28] sm:$0xff] %v336
  %441 = vst [vmem:[%s434 + $0x30] sm:$0xff] %v337
  %442 = vst [vmem:[%s434 + $0x38] sm:$0xff] %v338
  %443 = vst [vmem:[%s434 + $0x50] sm:$0xff] %v339
  %444 = vst [vmem:[%s434 + $0x58] sm:$0xff] %v340
  %445 = vst [vmem:[%s434 + $0x60] sm:$0xff] %v341
  %446 = vst [vmem:[%s434 + $0x68] sm:$0xff] %v342
  %447 = vst [vmem:[%s434 + $0x70] sm:$0xff] %v343
  %448 = vst [vmem:[%s434 + $0x78] sm:$0xff] %v344
  %449 = vst [vmem:[%s434 + $0x80] sm:$0xff] %v345
  %450 = vst [vmem:[%s434 + $0x88] sm:$0xff] %v346
  %451 = vst [vmem:[%s434 + $0xa0] sm:$0xff] %v347
  %452 = vst [vmem:[%s434 + $0xa8] sm:$0xff] %v348
  %453 = vst [vmem:[%s434 + $0xb0] sm:$0xff] %v349
  %454 = vst [vmem:[%s434 + $0xb8] sm:$0xff] %v350
  %455 = vst [vmem:[%s434 + $0xc0] sm:$0xff] %v351
  %456 = vst [vmem:[%s434 + $0xc8] sm:$0xff] %v352
  %457 = vst [vmem:[%s434 + $0xd0] sm:$0xff] %v353
  %458 = vst [vmem:[%s434 + $0xd8] sm:$0xff] %v354
  %459 = vst [vmem:[%s434 + $0xf0] sm:$0xff] %v355
  %460 = vst [vmem:[%s434 + $0xf8] sm:$0xff] %v356
  %461 = vst [vmem:[%s434 + $0x100] sm:$0xff] %v357
  %462 = vst [vmem:[%s434 + $0x108] sm:$0xff] %v358
  %463 = vst [vmem:[%s434 + $0x110] sm:$0xff] %v359
  %464 = vst [vmem:[%s434 + $0x118] sm:$0xff] %v360
  %465 = vst [vmem:[%s434 + $0x120] sm:$0xff] %v361
  %466 = vst [vmem:[%s434 + $0x128] sm:$0xff] %v362
  %467 = vst [vmem:[%s434 + $0x140] sm:$0xff] %v363
  %468 = vst [vmem:[%s434 + $0x148] sm:$0xff] %v364
  %469 = vst [vmem:[%s434 + $0x150] sm:$0xff] %v365
  %470 = vst [vmem:[%s434 + $0x158] sm:$0xff] %v366
  %471 = vst [vmem:[%s434 + $0x160] sm:$0xff] %v367
  %472 = vst [vmem:[%s434 + $0x168] sm:$0xff] %v368
  %473 = vst [vmem:[%s434 + $0x170] sm:$0xff] %v369
  %474 = vst [vmem:[%s434 + $0x178] sm:$0xff] %v370
  %475 = vst [vmem:[%s434 + $0x190] sm:$0xff] %v371
  %476 = vst [vmem:[%s434 + $0x198] sm:$0xff] %v372
  %477 = vst [vmem:[%s434 + $0x1a0] sm:$0xff] %v373
  %478 = vst [vmem:[%s434 + $0x1a8] sm:$0xff] %v374
  %479 = vst [vmem:[%s434 + $0x1b0] sm:$0xff] %v375
  %480 = vst [vmem:[%s434 + $0x1b8] sm:$0xff] %v376
  %481 = vst [vmem:[%s434 + $0x1c0] sm:$0xff] %v377
  %482 = vst [vmem:[%s434 + $0x1c8] sm:$0xff] %v378
  %483 = vst [vmem:[%s434 + $0x1e0] sm:$0xff] %v379
  %484 = vst [vmem:[%s434 + $0x1e8] sm:$0xff] %v380
  %485 = vst [vmem:[%s434 + $0x1f0] sm:$0xff] %v381
  %486 = vst [vmem:[%s434 + $0x1f8] sm:$0xff] %v382
  %487 = vst [vmem:[%s434 + $0x200] sm:$0xff] %v383
  %488 = vst [vmem:[%s434 + $0x208] sm:$0xff] %v384
  %489 = vst [vmem:[%s434 + $0x210] sm:$0xff] %v385
  %490 = vst [vmem:[%s434 + $0x218] sm:$0xff] %v386
  %491 = vst [vmem:[%s434 + $0x230] sm:$0xff] %v387
  %492 = vst [vmem:[%s434 + $0x238] sm:$0xff] %v388
  %493 = vst [vmem:[%s434 + $0x240] sm:$0xff] %v389
  %494 = vst [vmem:[%s434 + $0x248] sm:$0xff] %v390
  %495 = vst [vmem:[%s434 + $0x250] sm:$0xff] %v391
  %496 = vst [vmem:[%s434 + $0x258] sm:$0xff] %v392
  %497 = vst [vmem:[%s434 + $0x260] sm:$0xff] %v393
  %498 = vst [vmem:[%s434 + $0x268] sm:$0xff] %v394
  %v499 = vld [vmem:[#allocation2] sm:$0xff]
  %v500 = vld [vmem:[#allocation2 + $0x8] sm:$0xff]
  %v501 = vld [vmem:[#allocation2 + $0x10] sm:$0xff]
  %v502 = vld [vmem:[#allocation2 + $0x18] sm:$0xff]
  %v503 = vld [vmem:[#allocation2 + $0x20] sm:$0xff]
  %v504 = vld [vmem:[#allocation2 + $0x28] sm:$0xff]
  %v505 = vld [vmem:[#allocation2 + $0x30] sm:$0xff]
  %v506 = vld [vmem:[#allocation2 + $0x38] sm:$0xff]
  %v507 = vld [vmem:[#allocation2 + $0x40] sm:$0xff]
  %v508 = vld [vmem:[#allocation2 + $0x48] sm:$0xff]
  %v509 = vld [vmem:[#allocation2 + $0x50] sm:$0xff]
  %v510 = vld [vmem:[#allocation2 + $0x58] sm:$0xff]
  %v511 = vld [vmem:[#allocation2 + $0x60] sm:$0xff]
  %v512 = vld [vmem:[#allocation2 + $0x68] sm:$0xff]
  %v513 = vld [vmem:[#allocation2 + $0x70] sm:$0xff]
  %v514 = vld [vmem:[#allocation2 + $0x78] sm:$0xff]
  %v515 = vld [vmem:[#allocation2 + $0x80] sm:$0xff]
  %v516 = vld [vmem:[#allocation2 + $0x88] sm:$0xff]
  %v517 = vld [vmem:[#allocation2 + $0x90] sm:$0xff]
  %v518 = vld [vmem:[#allocation2 + $0x98] sm:$0xff]
  %v519 = vld [vmem:[#allocation2 + $0xa0] sm:$0xff]
  %v520 = vld [vmem:[#allocation2 + $0xa8] sm:$0xff]
  %v521 = vld [vmem:[#allocation2 + $0xb0] sm:$0xff]
  %v522 = vld [vmem:[#allocation2 + $0xb8] sm:$0xff]
  %v523 = vld [vmem:[#allocation2 + $0xc0] sm:$0xff]
  %v524 = vld [vmem:[#allocation2 + $0xc8] sm:$0xff]
  %v525 = vld [vmem:[#allocation2 + $0xd0] sm:$0xff]
  %v526 = vld [vmem:[#allocation2 + $0xd8] sm:$0xff]
  %v527 = vld [vmem:[#allocation2 + $0xe0] sm:$0xff]
  %v528 = vld [vmem:[#allocation2 + $0xe8] sm:$0xff]
  %v529 = vld [vmem:[#allocation2 + $0xf0] sm:$0xff]
  %v530 = vld [vmem:[#allocation2 + $0xf8] sm:$0xff]
  %v531 = vld [vmem:[#allocation2 + $0x100] sm:$0xff]
  %v532 = vld [vmem:[#allocation2 + $0x108] sm:$0xff]
  %v533 = vld [vmem:[#allocation2 + $0x110] sm:$0xff]
  %v534 = vld [vmem:[#allocation2 + $0x118] sm:$0xff]
  %v535 = vld [vmem:[#allocation2 + $0x120] sm:$0xff]
  %v536 = vld [vmem:[#allocation2 + $0x128] sm:$0xff]
  %v537 = vld [vmem:[#allocation2 + $0x130] sm:$0xff]
  %v538 = vld [vmem:[#allocation2 + $0x138] sm:$0xff]
  %v539 = vld [vmem:[#allocation2 + $0x140] sm:$0xff]
  %v540 = vld [vmem:[#allocation2 + $0x148] sm:$0xff]
  %v541 = vld [vmem:[#allocation2 + $0x150] sm:$0xff]
  %v542 = vld [vmem:[#allocation2 + $0x158] sm:$0xff]
  %v543 = vld [vmem:[#allocation2 + $0x160] sm:$0xff]
  %v544 = vld [vmem:[#allocation2 + $0x168] sm:$0xff]
  %v545 = vld [vmem:[#allocation2 + $0x170] sm:$0xff]
  %v546 = vld [vmem:[#allocation2 + $0x178] sm:$0xff]
  %v547 = vld [vmem:[#allocation2 + $0x180] sm:$0xff]
  %v548 = vld [vmem:[#allocation2 + $0x188] sm:$0xff]
  %v549 = vld [vmem:[#allocation2 + $0x190] sm:$0xff]
  %v550 = vld [vmem:[#allocation2 + $0x198] sm:$0xff]
  %v551 = vld [vmem:[#allocation2 + $0x1a0] sm:$0xff]
  %v552 = vld [vmem:[#allocation2 + $0x1a8] sm:$0xff]
  %v553 = vld [vmem:[#allocation2 + $0x1b0] sm:$0xff]
  %v554 = vld [vmem:[#allocation2 + $0x1b8] sm:$0xff]
  %v555 = vld [vmem:[#allocation2 + $0x1c0] sm:$0xff]
  %v556 = vld [vmem:[#allocation2 + $0x1c8] sm:$0xff]
  %v557 = vld [vmem:[#allocation2 + $0x1d0] sm:$0xff]
  %v558 = vld [vmem:[#allocation2 + $0x1d8] sm:$0xff]
  %v559 = vld [vmem:[#allocation2 + $0x1e0] sm:$0xff]
  %v560 = vld [vmem:[#allocation2 + $0x1e8] sm:$0xff]
  %v561 = vld [vmem:[#allocation2 + $0x1f0] sm:$0xff]
  %v562 = vld [vmem:[#allocation2 + $0x1f8] sm:$0xff]
  %v563 = vld [vmem:[#allocation2 + $0x200] sm:$0xff]
  %v564 = vld [vmem:[#allocation2 + $0x208] sm:$0xff]
  %v565 = vld [vmem:[#allocation2 + $0x210] sm:$0xff]
  %v566 = vld [vmem:[#allocation2 + $0x218] sm:$0xff]
  %v567 = vld [vmem:[#allocation2 + $0x220] sm:$0xff]
  %v568 = vld [vmem:[#allocation2 + $0x228] sm:$0xff]
  %v569 = vld [vmem:[#allocation2 + $0x230] sm:$0xff]
  %v570 = vld [vmem:[#allocation2 + $0x238] sm:$0xff]
  %v571 = vld [vmem:[#allocation2 + $0x240] sm:$0xff]
  %v572 = vld [vmem:[#allocation2 + $0x248] sm:$0xff]
  %v573 = vld [vmem:[#allocation2 + $0x250] sm:$0xff]
  %v574 = vld [vmem:[#allocation2 + $0x258] sm:$0xff]
  %v575 = vld [vmem:[#allocation2 + $0x260] sm:$0xff]
  %v576 = vld [vmem:[#allocation2 + $0x268] sm:$0xff]
  %v577 = vld [vmem:[#allocation2 + $0x270] sm:$0xff]
  %v578 = vld [vmem:[#allocation2 + $0x278] sm:$0xff]
  %v579 = vld [vmem:[#allocation2 + $0x280] sm:$0xff]
  %v580 = vld [vmem:[#allocation2 + $0x288] sm:$0xff]
  %v581 = vld [vmem:[#allocation2 + $0x290] sm:$0xff]
  %v582 = vld [vmem:[#allocation2 + $0x298] sm:$0xff]
  %v583 = vld [vmem:[#allocation2 + $0x2a0] sm:$0xff]
  %v584 = vld [vmem:[#allocation2 + $0x2a8] sm:$0xff]
  %v585 = vld [vmem:[#allocation2 + $0x2b0] sm:$0xff]
  %v586 = vld [vmem:[#allocation2 + $0x2b8] sm:$0xff]
  %v587 = vld [vmem:[#allocation2 + $0x2c0] sm:$0xff]
  %v588 = vld [vmem:[#allocation2 + $0x2c8] sm:$0xff]
  %v589 = vld [vmem:[#allocation2 + $0x2d0] sm:$0xff]
  %v590 = vld [vmem:[#allocation2 + $0x2d8] sm:$0xff]
  %v591 = vld [vmem:[#allocation2 + $0x2e0] sm:$0xff]
  %v592 = vld [vmem:[#allocation2 + $0x2e8] sm:$0xff]
  %v593 = vld [vmem:[#allocation2 + $0x2f0] sm:$0xff]
  %v594 = vld [vmem:[#allocation2 + $0x2f8] sm:$0xff]
  %v595 = vld [vmem:[#allocation2 + $0x300] sm:$0xff]
  %v596 = vld [vmem:[#allocation2 + $0x308] sm:$0xff]
  %v597 = vld [vmem:[#allocation2 + $0x310] sm:$0xff]
  %v598 = vld [vmem:[#allocation2 + $0x318] sm:$0xff]
  %v599 = vld [vmem:[%s3] sm:$0xff]
  %v600 = vld [vmem:[%s3 + $0x8] sm:$0xff]
  %v601 = vld [vmem:[%s3 + $0x10] sm:$0xff]
  %v602 = vld [vmem:[%s3 + $0x18] sm:$0xff]
  %v603 = vld [vmem:[%s3 + $0x20] sm:$0xff]
  %v604 = vld [vmem:[%s3 + $0x28] sm:$0xff]
  %v605 = vld [vmem:[%s3 + $0x30] sm:$0xff]
  %v606 = vld [vmem:[%s3 + $0x38] sm:$0xff]
  %v607 = vld [vmem:[%s3 + $0x40] sm:$0xff]
  %v608 = vld [vmem:[%s3 + $0x48] sm:$0xff]
  %v609 = vld [vmem:[%s3 + $0x50] sm:$0xff]
  %v610 = vld [vmem:[%s3 + $0x58] sm:$0xff]
  %v611 = vld [vmem:[%s3 + $0x60] sm:$0xff]
  %v612 = vld [vmem:[%s3 + $0x68] sm:$0xff]
  %v613 = vld [vmem:[%s3 + $0x70] sm:$0xff]
  %v614 = vld [vmem:[%s3 + $0x78] sm:$0xff]
  %v615 = vld [vmem:[%s3 + $0x80] sm:$0xff]
  %v616 = vld [vmem:[%s3 + $0x88] sm:$0xff]
  %v617 = vld [vmem:[%s3 + $0x90] sm:$0xff]
  %v618 = vld [vmem:[%s3 + $0x98] sm:$0xff]
  %v619 = vld [vmem:[%s3 + $0xa0] sm:$0xff]
  %v620 = vld [vmem:[%s3 + $0xa8] sm:$0xff]
  %v621 = vld [vmem:[%s3 + $0xb0] sm:$0xff]
  %v622 = vld [vmem:[%s3 + $0xb8] sm:$0xff]
  %v623 = vld [vmem:[%s3 + $0xc0] sm:$0xff]
  %v624 = vld [vmem:[%s3 + $0xc8] sm:$0xff]
  %v625 = vld [vmem:[%s3 + $0xd0] sm:$0xff]
  %v626 = vld [vmem:[%s3 + $0xd8] sm:$0xff]
  %v627 = vld [vmem:[%s3 + $0xe0] sm:$0xff]
  %v628 = vld [vmem:[%s3 + $0xe8] sm:$0xff]
  %v629 = vld [vmem:[%s3 + $0xf0] sm:$0xff]
  %v630 = vld [vmem:[%s3 + $0xf8] sm:$0xff]
  %v631 = vld [vmem:[%s3 + $0x100] sm:$0xff]
  %v632 = vld [vmem:[%s3 + $0x108] sm:$0xff]
  %v633 = vld [vmem:[%s3 + $0x110] sm:$0xff]
  %v634 = vld [vmem:[%s3 + $0x118] sm:$0xff]
  %v635 = vld [vmem:[%s3 + $0x120] sm:$0xff]
  %v636 = vld [vmem:[%s3 + $0x128] sm:$0xff]
  %v637 = vld [vmem:[%s3 + $0x130] sm:$0xff]
  %v638 = vld [vmem:[%s3 + $0x138] sm:$0xff]
  %v639 = vld [vmem:[%s3 + $0x140] sm:$0xff]
  %v640 = vld [vmem:[%s3 + $0x148] sm:$0xff]
  %v641 = vld [vmem:[%s3 + $0x150] sm:$0xff]
  %v642 = vld [vmem:[%s3 + $0x158] sm:$0xff]
  %v643 = vld [vmem:[%s3 + $0x160] sm:$0xff]
  %v644 = vld [vmem:[%s3 + $0x168] sm:$0xff]
  %v645 = vld [vmem:[%s3 + $0x170] sm:$0xff]
  %v646 = vld [vmem:[%s3 + $0x178] sm:$0xff]
  %v647 = vld [vmem:[%s3 + $0x180] sm:$0xff]
  %v648 = vld [vmem:[%s3 + $0x188] sm:$0xff]
  %v649 = vld [vmem:[%s3 + $0x190] sm:$0xff]
  %v650 = vld [vmem:[%s3 + $0x198] sm:$0xff]
  %v651 = vld [vmem:[%s3 + $0x1a0] sm:$0xff]
  %v652 = vld [vmem:[%s3 + $0x1a8] sm:$0xff]
  %v653 = vld [vmem:[%s3 + $0x1b0] sm:$0xff]
  %v654 = vld [vmem:[%s3 + $0x1b8] sm:$0xff]
  %v655 = vld [vmem:[%s3 + $0x1c0] sm:$0xff]
  %v656 = vld [vmem:[%s3 + $0x1c8] sm:$0xff]
  %v657 = vld [vmem:[%s3 + $0x1d0] sm:$0xff]
  %v658 = vld [vmem:[%s3 + $0x1d8] sm:$0xff]
  %v659 = vld [vmem:[%s3 + $0x1e0] sm:$0xff]
  %v660 = vld [vmem:[%s3 + $0x1e8] sm:$0xff]
  %v661 = vld [vmem:[%s3 + $0x1f0] sm:$0xff]
  %v662 = vld [vmem:[%s3 + $0x1f8] sm:$0xff]
  %v663 = vld [vmem:[%s3 + $0x200] sm:$0xff]
  %v664 = vld [vmem:[%s3 + $0x208] sm:$0xff]
  %v665 = vld [vmem:[%s3 + $0x210] sm:$0xff]
  %v666 = vld [vmem:[%s3 + $0x218] sm:$0xff]
  %v667 = vld [vmem:[%s3 + $0x220] sm:$0xff]
  %v668 = vld [vmem:[%s3 + $0x228] sm:$0xff]
  %v669 = vld [vmem:[%s3 + $0x230] sm:$0xff]
  %v670 = vld [vmem:[%s3 + $0x238] sm:$0xff]
  %v671 = vld [vmem:[%s3 + $0x240] sm:$0xff]
  %v672 = vld [vmem:[%s3 + $0x248] sm:$0xff]
  %v673 = vld [vmem:[%s3 + $0x250] sm:$0xff]
  %v674 = vld [vmem:[%s3 + $0x258] sm:$0xff]
  %v675 = vld [vmem:[%s3 + $0x260] sm:$0xff]
  %v676 = vld [vmem:[%s3 + $0x268] sm:$0xff]
  %v677 = vld [vmem:[%s3 + $0x270] sm:$0xff]
  %v678 = vld [vmem:[%s3 + $0x278] sm:$0xff]
  %v679 = vld [vmem:[%s3 + $0x280] sm:$0xff]
  %v680 = vld [vmem:[%s3 + $0x288] sm:$0xff]
  %v681 = vld [vmem:[%s3 + $0x290] sm:$0xff]
  %v682 = vld [vmem:[%s3 + $0x298] sm:$0xff]
  %v683 = vld [vmem:[%s3 + $0x2a0] sm:$0xff]
  %v684 = vld [vmem:[%s3 + $0x2a8] sm:$0xff]
  %v685 = vld [vmem:[%s3 + $0x2b0] sm:$0xff]
  %v686 = vld [vmem:[%s3 + $0x2b8] sm:$0xff]
  %v687 = vld [vmem:[%s3 + $0x2c0] sm:$0xff]
  %v688 = vld [vmem:[%s3 + $0x2c8] sm:$0xff]
  %v689 = vld [vmem:[%s3 + $0x2d0] sm:$0xff]
  %v690 = vld [vmem:[%s3 + $0x2d8] sm:$0xff]
  %v691 = vld [vmem:[%s3 + $0x2e0] sm:$0xff]
  %v692 = vld [vmem:[%s3 + $0x2e8] sm:$0xff]
  %v693 = vld [vmem:[%s3 + $0x2f0] sm:$0xff]
  %v694 = vld [vmem:[%s3 + $0x2f8] sm:$0xff]
  %v695 = vld [vmem:[%s3 + $0x300] sm:$0xff]
  %v696 = vld [vmem:[%s3 + $0x308] sm:$0xff]
  %v697 = vld [vmem:[%s3 + $0x310] sm:$0xff]
  %v698 = vld [vmem:[%s3 + $0x318] sm:$0xff]
  %v699 = vld [vmem:[%s3 + $0x320] sm:$0xff]
  %v700 = vld [vmem:[%s3 + $0x328] sm:$0xff]
  %v701 = vld [vmem:[%s3 + $0x330] sm:$0xff]
  %v702 = vld [vmem:[%s3 + $0x338] sm:$0xff]
  %v703 = vld [vmem:[%s3 + $0x340] sm:$0xff]
  %v704 = vld [vmem:[%s3 + $0x348] sm:$0xff]
  %v705 = vld [vmem:[%s3 + $0x350] sm:$0xff]
  %v706 = vld [vmem:[%s3 + $0x358] sm:$0xff]
  %v707 = vld [vmem:[%s3 + $0x360] sm:$0xff]
  %v708 = vld [vmem:[%s3 + $0x368] sm:$0xff]
  %v709 = vld [vmem:[%s3 + $0x370] sm:$0xff]
  %v710 = vld [vmem:[%s3 + $0x378] sm:$0xff]
  %v711 = vld [vmem:[%s3 + $0x380] sm:$0xff]
  %v712 = vld [vmem:[%s3 + $0x388] sm:$0xff]
  %v713 = vld [vmem:[%s3 + $0x390] sm:$0xff]
  %v714 = vld [vmem:[%s3 + $0x398] sm:$0xff]
  %v715 = vld [vmem:[%s3 + $0x3a0] sm:$0xff]
  %v716 = vld [vmem:[%s3 + $0x3a8] sm:$0xff]
  %v717 = vld [vmem:[%s3 + $0x3b0] sm:$0xff]
  %v718 = vld [vmem:[%s3 + $0x3b8] sm:$0xff]
  %v719 = vld [vmem:[%s3 + $0x3c0] sm:$0xff]
  %v720 = vld [vmem:[%s3 + $0x3c8] sm:$0xff]
  %v721 = vld [vmem:[%s3 + $0x3d0] sm:$0xff]
  %v722 = vld [vmem:[%s3 + $0x3d8] sm:$0xff]
  %v723 = vld [vmem:[%s3 + $0x3e0] sm:$0xff]
  %v724 = vld [vmem:[%s3 + $0x3e8] sm:$0xff]
  %v725 = vld [vmem:[%s3 + $0x3f0] sm:$0xff]
  %v726 = vld [vmem:[%s3 + $0x3f8] sm:$0xff]
  %v727 = vld [vmem:[%s3 + $0x400] sm:$0xff]
  %v728 = vld [vmem:[%s3 + $0x408] sm:$0xff]
  %v729 = vld [vmem:[%s3 + $0x410] sm:$0xff]
  %v730 = vld [vmem:[%s3 + $0x418] sm:$0xff]
  %v731 = vld [vmem:[%s3 + $0x420] sm:$0xff]
  %v732 = vld [vmem:[%s3 + $0x428] sm:$0xff]
  %v733 = vld [vmem:[%s3 + $0x430] sm:$0xff]
  %v734 = vld [vmem:[%s3 + $0x438] sm:$0xff]
  %v735 = vld [vmem:[%s3 + $0x440] sm:$0xff]
  %v736 = vld [vmem:[%s3 + $0x448] sm:$0xff]
  %v737 = vld [vmem:[%s3 + $0x450] sm:$0xff]
  %v738 = vld [vmem:[%s3 + $0x458] sm:$0xff]
  %v739 = vld [vmem:[%s3 + $0x460] sm:$0xff]
  %v740 = vld [vmem:[%s3 + $0x468] sm:$0xff]
  %v741 = vld [vmem:[%s3 + $0x470] sm:$0xff]
  %v742 = vld [vmem:[%s3 + $0x478] sm:$0xff]
  %v743 = vld [vmem:[%s3 + $0x480] sm:$0xff]
  %v744 = vld [vmem:[%s3 + $0x488] sm:$0xff]
  %v745 = vld [vmem:[%s3 + $0x490] sm:$0xff]
  %v746 = vld [vmem:[%s3 + $0x498] sm:$0xff]
  %v747 = vld [vmem:[%s3 + $0x4a0] sm:$0xff]
  %v748 = vld [vmem:[%s3 + $0x4a8] sm:$0xff]
  %v749 = vld [vmem:[%s3 + $0x4b0] sm:$0xff]
  %v750 = vld [vmem:[%s3 + $0x4b8] sm:$0xff]
  %v751 = vld [vmem:[%s3 + $0x4c0] sm:$0xff]
  %v752 = vld [vmem:[%s3 + $0x4c8] sm:$0xff]
  %v753 = vld [vmem:[%s3 + $0x4d0] sm:$0xff]
  %v754 = vld [vmem:[%s3 + $0x4d8] sm:$0xff]
  %v755 = vld [vmem:[%s3 + $0x4e0] sm:$0xff]
  %v756 = vld [vmem:[%s3 + $0x4e8] sm:$0xff]
  %v757 = vld [vmem:[%s3 + $0x4f0] sm:$0xff]
  %v758 = vld [vmem:[%s3 + $0x4f8] sm:$0xff]
  %v759 = vld [vmem:[%s3 + $0x500] sm:$0xff]
  %v760 = vld [vmem:[%s3 + $0x508] sm:$0xff]
  %v761 = vld [vmem:[%s3 + $0x510] sm:$0xff]
  %v762 = vld [vmem:[%s3 + $0x518] sm:$0xff]
  %v763 = vld [vmem:[%s3 + $0x520] sm:$0xff]
  %v764 = vld [vmem:[%s3 + $0x528] sm:$0xff]
  %v765 = vld [vmem:[%s3 + $0x530] sm:$0xff]
  %v766 = vld [vmem:[%s3 + $0x538] sm:$0xff]
  %v767 = vld [vmem:[%s3 + $0x540] sm:$0xff]
  %v768 = vld [vmem:[%s3 + $0x548] sm:$0xff]
  %v769 = vld [vmem:[%s3 + $0x550] sm:$0xff]
  %v770 = vld [vmem:[%s3 + $0x558] sm:$0xff]
  %v771 = vld [vmem:[%s3 + $0x560] sm:$0xff]
  %v772 = vld [vmem:[%s3 + $0x568] sm:$0xff]
  %v773 = vld [vmem:[%s3 + $0x570] sm:$0xff]
  %v774 = vld [vmem:[%s3 + $0x578] sm:$0xff]
  %v775 = vld [vmem:[%s3 + $0x580] sm:$0xff]
  %v776 = vld [vmem:[%s3 + $0x588] sm:$0xff]
  %v777 = vld [vmem:[%s3 + $0x590] sm:$0xff]
  %v778 = vld [vmem:[%s3 + $0x598] sm:$0xff]
  %v779 = vld [vmem:[%s3 + $0x5a0] sm:$0xff]
  %v780 = vld [vmem:[%s3 + $0x5a8] sm:$0xff]
  %v781 = vld [vmem:[%s3 + $0x5b0] sm:$0xff]
  %v782 = vld [vmem:[%s3 + $0x5b8] sm:$0xff]
  %v783 = vld [vmem:[%s3 + $0x5c0] sm:$0xff]
  %v784 = vld [vmem:[%s3 + $0x5c8] sm:$0xff]
  %v785 = vld [vmem:[%s3 + $0x5d0] sm:$0xff]
  %v786 = vld [vmem:[%s3 + $0x5d8] sm:$0xff]
  %v787 = vld [vmem:[%s3 + $0x5e0] sm:$0xff]
  %v788 = vld [vmem:[%s3 + $0x5e8] sm:$0xff]
  %v789 = vld [vmem:[%s3 + $0x5f0] sm:$0xff]
  %v790 = vld [vmem:[%s3 + $0x5f8] sm:$0xff]
  %v791 = vld [vmem:[%s3 + $0x600] sm:$0xff]
  %v792 = vld [vmem:[%s3 + $0x608] sm:$0xff]
  %v793 = vld [vmem:[%s3 + $0x610] sm:$0xff]
  %v794 = vld [vmem:[%s3 + $0x618] sm:$0xff]
  %v795 = vld [vmem:[%s3 + $0x620] sm:$0xff]
  %v796 = vld [vmem:[%s3 + $0x628] sm:$0xff]
  %v797 = vld [vmem:[%s3 + $0x630] sm:$0xff]
  %v798 = vld [vmem:[%s3 + $0x638] sm:$0xff]
  %v799 = vld [vmem:[%s3 + $0x640] sm:$0xff]
  %v800 = vld [vmem:[%s3 + $0x648] sm:$0xff]
  %v801 = vld [vmem:[%s3 + $0x650] sm:$0xff]
  %v802 = vld [vmem:[%s3 + $0x658] sm:$0xff]
  %v803 = vld [vmem:[%s3 + $0x660] sm:$0xff]
  %v804 = vld [vmem:[%s3 + $0x668] sm:$0xff]
  %v805 = vld [vmem:[%s3 + $0x670] sm:$0xff]
  %v806 = vld [vmem:[%s3 + $0x678] sm:$0xff]
  %v807 = vld [vmem:[%s3 + $0x680] sm:$0xff]
  %v808 = vld [vmem:[%s3 + $0x688] sm:$0xff]
  %v809 = vld [vmem:[%s3 + $0x690] sm:$0xff]
  %v810 = vld [vmem:[%s3 + $0x698] sm:$0xff]
  %v811 = vld [vmem:[%s3 + $0x6a0] sm:$0xff]
  %v812 = vld [vmem:[%s3 + $0x6a8] sm:$0xff]
  %v813 = vld [vmem:[%s3 + $0x6b0] sm:$0xff]
  %v814 = vld [vmem:[%s3 + $0x6b8] sm:$0xff]
  %v815 = vld [vmem:[%s3 + $0x6c0] sm:$0xff]
  %v816 = vld [vmem:[%s3 + $0x6c8] sm:$0xff]
  %v817 = vld [vmem:[%s3 + $0x6d0] sm:$0xff]
  %v818 = vld [vmem:[%s3 + $0x6d8] sm:$0xff]
  %v819 = vld [vmem:[%s3 + $0x6e0] sm:$0xff]
  %v820 = vld [vmem:[%s3 + $0x6e8] sm:$0xff]
  %v821 = vld [vmem:[%s3 + $0x6f0] sm:$0xff]
  %v822 = vld [vmem:[%s3 + $0x6f8] sm:$0xff]
  %v823 = vld [vmem:[%s3 + $0x700] sm:$0xff]
  %v824 = vld [vmem:[%s3 + $0x708] sm:$0xff]
  %v825 = vld [vmem:[%s3 + $0x710] sm:$0xff]
  %v826 = vld [vmem:[%s3 + $0x718] sm:$0xff]
  %v827 = vld [vmem:[%s3 + $0x720] sm:$0xff]
  %v828 = vld [vmem:[%s3 + $0x728] sm:$0xff]
  %v829 = vld [vmem:[%s3 + $0x730] sm:$0xff]
  %v830 = vld [vmem:[%s3 + $0x738] sm:$0xff]
  %v831 = vld [vmem:[%s3 + $0x740] sm:$0xff]
  %v832 = vld [vmem:[%s3 + $0x748] sm:$0xff]
  %v833 = vld [vmem:[%s3 + $0x750] sm:$0xff]
  %v834 = vld [vmem:[%s3 + $0x758] sm:$0xff]
  %v835 = vld [vmem:[%s3 + $0x760] sm:$0xff]
  %v836 = vld [vmem:[%s3 + $0x768] sm:$0xff]
  %v837 = vld [vmem:[%s3 + $0x770] sm:$0xff]
  %v838 = vld [vmem:[%s3 + $0x778] sm:$0xff]
  %v839 = vld [vmem:[%s3 + $0x780] sm:$0xff]
  %v840 = vld [vmem:[%s3 + $0x788] sm:$0xff]
  %v841 = vld [vmem:[%s3 + $0x790] sm:$0xff]
  %v842 = vld [vmem:[%s3 + $0x798] sm:$0xff]
  %v843 = vld [vmem:[%s3 + $0x7a0] sm:$0xff]
  %v844 = vld [vmem:[%s3 + $0x7a8] sm:$0xff]
  %v845 = vld [vmem:[%s3 + $0x7b0] sm:$0xff]
  %v846 = vld [vmem:[%s3 + $0x7b8] sm:$0xff]
  %v847 = vld [vmem:[%s3 + $0x7c0] sm:$0xff]
  %v848 = vld [vmem:[%s3 + $0x7c8] sm:$0xff]
  %v849 = vld [vmem:[%s3 + $0x7d0] sm:$0xff]
  %v850 = vld [vmem:[%s3 + $0x7d8] sm:$0xff]
  %v851 = vld [vmem:[%s3 + $0x7e0] sm:$0xff]
  %v852 = vld [vmem:[%s3 + $0x7e8] sm:$0xff]
  %v853 = vld [vmem:[%s3 + $0x7f0] sm:$0xff]
  %v854 = vld [vmem:[%s3 + $0x7f8] sm:$0xff]
  %v855 = vld [vmem:[%s4] sm:$0x1]
  %v857 = vperm.slane %v855, 0
  %859 = vmatpush.msra.mxu0 %v614
  %860 = vmatpush.msra.mxu0 %v613
  %861 = vmatpush.msra.mxu0 %v612
  %862 = vmatpush.msra.mxu0 %v611
  %863 = vmatpush.msra.mxu0 %v610
  %864 = vmatpush.msra.mxu0 %v609
  %865 = vmatpush.msra.mxu0 %v608
  %866 = vmatpush.msra.mxu0 %v607
  %867 = vmatpush.msra.mxu0 %v606
  %868 = vmatpush.msra.mxu0 %v605
  %869 = vmatpush.msra.mxu0 %v604
  %870 = vmatpush.msra.mxu0 %v603
  %871 = vmatpush.msra.mxu0 %v602
  %872 = vmatpush.msra.mxu0 %v601
  %873 = vmatpush.msra.mxu0 %v600
  %874 = vmatpush.msra.mxu0 %v599
  %875 = vmatmul.f32.gmra.mxu0 %v499
  %v876 = vpop.f32.mrf.mxu0
  %v877 = vadd.f32 %v857, %v876
  %878 = vmatmul.f32.gmra.mxu0 %v501
  %v879 = vpop.f32.mrf.mxu0
  %v880 = vadd.f32 %v857, %v879
  %881 = vmatmul.f32.gmra.mxu0 %v503
  %v882 = vpop.f32.mrf.mxu0
  %v883 = vadd.f32 %v857, %v882
  %884 = vmatmul.f32.gmra.mxu0 %v505
  %v885 = vpop.f32.mrf.mxu0
  %v886 = vadd.f32 %v857, %v885
  %887 = vmatmul.f32.gmra.mxu0 %v519
  %v888 = vpop.f32.mrf.mxu0
  %v889 = vadd.f32 %v857, %v888
  %890 = vmatmul.f32.gmra.mxu0 %v521
  %v891 = vpop.f32.mrf.mxu0
  %v892 = vadd.f32 %v857, %v891
  %893 = vmatmul.f32.gmra.mxu0 %v523
  %v894 = vpop.f32.mrf.mxu0
  %v895 = vadd.f32 %v857, %v894
  %896 = vmatmul.f32.gmra.mxu0 %v525
  %v897 = vpop.f32.mrf.mxu0
  %v898 = vadd.f32 %v857, %v897
  %899 = vmatmul.f32.gmra.mxu0 %v539
  %v900 = vpop.f32.mrf.mxu0
  %v901 = vadd.f32 %v857, %v900
  %902 = vmatmul.f32.gmra.mxu0 %v541
  %v903 = vpop.f32.mrf.mxu0
  %v904 = vadd.f32 %v857, %v903
  %905 = vmatmul.f32.gmra.mxu0 %v543
  %v906 = vpop.f32.mrf.mxu0
  %v907 = vadd.f32 %v857, %v906
  %908 = vmatmul.f32.gmra.mxu0 %v545
  %v909 = vpop.f32.mrf.mxu0
  %v910 = vadd.f32 %v857, %v909
  %911 = vmatmul.f32.gmra.mxu0 %v559
  %v912 = vpop.f32.mrf.mxu0
  %v913 = vadd.f32 %v857, %v912
  %914 = vmatmul.f32.gmra.mxu0 %v561
  %v915 = vpop.f32.mrf.mxu0
  %v916 = vadd.f32 %v857, %v915
  %917 = vmatmul.f32.gmra.mxu0 %v563
  %v918 = vpop.f32.mrf.mxu0
  %v919 = vadd.f32 %v857, %v918
  %920 = vmatmul.f32.gmra.mxu0 %v565
  %v921 = vpop.f32.mrf.mxu0
  %v922 = vadd.f32 %v857, %v921
  %923 = vdwg.mxu0
  %924 = vmatpush.msra.mxu0 %v630
  %925 = vmatpush.msra.mxu0 %v629
  %926 = vmatpush.msra.mxu0 %v628
  %927 = vmatpush.msra.mxu0 %v627
  %928 = vmatpush.msra.mxu0 %v626
  %929 = vmatpush.msra.mxu0 %v625
  %930 = vmatpush.msra.mxu0 %v624
  %931 = vmatpush.msra.mxu0 %v623
  %932 = vmatpush.msra.mxu0 %v622
  %933 = vmatpush.msra.mxu0 %v621
  %934 = vmatpush.msra.mxu0 %v620
  %935 = vmatpush.msra.mxu0 %v619
  %936 = vmatpush.msra.mxu0 %v618
  %937 = vmatpush.msra.mxu0 %v617
  %938 = vmatpush.msra.mxu0 %v616
  %939 = vmatpush.msra.mxu0 %v615
  %940 = vmatmul.f32.gmra.mxu0 %v500
  %v941 = vpop.f32.mrf.mxu0
  %v942 = vadd.f32 %v877, %v941
  %943 = vmatmul.f32.gmra.mxu0 %v502
  %v944 = vpop.f32.mrf.mxu0
  %v945 = vadd.f32 %v880, %v944
  %946 = vmatmul.f32.gmra.mxu0 %v504
  %v947 = vpop.f32.mrf.mxu0
  %v948 = vadd.f32 %v883, %v947
  %949 = vmatmul.f32.gmra.mxu0 %v506
  %v950 = vpop.f32.mrf.mxu0
  %v951 = vadd.f32 %v886, %v950
  %952 = vmatmul.f32.gmra.mxu0 %v520
  %v953 = vpop.f32.mrf.mxu0
  %v954 = vadd.f32 %v889, %v953
  %955 = vmatmul.f32.gmra.mxu0 %v522
  %v956 = vpop.f32.mrf.mxu0
  %v957 = vadd.f32 %v892, %v956
  %958 = vmatmul.f32.gmra.mxu0 %v524
  %v959 = vpop.f32.mrf.mxu0
  %v960 = vadd.f32 %v895, %v959
  %961 = vmatmul.f32.gmra.mxu0 %v526
  %v962 = vpop.f32.mrf.mxu0
  %v963 = vadd.f32 %v898, %v962
  %964 = vmatmul.f32.gmra.mxu0 %v540
  %v965 = vpop.f32.mrf.mxu0
  %v966 = vadd.f32 %v901, %v965
  %967 = vmatmul.f32.gmra.mxu0 %v542
  %v968 = vpop.f32.mrf.mxu0
  %v969 = vadd.f32 %v904, %v968
  %970 = vmatmul.f32.gmra.mxu0 %v544
  %v971 = vpop.f32.mrf.mxu0
  %v972 = vadd.f32 %v907, %v971
  %973 = vmatmul.f32.gmra.mxu0 %v546
  %v974 = vpop.f32.mrf.mxu0
  %v975 = vadd.f32 %v910, %v974
  %976 = vmatmul.f32.gmra.mxu0 %v560
  %v977 = vpop.f32.mrf.mxu0
  %v978 = vadd.f32 %v913, %v977
  %979 = vmatmul.f32.gmra.mxu0 %v562
  %v980 = vpop.f32.mrf.mxu0
  %v981 = vadd.f32 %v916, %v980
  %982 = vmatmul.f32.gmra.mxu0 %v564
  %v983 = vpop.f32.mrf.mxu0
  %v984 = vadd.f32 %v919, %v983
  %985 = vmatmul.f32.gmra.mxu0 %v566
  %v986 = vpop.f32.mrf.mxu0
  %v987 = vadd.f32 %v922, %v986
  %988 = vdwg.mxu0
  %989 = vmatpush.msra.mxu0 %v646
  %990 = vmatpush.msra.mxu0 %v645
  %991 = vmatpush.msra.mxu0 %v644
  %992 = vmatpush.msra.mxu0 %v643
  %993 = vmatpush.msra.mxu0 %v642
  %994 = vmatpush.msra.mxu0 %v641
  %995 = vmatpush.msra.mxu0 %v640
  %996 = vmatpush.msra.mxu0 %v639
  %997 = vmatpush.msra.mxu0 %v638
  %998 = vmatpush.msra.mxu0 %v637
  %999 = vmatpush.msra.mxu0 %v636
  %1000 = vmatpush.msra.mxu0 %v635
  %1001 = vmatpush.msra.mxu0 %v634
  %1002 = vmatpush.msra.mxu0 %v633
  %1003 = vmatpush.msra.mxu0 %v632
  %1004 = vmatpush.msra.mxu0 %v631
  %1005 = vmatmul.f32.gmra.mxu0 %v501
  %v1006 = vpop.f32.mrf.mxu0
  %v1007 = vadd.f32 %v942, %v1006
  %1008 = vmatmul.f32.gmra.mxu0 %v503
  %v1009 = vpop.f32.mrf.mxu0
  %v1010 = vadd.f32 %v945, %v1009
  %1011 = vmatmul.f32.gmra.mxu0 %v505
  %v1012 = vpop.f32.mrf.mxu0
  %v1013 = vadd.f32 %v948, %v1012
  %1014 = vmatmul.f32.gmra.mxu0 %v507
  %v1015 = vpop.f32.mrf.mxu0
  %v1016 = vadd.f32 %v951, %v1015
  %1017 = vmatmul.f32.gmra.mxu0 %v521
  %v1018 = vpop.f32.mrf.mxu0
  %v1019 = vadd.f32 %v954, %v1018
  %1020 = vmatmul.f32.gmra.mxu0 %v523
  %v1021 = vpop.f32.mrf.mxu0
  %v1022 = vadd.f32 %v957, %v1021
  %1023 = vmatmul.f32.gmra.mxu0 %v525
  %v1024 = vpop.f32.mrf.mxu0
  %v1025 = vadd.f32 %v960, %v1024
  %1026 = vmatmul.f32.gmra.mxu0 %v527
  %v1027 = vpop.f32.mrf.mxu0
  %v1028 = vadd.f32 %v963, %v1027
  %1029 = vmatmul.f32.gmra.mxu0 %v541
  %v1030 = vpop.f32.mrf.mxu0
  %v1031 = vadd.f32 %v966, %v1030
  %1032 = vmatmul.f32.gmra.mxu0 %v543
  %v1033 = vpop.f32.mrf.mxu0
  %v1034 = vadd.f32 %v969, %v1033
  %1035 = vmatmul.f32.gmra.mxu0 %v545
  %v1036 = vpop.f32.mrf.mxu0
  %v1037 = vadd.f32 %v972, %v1036
  %1038 = vmatmul.f32.gmra.mxu0 %v547
  %v1039 = vpop.f32.mrf.mxu0
  %v1040 = vadd.f32 %v975, %v1039
  %1041 = vmatmul.f32.gmra.mxu0 %v561
  %v1042 = vpop.f32.mrf.mxu0
  %v1043 = vadd.f32 %v978, %v1042
  %1044 = vmatmul.f32.gmra.mxu0 %v563
  %v1045 = vpop.f32.mrf.mxu0
  %v1046 = vadd.f32 %v981, %v1045
  %1047 = vmatmul.f32.gmra.mxu0 %v565
  %v1048 = vpop.f32.mrf.mxu0
  %v1049 = vadd.f32 %v984, %v1048
  %1050 = vmatmul.f32.gmra.mxu0 %v567
  %v1051 = vpop.f32.mrf.mxu0
  %v1052 = vadd.f32 %v987, %v1051
  %1053 = vdwg.mxu0
  %1054 = vmatpush.msra.mxu0 %v662
  %1055 = vmatpush.msra.mxu0 %v661
  %1056 = vmatpush.msra.mxu0 %v660
  %1057 = vmatpush.msra.mxu0 %v659
  %1058 = vmatpush.msra.mxu0 %v658
  %1059 = vmatpush.msra.mxu0 %v657
  %1060 = vmatpush.msra.mxu0 %v656
  %1061 = vmatpush.msra.mxu0 %v655
  %1062 = vmatpush.msra.mxu0 %v654
  %1063 = vmatpush.msra.mxu0 %v653
  %1064 = vmatpush.msra.mxu0 %v652
  %1065 = vmatpush.msra.mxu0 %v651
  %1066 = vmatpush.msra.mxu0 %v650
  %1067 = vmatpush.msra.mxu0 %v649
  %1068 = vmatpush.msra.mxu0 %v648
  %1069 = vmatpush.msra.mxu0 %v647
  %1070 = vmatmul.f32.gmra.mxu0 %v502
  %v1071 = vpop.f32.mrf.mxu0
  %v1072 = vadd.f32 %v1007, %v1071
  %1073 = vmatmul.f32.gmra.mxu0 %v504
  %v1074 = vpop.f32.mrf.mxu0
  %v1075 = vadd.f32 %v1010, %v1074
  %1076 = vmatmul.f32.gmra.mxu0 %v506
  %v1077 = vpop.f32.mrf.mxu0
  %v1078 = vadd.f32 %v1013, %v1077
  %1079 = vmatmul.f32.gmra.mxu0 %v508
  %v1080 = vpop.f32.mrf.mxu0
  %v1081 = vadd.f32 %v1016, %v1080
  %1082 = vmatmul.f32.gmra.mxu0 %v522
  %v1083 = vpop.f32.mrf.mxu0
  %v1084 = vadd.f32 %v1019, %v1083
  %1085 = vmatmul.f32.gmra.mxu0 %v524
  %v1086 = vpop.f32.mrf.mxu0
  %v1087 = vadd.f32 %v1022, %v1086
  %1088 = vmatmul.f32.gmra.mxu0 %v526
  %v1089 = vpop.f32.mrf.mxu0
  %v1090 = vadd.f32 %v1025, %v1089
  %1091 = vmatmul.f32.gmra.mxu0 %v528
  %v1092 = vpop.f32.mrf.mxu0
  %v1093 = vadd.f32 %v1028, %v1092
  %1094 = vmatmul.f32.gmra.mxu0 %v542
  %v1095 = vpop.f32.mrf.mxu0
  %v1096 = vadd.f32 %v1031, %v1095
  %1097 = vmatmul.f32.gmra.mxu0 %v544
  %v1098 = vpop.f32.mrf.mxu0
  %v1099 = vadd.f32 %v1034, %v1098
  %1100 = vmatmul.f32.gmra.mxu0 %v546
  %v1101 = vpop.f32.mrf.mxu0
  %v1102 = vadd.f32 %v1037, %v1101
  %1103 = vmatmul.f32.gmra.mxu0 %v548
  %v1104 = vpop.f32.mrf.mxu0
  %v1105 = vadd.f32 %v1040, %v1104
  %1106 = vmatmul.f32.gmra.mxu0 %v562
  %v1107 = vpop.f32.mrf.mxu0
  %v1108 = vadd.f32 %v1043, %v1107
  %1109 = vmatmul.f32.gmra.mxu0 %v564
  %v1110 = vpop.f32.mrf.mxu0
  %v1111 = vadd.f32 %v1046, %v1110
  %1112 = vmatmul.f32.gmra.mxu0 %v566
  %v1113 = vpop.f32.mrf.mxu0
  %v1114 = vadd.f32 %v1049, %v1113
  %1115 = vmatmul.f32.gmra.mxu0 %v568
  %v1116 = vpop.f32.mrf.mxu0
  %v1117 = vadd.f32 %v1052, %v1116
  %1118 = vdwg.mxu0
  %1119 = vmatpush.msra.mxu0 %v678
  %1120 = vmatpush.msra.mxu0 %v677
  %1121 = vmatpush.msra.mxu0 %v676
  %1122 = vmatpush.msra.mxu0 %v675
  %1123 = vmatpush.msra.mxu0 %v674
  %1124 = vmatpush.msra.mxu0 %v673
  %1125 = vmatpush.msra.mxu0 %v672
  %1126 = vmatpush.msra.mxu0 %v671
  %1127 = vmatpush.msra.mxu0 %v670
  %1128 = vmatpush.msra.mxu0 %v669
  %1129 = vmatpush.msra.mxu0 %v668
  %1130 = vmatpush.msra.mxu0 %v667
  %1131 = vmatpush.msra.mxu0 %v666
  %1132 = vmatpush.msra.mxu0 %v665
  %1133 = vmatpush.msra.mxu0 %v664
  %1134 = vmatpush.msra.mxu0 %v663
  %1135 = vmatmul.f32.gmra.mxu0 %v509
  %v1136 = vpop.f32.mrf.mxu0
  %v1137 = vadd.f32 %v1072, %v1136
  %1138 = vmatmul.f32.gmra.mxu0 %v511
  %v1139 = vpop.f32.mrf.mxu0
  %v1140 = vadd.f32 %v1075, %v1139
  %1141 = vmatmul.f32.gmra.mxu0 %v513
  %v1142 = vpop.f32.mrf.mxu0
  %v1143 = vadd.f32 %v1078, %v1142
  %1144 = vmatmul.f32.gmra.mxu0 %v515
  %v1145 = vpop.f32.mrf.mxu0
  %v1146 = vadd.f32 %v1081, %v1145
  %1147 = vmatmul.f32.gmra.mxu0 %v529
  %v1148 = vpop.f32.mrf.mxu0
  %v1149 = vadd.f32 %v1084, %v1148
  %1150 = vmatmul.f32.gmra.mxu0 %v531
  %v1151 = vpop.f32.mrf.mxu0
  %v1152 = vadd.f32 %v1087, %v1151
  %1153 = vmatmul.f32.gmra.mxu0 %v533
  %v1154 = vpop.f32.mrf.mxu0
  %v1155 = vadd.f32 %v1090, %v1154
  %1156 = vmatmul.f32.gmra.mxu0 %v535
  %v1157 = vpop.f32.mrf.mxu0
  %v1158 = vadd.f32 %v1093, %v1157
  %1159 = vmatmul.f32.gmra.mxu0 %v549
  %v1160 = vpop.f32.mrf.mxu0
  %v1161 = vadd.f32 %v1096, %v1160
  %1162 = vmatmul.f32.gmra.mxu0 %v551
  %v1163 = vpop.f32.mrf.mxu0
  %v1164 = vadd.f32 %v1099, %v1163
  %1165 = vmatmul.f32.gmra.mxu0 %v553
  %v1166 = vpop.f32.mrf.mxu0
  %v1167 = vadd.f32 %v1102, %v1166
  %1168 = vmatmul.f32.gmra.mxu0 %v555
  %v1169 = vpop.f32.mrf.mxu0
  %v1170 = vadd.f32 %v1105, %v1169
  %1171 = vmatmul.f32.gmra.mxu0 %v569
  %v1172 = vpop.f32.mrf.mxu0
  %v1173 = vadd.f32 %v1108, %v1172
  %1174 = vmatmul.f32.gmra.mxu0 %v571
  %v1175 = vpop.f32.mrf.mxu0
  %v1176 = vadd.f32 %v1111, %v1175
  %1177 = vmatmul.f32.gmra.mxu0 %v573
  %v1178 = vpop.f32.mrf.mxu0
  %v1179 = vadd.f32 %v1114, %v1178
  %1180 = vmatmul.f32.gmra.mxu0 %v575
  %v1181 = vpop.f32.mrf.mxu0
  %v1182 = vadd.f32 %v1117, %v1181
  %1183 = vdwg.mxu0
  %1184 = vmatpush.msra.mxu0 %v694
  %1185 = vmatpush.msra.mxu0 %v693
  %1186 = vmatpush.msra.mxu0 %v692
  %1187 = vmatpush.msra.mxu0 %v691
  %1188 = vmatpush.msra.mxu0 %v690
  %1189 = vmatpush.msra.mxu0 %v689
  %1190 = vmatpush.msra.mxu0 %v688
  %1191 = vmatpush.msra.mxu0 %v687
  %1192 = vmatpush.msra.mxu0 %v686
  %1193 = vmatpush.msra.mxu0 %v685
  %1194 = vmatpush.msra.mxu0 %v684
  %1195 = vmatpush.msra.mxu0 %v683
  %1196 = vmatpush.msra.mxu0 %v682
  %1197 = vmatpush.msra.mxu0 %v681
  %1198 = vmatpush.msra.mxu0 %v680
  %1199 = vmatpush.msra.mxu0 %v679
  %1200 = vmatmul.f32.gmra.mxu0 %v510
  %v1201 = vpop.f32.mrf.mxu0
  %v1202 = vadd.f32 %v1137, %v1201
  %1203 = vmatmul.f32.gmra.mxu0 %v512
  %v1204 = vpop.f32.mrf.mxu0
  %v1205 = vadd.f32 %v1140, %v1204
  %1206 = vmatmul.f32.gmra.mxu0 %v514
  %v1207 = vpop.f32.mrf.mxu0
  %v1208 = vadd.f32 %v1143, %v1207
  %1209 = vmatmul.f32.gmra.mxu0 %v516
  %v1210 = vpop.f32.mrf.mxu0
  %v1211 = vadd.f32 %v1146, %v1210
  %1212 = vmatmul.f32.gmra.mxu0 %v530
  %v1213 = vpop.f32.mrf.mxu0
  %v1214 = vadd.f32 %v1149, %v1213
  %1215 = vmatmul.f32.gmra.mxu0 %v532
  %v1216 = vpop.f32.mrf.mxu0
  %v1217 = vadd.f32 %v1152, %v1216
  %1218 = vmatmul.f32.gmra.mxu0 %v534
  %v1219 = vpop.f32.mrf.mxu0
  %v1220 = vadd.f32 %v1155, %v1219
  %1221 = vmatmul.f32.gmra.mxu0 %v536
  %v1222 = vpop.f32.mrf.mxu0
  %v1223 = vadd.f32 %v1158, %v1222
  %1224 = vmatmul.f32.gmra.mxu0 %v550
  %v1225 = vpop.f32.mrf.mxu0
  %v1226 = vadd.f32 %v1161, %v1225
  %1227 = vmatmul.f32.gmra.mxu0 %v552
  %v1228 = vpop.f32.mrf.mxu0
  %v1229 = vadd.f32 %v1164, %v1228
  %1230 = vmatmul.f32.gmra.mxu0 %v554
  %v1231 = vpop.f32.mrf.mxu0
  %v1232 = vadd.f32 %v1167, %v1231
  %1233 = vmatmul.f32.gmra.mxu0 %v556
  %v1234 = vpop.f32.mrf.mxu0
  %v1235 = vadd.f32 %v1170, %v1234
  %1236 = vmatmul.f32.gmra.mxu0 %v570
  %v1237 = vpop.f32.mrf.mxu0
  %v1238 = vadd.f32 %v1173, %v1237
  %1239 = vmatmul.f32.gmra.mxu0 %v572
  %v1240 = vpop.f32.mrf.mxu0
  %v1241 = vadd.f32 %v1176, %v1240
  %1242 = vmatmul.f32.gmra.mxu0 %v574
  %v1243 = vpop.f32.mrf.mxu0
  %v1244 = vadd.f32 %v1179, %v1243
  %1245 = vmatmul.f32.gmra.mxu0 %v576
  %v1246 = vpop.f32.mrf.mxu0
  %v1247 = vadd.f32 %v1182, %v1246
  %1248 = vdwg.mxu0
  %1249 = vmatpush.msra.mxu0 %v710
  %1250 = vmatpush.msra.mxu0 %v709
  %1251 = vmatpush.msra.mxu0 %v708
  %1252 = vmatpush.msra.mxu0 %v707
  %1253 = vmatpush.msra.mxu0 %v706
  %1254 = vmatpush.msra.mxu0 %v705
  %1255 = vmatpush.msra.mxu0 %v704
  %1256 = vmatpush.msra.mxu0 %v703
  %1257 = vmatpush.msra.mxu0 %v702
  %1258 = vmatpush.msra.mxu0 %v701
  %1259 = vmatpush.msra.mxu0 %v700
  %1260 = vmatpush.msra.mxu0 %v699
  %1261 = vmatpush.msra.mxu0 %v698
  %1262 = vmatpush.msra.mxu0 %v697
  %1263 = vmatpush.msra.mxu0 %v696
  %1264 = vmatpush.msra.mxu0 %v695
  %1265 = vmatmul.f32.gmra.mxu0 %v511
  %v1266 = vpop.f32.mrf.mxu0
  %v1267 = vadd.f32 %v1202, %v1266
  %1268 = vmatmul.f32.gmra.mxu0 %v513
  %v1269 = vpop.f32.mrf.mxu0
  %v1270 = vadd.f32 %v1205, %v1269
  %1271 = vmatmul.f32.gmra.mxu0 %v515
  %v1272 = vpop.f32.mrf.mxu0
  %v1273 = vadd.f32 %v1208, %v1272
  %1274 = vmatmul.f32.gmra.mxu0 %v517
  %v1275 = vpop.f32.mrf.mxu0
  %v1276 = vadd.f32 %v1211, %v1275
  %1277 = vmatmul.f32.gmra.mxu0 %v531
  %v1278 = vpop.f32.mrf.mxu0
  %v1279 = vadd.f32 %v1214, %v1278
  %1280 = vmatmul.f32.gmra.mxu0 %v533
  %v1281 = vpop.f32.mrf.mxu0
  %v1282 = vadd.f32 %v1217, %v1281
  %1283 = vmatmul.f32.gmra.mxu0 %v535
  %v1284 = vpop.f32.mrf.mxu0
  %v1285 = vadd.f32 %v1220, %v1284
  %1286 = vmatmul.f32.gmra.mxu0 %v537
  %v1287 = vpop.f32.mrf.mxu0
  %v1288 = vadd.f32 %v1223, %v1287
  %1289 = vmatmul.f32.gmra.mxu0 %v551
  %v1290 = vpop.f32.mrf.mxu0
  %v1291 = vadd.f32 %v1226, %v1290
  %1292 = vmatmul.f32.gmra.mxu0 %v553
  %v1293 = vpop.f32.mrf.mxu0
  %v1294 = vadd.f32 %v1229, %v1293
  %1295 = vmatmul.f32.gmra.mxu0 %v555
  %v1296 = vpop.f32.mrf.mxu0
  %v1297 = vadd.f32 %v1232, %v1296
  %1298 = vmatmul.f32.gmra.mxu0 %v557
  %v1299 = vpop.f32.mrf.mxu0
  %v1300 = vadd.f32 %v1235, %v1299
  %1301 = vmatmul.f32.gmra.mxu0 %v571
  %v1302 = vpop.f32.mrf.mxu0
  %v1303 = vadd.f32 %v1238, %v1302
  %1304 = vmatmul.f32.gmra.mxu0 %v573
  %v1305 = vpop.f32.mrf.mxu0
  %v1306 = vadd.f32 %v1241, %v1305
  %1307 = vmatmul.f32.gmra.mxu0 %v575
  %v1308 = vpop.f32.mrf.mxu0
  %v1309 = vadd.f32 %v1244, %v1308
  %1310 = vmatmul.f32.gmra.mxu0 %v577
  %v1311 = vpop.f32.mrf.mxu0
  %v1312 = vadd.f32 %v1247, %v1311
  %1313 = vdwg.mxu0
  %1314 = vmatpush.msra.mxu0 %v726
  %1315 = vmatpush.msra.mxu0 %v725
  %1316 = vmatpush.msra.mxu0 %v724
  %1317 = vmatpush.msra.mxu0 %v723
  %1318 = vmatpush.msra.mxu0 %v722
  %1319 = vmatpush.msra.mxu0 %v721
  %1320 = vmatpush.msra.mxu0 %v720
  %1321 = vmatpush.msra.mxu0 %v719
  %1322 = vmatpush.msra.mxu0 %v718
  %1323 = vmatpush.msra.mxu0 %v717
  %1324 = vmatpush.msra.mxu0 %v716
  %1325 = vmatpush.msra.mxu0 %v715
  %1326 = vmatpush.msra.mxu0 %v714
  %1327 = vmatpush.msra.mxu0 %v713
  %1328 = vmatpush.msra.mxu0 %v712
  %1329 = vmatpush.msra.mxu0 %v711
  %1330 = vmatmul.f32.gmra.mxu0 %v512
  %v1331 = vpop.f32.mrf.mxu0
  %v1332 = vadd.f32 %v1267, %v1331
  %1333 = vmatmul.f32.gmra.mxu0 %v514
  %v1334 = vpop.f32.mrf.mxu0
  %v1335 = vadd.f32 %v1270, %v1334
  %1336 = vmatmul.f32.gmra.mxu0 %v516
  %v1337 = vpop.f32.mrf.mxu0
  %v1338 = vadd.f32 %v1273, %v1337
  %1339 = vmatmul.f32.gmra.mxu0 %v518
  %v1340 = vpop.f32.mrf.mxu0
  %v1341 = vadd.f32 %v1276, %v1340
  %1342 = vmatmul.f32.gmra.mxu0 %v532
  %v1343 = vpop.f32.mrf.mxu0
  %v1344 = vadd.f32 %v1279, %v1343
  %1345 = vmatmul.f32.gmra.mxu0 %v534
  %v1346 = vpop.f32.mrf.mxu0
  %v1347 = vadd.f32 %v1282, %v1346
  %1348 = vmatmul.f32.gmra.mxu0 %v536
  %v1349 = vpop.f32.mrf.mxu0
  %v1350 = vadd.f32 %v1285, %v1349
  %1351 = vmatmul.f32.gmra.mxu0 %v538
  %v1352 = vpop.f32.mrf.mxu0
  %v1353 = vadd.f32 %v1288, %v1352
  %1354 = vmatmul.f32.gmra.mxu0 %v552
  %v1355 = vpop.f32.mrf.mxu0
  %v1356 = vadd.f32 %v1291, %v1355
  %1357 = vmatmul.f32.gmra.mxu0 %v554
  %v1358 = vpop.f32.mrf.mxu0
  %v1359 = vadd.f32 %v1294, %v1358
  %1360 = vmatmul.f32.gmra.mxu0 %v556
  %v1361 = vpop.f32.mrf.mxu0
  %v1362 = vadd.f32 %v1297, %v1361
  %1363 = vmatmul.f32.gmra.mxu0 %v558
  %v1364 = vpop.f32.mrf.mxu0
  %v1365 = vadd.f32 %v1300, %v1364
  %1366 = vmatmul.f32.gmra.mxu0 %v572
  %v1367 = vpop.f32.mrf.mxu0
  %v1368 = vadd.f32 %v1303, %v1367
  %1369 = vmatmul.f32.gmra.mxu0 %v574
  %v1370 = vpop.f32.mrf.mxu0
  %v1371 = vadd.f32 %v1306, %v1370
  %1372 = vmatmul.f32.gmra.mxu0 %v576
  %v1373 = vpop.f32.mrf.mxu0
  %v1374 = vadd.f32 %v1309, %v1373
  %1375 = vmatmul.f32.gmra.mxu0 %v578
  %v1376 = vpop.f32.mrf.mxu0
  %v1377 = vadd.f32 %v1312, %v1376
  %1378 = vdwg.mxu0
  %1379 = vmatpush.msra.mxu0 %v742
  %1380 = vmatpush.msra.mxu0 %v741
  %1381 = vmatpush.msra.mxu0 %v740
  %1382 = vmatpush.msra.mxu0 %v739
  %1383 = vmatpush.msra.mxu0 %v738
  %1384 = vmatpush.msra.mxu0 %v737
  %1385 = vmatpush.msra.mxu0 %v736
  %1386 = vmatpush.msra.mxu0 %v735
  %1387 = vmatpush.msra.mxu0 %v734
  %1388 = vmatpush.msra.mxu0 %v733
  %1389 = vmatpush.msra.mxu0 %v732
  %1390 = vmatpush.msra.mxu0 %v731
  %1391 = vmatpush.msra.mxu0 %v730
  %1392 = vmatpush.msra.mxu0 %v729
  %1393 = vmatpush.msra.mxu0 %v728
  %1394 = vmatpush.msra.mxu0 %v727
  %1395 = vmatmul.f32.gmra.mxu0 %v519
  %v1396 = vpop.f32.mrf.mxu0
  %v1397 = vadd.f32 %v1332, %v1396
  %1398 = vmatmul.f32.gmra.mxu0 %v521
  %v1399 = vpop.f32.mrf.mxu0
  %v1400 = vadd.f32 %v1335, %v1399
  %1401 = vmatmul.f32.gmra.mxu0 %v523
  %v1402 = vpop.f32.mrf.mxu0
  %v1403 = vadd.f32 %v1338, %v1402
  %1404 = vmatmul.f32.gmra.mxu0 %v525
  %v1405 = vpop.f32.mrf.mxu0
  %v1406 = vadd.f32 %v1341, %v1405
  %1407 = vmatmul.f32.gmra.mxu0 %v539
  %v1408 = vpop.f32.mrf.mxu0
  %v1409 = vadd.f32 %v1344, %v1408
  %1410 = vmatmul.f32.gmra.mxu0 %v541
  %v1411 = vpop.f32.mrf.mxu0
  %v1412 = vadd.f32 %v1347, %v1411
  %1413 = vmatmul.f32.gmra.mxu0 %v543
  %v1414 = vpop.f32.mrf.mxu0
  %v1415 = vadd.f32 %v1350, %v1414
  %1416 = vmatmul.f32.gmra.mxu0 %v545
  %v1417 = vpop.f32.mrf.mxu0
  %v1418 = vadd.f32 %v1353, %v1417
  %1419 = vmatmul.f32.gmra.mxu0 %v559
  %v1420 = vpop.f32.mrf.mxu0
  %v1421 = vadd.f32 %v1356, %v1420
  %1422 = vmatmul.f32.gmra.mxu0 %v561
  %v1423 = vpop.f32.mrf.mxu0
  %v1424 = vadd.f32 %v1359, %v1423
  %1425 = vmatmul.f32.gmra.mxu0 %v563
  %v1426 = vpop.f32.mrf.mxu0
  %v1427 = vadd.f32 %v1362, %v1426
  %1428 = vmatmul.f32.gmra.mxu0 %v565
  %v1429 = vpop.f32.mrf.mxu0
  %v1430 = vadd.f32 %v1365, %v1429
  %1431 = vmatmul.f32.gmra.mxu0 %v579
  %v1432 = vpop.f32.mrf.mxu0
  %v1433 = vadd.f32 %v1368, %v1432
  %1434 = vmatmul.f32.gmra.mxu0 %v581
  %v1435 = vpop.f32.mrf.mxu0
  %v1436 = vadd.f32 %v1371, %v1435
  %1437 = vmatmul.f32.gmra.mxu0 %v583
  %v1438 = vpop.f32.mrf.mxu0
  %v1439 = vadd.f32 %v1374, %v1438
  %1440 = vmatmul.f32.gmra.mxu0 %v585
  %v1441 = vpop.f32.mrf.mxu0
  %v1442 = vadd.f32 %v1377, %v1441
  %1443 = vdwg.mxu0
  %1444 = vmatpush.msra.mxu0 %v758
  %1445 = vmatpush.msra.mxu0 %v757
  %1446 = vmatpush.msra.mxu0 %v756
  %1447 = vmatpush.msra.mxu0 %v755
  %1448 = vmatpush.msra.mxu0 %v754
  %1449 = vmatpush.msra.mxu0 %v753
  %1450 = vmatpush.msra.mxu0 %v752
  %1451 = vmatpush.msra.mxu0 %v751
  %1452 = vmatpush.msra.mxu0 %v750
  %1453 = vmatpush.msra.mxu0 %v749
  %1454 = vmatpush.msra.mxu0 %v748
  %1455 = vmatpush.msra.mxu0 %v747
  %1456 = vmatpush.msra.mxu0 %v746
  %1457 = vmatpush.msra.mxu0 %v745
  %1458 = vmatpush.msra.mxu0 %v744
  %1459 = vmatpush.msra.mxu0 %v743
  %1460 = vmatmul.f32.gmra.mxu0 %v520
  %v1461 = vpop.f32.mrf.mxu0
  %v1462 = vadd.f32 %v1397, %v1461
  %1463 = vmatmul.f32.gmra.mxu0 %v522
  %v1464 = vpop.f32.mrf.mxu0
  %v1465 = vadd.f32 %v1400, %v1464
  %1466 = vmatmul.f32.gmra.mxu0 %v524
  %v1467 = vpop.f32.mrf.mxu0
  %v1468 = vadd.f32 %v1403, %v1467
  %1469 = vmatmul.f32.gmra.mxu0 %v526
  %v1470 = vpop.f32.mrf.mxu0
  %v1471 = vadd.f32 %v1406, %v1470
  %1472 = vmatmul.f32.gmra.mxu0 %v540
  %v1473 = vpop.f32.mrf.mxu0
  %v1474 = vadd.f32 %v1409, %v1473
  %1475 = vmatmul.f32.gmra.mxu0 %v542
  %v1476 = vpop.f32.mrf.mxu0
  %v1477 = vadd.f32 %v1412, %v1476
  %1478 = vmatmul.f32.gmra.mxu0 %v544
  %v1479 = vpop.f32.mrf.mxu0
  %v1480 = vadd.f32 %v1415, %v1479
  %1481 = vmatmul.f32.gmra.mxu0 %v546
  %v1482 = vpop.f32.mrf.mxu0
  %v1483 = vadd.f32 %v1418, %v1482
  %1484 = vmatmul.f32.gmra.mxu0 %v560
  %v1485 = vpop.f32.mrf.mxu0
  %v1486 = vadd.f32 %v1421, %v1485
  %1487 = vmatmul.f32.gmra.mxu0 %v562
  %v1488 = vpop.f32.mrf.mxu0
  %v1489 = vadd.f32 %v1424, %v1488
  %1490 = vmatmul.f32.gmra.mxu0 %v564
  %v1491 = vpop.f32.mrf.mxu0
  %v1492 = vadd.f32 %v1427, %v1491
  %1493 = vmatmul.f32.gmra.mxu0 %v566
  %v1494 = vpop.f32.mrf.mxu0
  %v1495 = vadd.f32 %v1430, %v1494
  %1496 = vmatmul.f32.gmra.mxu0 %v580
  %v1497 = vpop.f32.mrf.mxu0
  %v1498 = vadd.f32 %v1433, %v1497
  %1499 = vmatmul.f32.gmra.mxu0 %v582
  %v1500 = vpop.f32.mrf.mxu0
  %v1501 = vadd.f32 %v1436, %v1500
  %1502 = vmatmul.f32.gmra.mxu0 %v584
  %v1503 = vpop.f32.mrf.mxu0
  %v1504 = vadd.f32 %v1439, %v1503
  %1505 = vmatmul.f32.gmra.mxu0 %v586
  %v1506 = vpop.f32.mrf.mxu0
  %v1507 = vadd.f32 %v1442, %v1506
  %1508 = vdwg.mxu0
  %1509 = vmatpush.msra.mxu0 %v774
  %1510 = vmatpush.msra.mxu0 %v773
  %1511 = vmatpush.msra.mxu0 %v772
  %1512 = vmatpush.msra.mxu0 %v771
  %1513 = vmatpush.msra.mxu0 %v770
  %1514 = vmatpush.msra.mxu0 %v769
  %1515 = vmatpush.msra.mxu0 %v768
  %1516 = vmatpush.msra.mxu0 %v767
  %1517 = vmatpush.msra.mxu0 %v766
  %1518 = vmatpush.msra.mxu0 %v765
  %1519 = vmatpush.msra.mxu0 %v764
  %1520 = vmatpush.msra.mxu0 %v763
  %1521 = vmatpush.msra.mxu0 %v762
  %1522 = vmatpush.msra.mxu0 %v761
  %1523 = vmatpush.msra.mxu0 %v760
  %1524 = vmatpush.msra.mxu0 %v759
  %1525 = vmatmul.f32.gmra.mxu0 %v521
  %v1526 = vpop.f32.mrf.mxu0
  %v1527 = vadd.f32 %v1462, %v1526
  %1528 = vmatmul.f32.gmra.mxu0 %v523
  %v1529 = vpop.f32.mrf.mxu0
  %v1530 = vadd.f32 %v1465, %v1529
  %1531 = vmatmul.f32.gmra.mxu0 %v525
  %v1532 = vpop.f32.mrf.mxu0
  %v1533 = vadd.f32 %v1468, %v1532
  %1534 = vmatmul.f32.gmra.mxu0 %v527
  %v1535 = vpop.f32.mrf.mxu0
  %v1536 = vadd.f32 %v1471, %v1535
  %1537 = vmatmul.f32.gmra.mxu0 %v541
  %v1538 = vpop.f32.mrf.mxu0
  %v1539 = vadd.f32 %v1474, %v1538
  %1540 = vmatmul.f32.gmra.mxu0 %v543
  %v1541 = vpop.f32.mrf.mxu0
  %v1542 = vadd.f32 %v1477, %v1541
  %1543 = vmatmul.f32.gmra.mxu0 %v545
  %v1544 = vpop.f32.mrf.mxu0
  %v1545 = vadd.f32 %v1480, %v1544
  %1546 = vmatmul.f32.gmra.mxu0 %v547
  %v1547 = vpop.f32.mrf.mxu0
  %v1548 = vadd.f32 %v1483, %v1547
  %1549 = vmatmul.f32.gmra.mxu0 %v561
  %v1550 = vpop.f32.mrf.mxu0
  %v1551 = vadd.f32 %v1486, %v1550
  %1552 = vmatmul.f32.gmra.mxu0 %v563
  %v1553 = vpop.f32.mrf.mxu0
  %v1554 = vadd.f32 %v1489, %v1553
  %1555 = vmatmul.f32.gmra.mxu0 %v565
  %v1556 = vpop.f32.mrf.mxu0
  %v1557 = vadd.f32 %v1492, %v1556
  %1558 = vmatmul.f32.gmra.mxu0 %v567
  %v1559 = vpop.f32.mrf.mxu0
  %v1560 = vadd.f32 %v1495, %v1559
  %1561 = vmatmul.f32.gmra.mxu0 %v581
  %v1562 = vpop.f32.mrf.mxu0
  %v1563 = vadd.f32 %v1498, %v1562
  %1564 = vmatmul.f32.gmra.mxu0 %v583
  %v1565 = vpop.f32.mrf.mxu0
  %v1566 = vadd.f32 %v1501, %v1565
  %1567 = vmatmul.f32.gmra.mxu0 %v585
  %v1568 = vpop.f32.mrf.mxu0
  %v1569 = vadd.f32 %v1504, %v1568
  %1570 = vmatmul.f32.gmra.mxu0 %v587
  %v1571 = vpop.f32.mrf.mxu0
  %v1572 = vadd.f32 %v1507, %v1571
  %1573 = vdwg.mxu0
  %1574 = vmatpush.msra.mxu0 %v790
  %1575 = vmatpush.msra.mxu0 %v789
  %1576 = vmatpush.msra.mxu0 %v788
  %1577 = vmatpush.msra.mxu0 %v787
  %1578 = vmatpush.msra.mxu0 %v786
  %1579 = vmatpush.msra.mxu0 %v785
  %1580 = vmatpush.msra.mxu0 %v784
  %1581 = vmatpush.msra.mxu0 %v783
  %1582 = vmatpush.msra.mxu0 %v782
  %1583 = vmatpush.msra.mxu0 %v781
  %1584 = vmatpush.msra.mxu0 %v780
  %1585 = vmatpush.msra.mxu0 %v779
  %1586 = vmatpush.msra.mxu0 %v778
  %1587 = vmatpush.msra.mxu0 %v777
  %1588 = vmatpush.msra.mxu0 %v776
  %1589 = vmatpush.msra.mxu0 %v775
  %1590 = vmatmul.f32.gmra.mxu0 %v522
  %v1591 = vpop.f32.mrf.mxu0
  %v1592 = vadd.f32 %v1527, %v1591
  %1593 = vmatmul.f32.gmra.mxu0 %v524
  %v1594 = vpop.f32.mrf.mxu0
  %v1595 = vadd.f32 %v1530, %v1594
  %1596 = vmatmul.f32.gmra.mxu0 %v526
  %v1597 = vpop.f32.mrf.mxu0
  %v1598 = vadd.f32 %v1533, %v1597
  %1599 = vmatmul.f32.gmra.mxu0 %v528
  %v1600 = vpop.f32.mrf.mxu0
  %v1601 = vadd.f32 %v1536, %v1600
  %1602 = vmatmul.f32.gmra.mxu0 %v542
  %v1603 = vpop.f32.mrf.mxu0
  %v1604 = vadd.f32 %v1539, %v1603
  %1605 = vmatmul.f32.gmra.mxu0 %v544
  %v1606 = vpop.f32.mrf.mxu0
  %v1607 = vadd.f32 %v1542, %v1606
  %1608 = vmatmul.f32.gmra.mxu0 %v546
  %v1609 = vpop.f32.mrf.mxu0
  %v1610 = vadd.f32 %v1545, %v1609
  %1611 = vmatmul.f32.gmra.mxu0 %v548
  %v1612 = vpop.f32.mrf.mxu0
  %v1613 = vadd.f32 %v1548, %v1612
  %1614 = vmatmul.f32.gmra.mxu0 %v562
  %v1615 = vpop.f32.mrf.mxu0
  %v1616 = vadd.f32 %v1551, %v1615
  %1617 = vmatmul.f32.gmra.mxu0 %v564
  %v1618 = vpop.f32.mrf.mxu0
  %v1619 = vadd.f32 %v1554, %v1618
  %1620 = vmatmul.f32.gmra.mxu0 %v566
  %v1621 = vpop.f32.mrf.mxu0
  %v1622 = vadd.f32 %v1557, %v1621
  %1623 = vmatmul.f32.gmra.mxu0 %v568
  %v1624 = vpop.f32.mrf.mxu0
  %v1625 = vadd.f32 %v1560, %v1624
  %1626 = vmatmul.f32.gmra.mxu0 %v582
  %v1627 = vpop.f32.mrf.mxu0
  %v1628 = vadd.f32 %v1563, %v1627
  %1629 = vmatmul.f32.gmra.mxu0 %v584
  %v1630 = vpop.f32.mrf.mxu0
  %v1631 = vadd.f32 %v1566, %v1630
  %1632 = vmatmul.f32.gmra.mxu0 %v586
  %v1633 = vpop.f32.mrf.mxu0
  %v1634 = vadd.f32 %v1569, %v1633
  %1635 = vmatmul.f32.gmra.mxu0 %v588
  %v1636 = vpop.f32.mrf.mxu0
  %v1637 = vadd.f32 %v1572, %v1636
  %1638 = vdwg.mxu0
  %1639 = vmatpush.msra.mxu0 %v806
  %1640 = vmatpush.msra.mxu0 %v805
  %1641 = vmatpush.msra.mxu0 %v804
  %1642 = vmatpush.msra.mxu0 %v803
  %1643 = vmatpush.msra.mxu0 %v802
  %1644 = vmatpush.msra.mxu0 %v801
  %1645 = vmatpush.msra.mxu0 %v800
  %1646 = vmatpush.msra.mxu0 %v799
  %1647 = vmatpush.msra.mxu0 %v798
  %1648 = vmatpush.msra.mxu0 %v797
  %1649 = vmatpush.msra.mxu0 %v796
  %1650 = vmatpush.msra.mxu0 %v795
  %1651 = vmatpush.msra.mxu0 %v794
  %1652 = vmatpush.msra.mxu0 %v793
  %1653 = vmatpush.msra.mxu0 %v792
  %1654 = vmatpush.msra.mxu0 %v791
  %1655 = vmatmul.f32.gmra.mxu0 %v529
  %v1656 = vpop.f32.mrf.mxu0
  %v1657 = vadd.f32 %v1592, %v1656
  %1658 = vmatmul.f32.gmra.mxu0 %v531
  %v1659 = vpop.f32.mrf.mxu0
  %v1660 = vadd.f32 %v1595, %v1659
  %1661 = vmatmul.f32.gmra.mxu0 %v533
  %v1662 = vpop.f32.mrf.mxu0
  %v1663 = vadd.f32 %v1598, %v1662
  %1664 = vmatmul.f32.gmra.mxu0 %v535
  %v1665 = vpop.f32.mrf.mxu0
  %v1666 = vadd.f32 %v1601, %v1665
  %1667 = vmatmul.f32.gmra.mxu0 %v549
  %v1668 = vpop.f32.mrf.mxu0
  %v1669 = vadd.f32 %v1604, %v1668
  %1670 = vmatmul.f32.gmra.mxu0 %v551
  %v1671 = vpop.f32.mrf.mxu0
  %v1672 = vadd.f32 %v1607, %v1671
  %1673 = vmatmul.f32.gmra.mxu0 %v553
  %v1674 = vpop.f32.mrf.mxu0
  %v1675 = vadd.f32 %v1610, %v1674
  %1676 = vmatmul.f32.gmra.mxu0 %v555
  %v1677 = vpop.f32.mrf.mxu0
  %v1678 = vadd.f32 %v1613, %v1677
  %1679 = vmatmul.f32.gmra.mxu0 %v569
  %v1680 = vpop.f32.mrf.mxu0
  %v1681 = vadd.f32 %v1616, %v1680
  %1682 = vmatmul.f32.gmra.mxu0 %v571
  %v1683 = vpop.f32.mrf.mxu0
  %v1684 = vadd.f32 %v1619, %v1683
  %1685 = vmatmul.f32.gmra.mxu0 %v573
  %v1686 = vpop.f32.mrf.mxu0
  %v1687 = vadd.f32 %v1622, %v1686
  %1688 = vmatmul.f32.gmra.mxu0 %v575
  %v1689 = vpop.f32.mrf.mxu0
  %v1690 = vadd.f32 %v1625, %v1689
  %1691 = vmatmul.f32.gmra.mxu0 %v589
  %v1692 = vpop.f32.mrf.mxu0
  %v1693 = vadd.f32 %v1628, %v1692
  %1694 = vmatmul.f32.gmra.mxu0 %v591
  %v1695 = vpop.f32.mrf.mxu0
  %v1696 = vadd.f32 %v1631, %v1695
  %1697 = vmatmul.f32.gmra.mxu0 %v593
  %v1698 = vpop.f32.mrf.mxu0
  %v1699 = vadd.f32 %v1634, %v1698
  %1700 = vmatmul.f32.gmra.mxu0 %v595
  %v1701 = vpop.f32.mrf.mxu0
  %v1702 = vadd.f32 %v1637, %v1701
  %1703 = vdwg.mxu0
  %1704 = vmatpush.msra.mxu0 %v822
  %1705 = vmatpush.msra.mxu0 %v821
  %1706 = vmatpush.msra.mxu0 %v820
  %1707 = vmatpush.msra.mxu0 %v819
  %1708 = vmatpush.msra.mxu0 %v818
  %1709 = vmatpush.msra.mxu0 %v817
  %1710 = vmatpush.msra.mxu0 %v816
  %1711 = vmatpush.msra.mxu0 %v815
  %1712 = vmatpush.msra.mxu0 %v814
  %1713 = vmatpush.msra.mxu0 %v813
  %1714 = vmatpush.msra.mxu0 %v812
  %1715 = vmatpush.msra.mxu0 %v811
  %1716 = vmatpush.msra.mxu0 %v810
  %1717 = vmatpush.msra.mxu0 %v809
  %1718 = vmatpush.msra.mxu0 %v808
  %1719 = vmatpush.msra.mxu0 %v807
  %1720 = vmatmul.f32.gmra.mxu0 %v530
  %v1721 = vpop.f32.mrf.mxu0
  %v1722 = vadd.f32 %v1657, %v1721
  %1723 = vmatmul.f32.gmra.mxu0 %v532
  %v1724 = vpop.f32.mrf.mxu0
  %v1725 = vadd.f32 %v1660, %v1724
  %1726 = vmatmul.f32.gmra.mxu0 %v534
  %v1727 = vpop.f32.mrf.mxu0
  %v1728 = vadd.f32 %v1663, %v1727
  %1729 = vmatmul.f32.gmra.mxu0 %v536
  %v1730 = vpop.f32.mrf.mxu0
  %v1731 = vadd.f32 %v1666, %v1730
  %1732 = vmatmul.f32.gmra.mxu0 %v550
  %v1733 = vpop.f32.mrf.mxu0
  %v1734 = vadd.f32 %v1669, %v1733
  %1735 = vmatmul.f32.gmra.mxu0 %v552
  %v1736 = vpop.f32.mrf.mxu0
  %v1737 = vadd.f32 %v1672, %v1736
  %1738 = vmatmul.f32.gmra.mxu0 %v554
  %v1739 = vpop.f32.mrf.mxu0
  %v1740 = vadd.f32 %v1675, %v1739
  %1741 = vmatmul.f32.gmra.mxu0 %v556
  %v1742 = vpop.f32.mrf.mxu0
  %v1743 = vadd.f32 %v1678, %v1742
  %1744 = vmatmul.f32.gmra.mxu0 %v570
  %v1745 = vpop.f32.mrf.mxu0
  %v1746 = vadd.f32 %v1681, %v1745
  %1747 = vmatmul.f32.gmra.mxu0 %v572
  %v1748 = vpop.f32.mrf.mxu0
  %v1749 = vadd.f32 %v1684, %v1748
  %1750 = vmatmul.f32.gmra.mxu0 %v574
  %v1751 = vpop.f32.mrf.mxu0
  %v1752 = vadd.f32 %v1687, %v1751
  %1753 = vmatmul.f32.gmra.mxu0 %v576
  %v1754 = vpop.f32.mrf.mxu0
  %v1755 = vadd.f32 %v1690, %v1754
  %1756 = vmatmul.f32.gmra.mxu0 %v590
  %v1757 = vpop.f32.mrf.mxu0
  %v1758 = vadd.f32 %v1693, %v1757
  %1759 = vmatmul.f32.gmra.mxu0 %v592
  %v1760 = vpop.f32.mrf.mxu0
  %v1761 = vadd.f32 %v1696, %v1760
  %1762 = vmatmul.f32.gmra.mxu0 %v594
  %v1763 = vpop.f32.mrf.mxu0
  %v1764 = vadd.f32 %v1699, %v1763
  %1765 = vmatmul.f32.gmra.mxu0 %v596
  %v1766 = vpop.f32.mrf.mxu0
  %v1767 = vadd.f32 %v1702, %v1766
  %1768 = vdwg.mxu0
  %1769 = vmatpush.msra.mxu0 %v838
  %1770 = vmatpush.msra.mxu0 %v837
  %1771 = vmatpush.msra.mxu0 %v836
  %1772 = vmatpush.msra.mxu0 %v835
  %1773 = vmatpush.msra.mxu0 %v834
  %1774 = vmatpush.msra.mxu0 %v833
  %1775 = vmatpush.msra.mxu0 %v832
  %1776 = vmatpush.msra.mxu0 %v831
  %1777 = vmatpush.msra.mxu0 %v830
  %1778 = vmatpush.msra.mxu0 %v829
  %1779 = vmatpush.msra.mxu0 %v828
  %1780 = vmatpush.msra.mxu0 %v827
  %1781 = vmatpush.msra.mxu0 %v826
  %1782 = vmatpush.msra.mxu0 %v825
  %1783 = vmatpush.msra.mxu0 %v824
  %1784 = vmatpush.msra.mxu0 %v823
  %1785 = vmatmul.f32.gmra.mxu0 %v531
  %v1786 = vpop.f32.mrf.mxu0
  %v1787 = vadd.f32 %v1722, %v1786
  %1788 = vmatmul.f32.gmra.mxu0 %v533
  %v1789 = vpop.f32.mrf.mxu0
  %v1790 = vadd.f32 %v1725, %v1789
  %1791 = vmatmul.f32.gmra.mxu0 %v535
  %v1792 = vpop.f32.mrf.mxu0
  %v1793 = vadd.f32 %v1728, %v1792
  %1794 = vmatmul.f32.gmra.mxu0 %v537
  %v1795 = vpop.f32.mrf.mxu0
  %v1796 = vadd.f32 %v1731, %v1795
  %1797 = vmatmul.f32.gmra.mxu0 %v551
  %v1798 = vpop.f32.mrf.mxu0
  %v1799 = vadd.f32 %v1734, %v1798
  %1800 = vmatmul.f32.gmra.mxu0 %v553
  %v1801 = vpop.f32.mrf.mxu0
  %v1802 = vadd.f32 %v1737, %v1801
  %1803 = vmatmul.f32.gmra.mxu0 %v555
  %v1804 = vpop.f32.mrf.mxu0
  %v1805 = vadd.f32 %v1740, %v1804
  %1806 = vmatmul.f32.gmra.mxu0 %v557
  %v1807 = vpop.f32.mrf.mxu0
  %v1808 = vadd.f32 %v1743, %v1807
  %1809 = vmatmul.f32.gmra.mxu0 %v571
  %v1810 = vpop.f32.mrf.mxu0
  %v1811 = vadd.f32 %v1746, %v1810
  %1812 = vmatmul.f32.gmra.mxu0 %v573
  %v1813 = vpop.f32.mrf.mxu0
  %v1814 = vadd.f32 %v1749, %v1813
  %1815 = vmatmul.f32.gmra.mxu0 %v575
  %v1816 = vpop.f32.mrf.mxu0
  %v1817 = vadd.f32 %v1752, %v1816
  %1818 = vmatmul.f32.gmra.mxu0 %v577
  %v1819 = vpop.f32.mrf.mxu0
  %v1820 = vadd.f32 %v1755, %v1819
  %1821 = vmatmul.f32.gmra.mxu0 %v591
  %v1822 = vpop.f32.mrf.mxu0
  %v1823 = vadd.f32 %v1758, %v1822
  %1824 = vmatmul.f32.gmra.mxu0 %v593
  %v1825 = vpop.f32.mrf.mxu0
  %v1826 = vadd.f32 %v1761, %v1825
  %1827 = vmatmul.f32.gmra.mxu0 %v595
  %v1828 = vpop.f32.mrf.mxu0
  %v1829 = vadd.f32 %v1764, %v1828
  %1830 = vmatmul.f32.gmra.mxu0 %v597
  %v1831 = vpop.f32.mrf.mxu0
  %v1832 = vadd.f32 %v1767, %v1831
  %1833 = vdwg.mxu0
  %1834 = vmatpush.msra.mxu0 %v854
  %1835 = vmatpush.msra.mxu0 %v853
  %1836 = vmatpush.msra.mxu0 %v852
  %1837 = vmatpush.msra.mxu0 %v851
  %1838 = vmatpush.msra.mxu0 %v850
  %1839 = vmatpush.msra.mxu0 %v849
  %1840 = vmatpush.msra.mxu0 %v848
  %1841 = vmatpush.msra.mxu0 %v847
  %1842 = vmatpush.msra.mxu0 %v846
  %1843 = vmatpush.msra.mxu0 %v845
  %1844 = vmatpush.msra.mxu0 %v844
  %1845 = vmatpush.msra.mxu0 %v843
  %1846 = vmatpush.msra.mxu0 %v842
  %1847 = vmatpush.msra.mxu0 %v841
  %1848 = vmatpush.msra.mxu0 %v840
  %1849 = vmatpush.msra.mxu0 %v839
  %1850 = vmatmul.f32.gmra.mxu0 %v532
  %v1851 = vpop.f32.mrf.mxu0
  %v1852 = vadd.f32 %v1787, %v1851
  %1853 = vmatmul.f32.gmra.mxu0 %v534
  %v1854 = vpop.f32.mrf.mxu0
  %v1855 = vadd.f32 %v1790, %v1854
  %1856 = vmatmul.f32.gmra.mxu0 %v536
  %v1857 = vpop.f32.mrf.mxu0
  %v1858 = vadd.f32 %v1793, %v1857
  %1859 = vmatmul.f32.gmra.mxu0 %v538
  %v1860 = vpop.f32.mrf.mxu0
  %v1861 = vadd.f32 %v1796, %v1860
  %1862 = vmatmul.f32.gmra.mxu0 %v552
  %v1863 = vpop.f32.mrf.mxu0
  %v1864 = vadd.f32 %v1799, %v1863
  %1865 = vmatmul.f32.gmra.mxu0 %v554
  %v1866 = vpop.f32.mrf.mxu0
  %v1867 = vadd.f32 %v1802, %v1866
  %1868 = vmatmul.f32.gmra.mxu0 %v556
  %v1869 = vpop.f32.mrf.mxu0
  %v1870 = vadd.f32 %v1805, %v1869
  %1871 = vmatmul.f32.gmra.mxu0 %v558
  %v1872 = vpop.f32.mrf.mxu0
  %v1873 = vadd.f32 %v1808, %v1872
  %1874 = vmatmul.f32.gmra.mxu0 %v572
  %v1875 = vpop.f32.mrf.mxu0
  %v1876 = vadd.f32 %v1811, %v1875
  %1877 = vmatmul.f32.gmra.mxu0 %v574
  %v1878 = vpop.f32.mrf.mxu0
  %v1879 = vadd.f32 %v1814, %v1878
  %1880 = vmatmul.f32.gmra.mxu0 %v576
  %v1881 = vpop.f32.mrf.mxu0
  %v1882 = vadd.f32 %v1817, %v1881
  %1883 = vmatmul.f32.gmra.mxu0 %v578
  %v1884 = vpop.f32.mrf.mxu0
  %v1885 = vadd.f32 %v1820, %v1884
  %1886 = vmatmul.f32.gmra.mxu0 %v592
  %v1887 = vpop.f32.mrf.mxu0
  %v1888 = vadd.f32 %v1823, %v1887
  %1889 = vmatmul.f32.gmra.mxu0 %v594
  %v1890 = vpop.f32.mrf.mxu0
  %v1891 = vadd.f32 %v1826, %v1890
  %1892 = vmatmul.f32.gmra.mxu0 %v596
  %v1893 = vpop.f32.mrf.mxu0
  %v1894 = vadd.f32 %v1829, %v1893
  %1895 = vmatmul.f32.gmra.mxu0 %v598
  %v1896 = vpop.f32.mrf.mxu0
  %v1897 = vadd.f32 %v1832, %v1896
  %1898 = vdwg.mxu0
  %v1899 = vmax.f32 %v1852, 0.0
  %v1900 = vmax.f32 %v1855, 0.0
  %v1901 = vmax.f32 %v1858, 0.0
  %v1902 = vmax.f32 %v1861, 0.0
  %v1903 = vmax.f32 %v1864, 0.0
  %v1904 = vmax.f32 %v1867, 0.0
  %v1905 = vmax.f32 %v1870, 0.0
  %v1906 = vmax.f32 %v1873, 0.0
  %v1907 = vmax.f32 %v1876, 0.0
  %v1908 = vmax.f32 %v1879, 0.0
  %v1909 = vmax.f32 %v1882, 0.0
  %v1910 = vmax.f32 %v1885, 0.0
  %v1911 = vmax.f32 %v1888, 0.0
  %v1912 = vmax.f32 %v1891, 0.0
  %v1913 = vmax.f32 %v1894, 0.0
  %v1914 = vmax.f32 %v1897, 0.0
  %1915 = vst [vmem:[#allocation3] sm:$0xff] 0.0
  %1916 = vst [vmem:[#allocation3 + $0x8] sm:$0xff] 0.0
  %1917 = vst [vmem:[#allocation3 + $0x10] sm:$0xff] 0.0
  %1918 = vst [vmem:[#allocation3 + $0x18] sm:$0xff] 0.0
  %1919 = vst [vmem:[#allocation3 + $0x20] sm:$0xff] 0.0
  %1920 = vst [vmem:[#allocation3 + $0x28] sm:$0xff] 0.0
  %s1921 = scalar_lea.vmem [#allocation3], 240
  %1922 = vst [vmem:[%s1921] sm:$0xff] 0.0
  %1923 = vst [vmem:[%s1921 + $0x8] sm:$0xff] 0.0
  %1924 = vst [vmem:[%s1921 + $0x10] sm:$0xff] 0.0
  %1925 = vst [vmem:[%s1921 + $0x18] sm:$0xff] 0.0
  %1926 = vst [vmem:[%s1921 + $0x20] sm:$0xff] 0.0
  %1927 = vst [vmem:[%s1921 + $0x28] sm:$0xff] 0.0
  %s1928 = scalar_lea.vmem [#allocation3], 48
  %1929 = vst [vmem:[%s1928] sm:$0xff] 0.0
  %1930 = vst [vmem:[%s1928 + $0x30] sm:$0xff] 0.0
  %1931 = vst [vmem:[%s1928 + $0x60] sm:$0xff] 0.0
  %1932 = vst [vmem:[%s1928 + $0x90] sm:$0xff] 0.0
  %s1933 = scalar_lea.vmem [#allocation3], 88
  %1934 = vst [vmem:[%s1933] sm:$0xff] 0.0
  %1935 = vst [vmem:[%s1933 + $0x30] sm:$0xff] 0.0
  %1936 = vst [vmem:[%s1933 + $0x60] sm:$0xff] 0.0
  %1937 = vst [vmem:[%s1933 + $0x90] sm:$0xff] 0.0
  %s1938 = scalar_lea.vmem [#allocation3], 56
  %1939 = vst [vmem:[%s1938] sm:$0xff] %v1899
  %1940 = vst [vmem:[%s1938 + $0x8] sm:$0xff] %v1900
  %1941 = vst [vmem:[%s1938 + $0x10] sm:$0xff] %v1901
  %1942 = vst [vmem:[%s1938 + $0x18] sm:$0xff] %v1902
  %1943 = vst [vmem:[%s1938 + $0x30] sm:$0xff] %v1903
  %1944 = vst [vmem:[%s1938 + $0x38] sm:$0xff] %v1904
  %1945 = vst [vmem:[%s1938 + $0x40] sm:$0xff] %v1905
  %1946 = vst [vmem:[%s1938 + $0x48] sm:$0xff] %v1906
  %1947 = vst [vmem:[%s1938 + $0x60] sm:$0xff] %v1907
  %1948 = vst [vmem:[%s1938 + $0x68] sm:$0xff] %v1908
  %1949 = vst [vmem:[%s1938 + $0x70] sm:$0xff] %v1909
  %1950 = vst [vmem:[%s1938 + $0x78] sm:$0xff] %v1910
  %1951 = vst [vmem:[%s1938 + $0x90] sm:$0xff] %v1911
  %1952 = vst [vmem:[%s1938 + $0x98] sm:$0xff] %v1912
  %1953 = vst [vmem:[%s1938 + $0xa0] sm:$0xff] %v1913
  %1954 = vst [vmem:[%s1938 + $0xa8] sm:$0xff] %v1914
  %v1955 = vld [vmem:[#allocation3] sm:$0xff]
  %v1956 = vld [vmem:[#allocation3 + $0x8] sm:$0xff]
  %v1957 = vld [vmem:[#allocation3 + $0x10] sm:$0xff]
  %v1958 = vld [vmem:[#allocation3 + $0x18] sm:$0xff]
  %v1959 = vld [vmem:[#allocation3 + $0x20] sm:$0xff]
  %v1960 = vld [vmem:[#allocation3 + $0x28] sm:$0xff]
  %v1961 = vld [vmem:[#allocation3 + $0x30] sm:$0xff]
  %v1962 = vld [vmem:[#allocation3 + $0x38] sm:$0xff]
  %v1963 = vld [vmem:[#allocation3 + $0x40] sm:$0xff]
  %v1964 = vld [vmem:[#allocation3 + $0x48] sm:$0xff]
  %v1965 = vld [vmem:[#allocation3 + $0x50] sm:$0xff]
  %v1966 = vld [vmem:[#allocation3 + $0x58] sm:$0xff]
  %v1967 = vld [vmem:[#allocation3 + $0x60] sm:$0xff]
  %v1968 = vld [vmem:[#allocation3 + $0x68] sm:$0xff]
  %v1969 = vld [vmem:[#allocation3 + $0x70] sm:$0xff]
  %v1970 = vld [vmem:[#allocation3 + $0x78] sm:$0xff]
  %v1971 = vld [vmem:[#allocation3 + $0x80] sm:$0xff]
  %v1972 = vld [vmem:[#allocation3 + $0x88] sm:$0xff]
  %v1973 = vld [vmem:[#allocation3 + $0x90] sm:$0xff]
  %v1974 = vld [vmem:[#allocation3 + $0x98] sm:$0xff]
  %v1975 = vld [vmem:[#allocation3 + $0xa0] sm:$0xff]
  %v1976 = vld [vmem:[#allocation3 + $0xa8] sm:$0xff]
  %v1977 = vld [vmem:[#allocation3 + $0xb0] sm:$0xff]
  %v1978 = vld [vmem:[#allocation3 + $0xb8] sm:$0xff]
  %v1979 = vld [vmem:[#allocation3 + $0xc0] sm:$0xff]
  %v1980 = vld [vmem:[#allocation3 + $0xc8] sm:$0xff]
  %v1981 = vld [vmem:[#allocation3 + $0xd0] sm:$0xff]
  %v1982 = vld [vmem:[#allocation3 + $0xd8] sm:$0xff]
  %v1983 = vld [vmem:[#allocation3 + $0xe0] sm:$0xff]
  %v1984 = vld [vmem:[#allocation3 + $0xe8] sm:$0xff]
  %v1985 = vld [vmem:[#allocation3 + $0xf0] sm:$0xff]
  %v1986 = vld [vmem:[#allocation3 + $0xf8] sm:$0xff]
  %v1987 = vld [vmem:[#allocation3 + $0x100] sm:$0xff]
  %v1988 = vld [vmem:[#allocation3 + $0x108] sm:$0xff]
  %v1989 = vld [vmem:[#allocation3 + $0x110] sm:$0xff]
  %v1990 = vld [vmem:[#allocation3 + $0x118] sm:$0xff]
  %v1991 = vld [vmem:[%s5] sm:$0xff]
  %v1992 = vld [vmem:[%s5 + $0x8] sm:$0xff]
  %v1993 = vld [vmem:[%s5 + $0x10] sm:$0xff]
  %v1994 = vld [vmem:[%s5 + $0x18] sm:$0xff]
  %v1995 = vld [vmem:[%s5 + $0x20] sm:$0xff]
  %v1996 = vld [vmem:[%s5 + $0x28] sm:$0xff]
  %v1997 = vld [vmem:[%s5 + $0x30] sm:$0xff]
  %v1998 = vld [vmem:[%s5 + $0x38] sm:$0xff]
  %v1999 = vld [vmem:[%s5 + $0x40] sm:$0xff]
  %v2000 = vld [vmem:[%s5 + $0x48] sm:$0xff]
  %v2001 = vld [vmem:[%s5 + $0x50] sm:$0xff]
  %v2002 = vld [vmem:[%s5 + $0x58] sm:$0xff]
  %v2003 = vld [vmem:[%s5 + $0x60] sm:$0xff]
  %v2004 = vld [vmem:[%s5 + $0x68] sm:$0xff]
  %v2005 = vld [vmem:[%s5 + $0x70] sm:$0xff]
  %v2006 = vld [vmem:[%s5 + $0x78] sm:$0xff]
  %v2007 = vld [vmem:[%s5 + $0x80] sm:$0xff]
  %v2008 = vld [vmem:[%s5 + $0x88] sm:$0xff]
  %v2009 = vld [vmem:[%s5 + $0x90] sm:$0xff]
  %v2010 = vld [vmem:[%s5 + $0x98] sm:$0xff]
  %v2011 = vld [vmem:[%s5 + $0xa0] sm:$0xff]
  %v2012 = vld [vmem:[%s5 + $0xa8] sm:$0xff]
  %v2013 = vld [vmem:[%s5 + $0xb0] sm:$0xff]
  %v2014 = vld [vmem:[%s5 + $0xb8] sm:$0xff]
  %v2015 = vld [vmem:[%s5 + $0xc0] sm:$0xff]
  %v2016 = vld [vmem:[%s5 + $0xc8] sm:$0xff]
  %v2017 = vld [vmem:[%s5 + $0xd0] sm:$0xff]
  %v2018 = vld [vmem:[%s5 + $0xd8] sm:$0xff]
  %v2019 = vld [vmem:[%s5 + $0xe0] sm:$0xff]
  %v2020 = vld [vmem:[%s5 + $0xe8] sm:$0xff]
  %v2021 = vld [vmem:[%s5 + $0xf0] sm:$0xff]
  %v2022 = vld [vmem:[%s5 + $0xf8] sm:$0xff]
  %v2023 = vld [vmem:[%s5 + $0x100] sm:$0xff]
  %v2024 = vld [vmem:[%s5 + $0x108] sm:$0xff]
  %v2025 = vld [vmem:[%s5 + $0x110] sm:$0xff]
  %v2026 = vld [vmem:[%s5 + $0x118] sm:$0xff]
  %v2027 = vld [vmem:[%s5 + $0x120] sm:$0xff]
  %v2028 = vld [vmem:[%s5 + $0x128] sm:$0xff]
  %v2029 = vld [vmem:[%s5 + $0x130] sm:$0xff]
  %v2030 = vld [vmem:[%s5 + $0x138] sm:$0xff]
  %v2031 = vld [vmem:[%s5 + $0x140] sm:$0xff]
  %v2032 = vld [vmem:[%s5 + $0x148] sm:$0xff]
  %v2033 = vld [vmem:[%s5 + $0x150] sm:$0xff]
  %v2034 = vld [vmem:[%s5 + $0x158] sm:$0xff]
  %v2035 = vld [vmem:[%s5 + $0x160] sm:$0xff]
  %v2036 = vld [vmem:[%s5 + $0x168] sm:$0xff]
  %v2037 = vld [vmem:[%s5 + $0x170] sm:$0xff]
  %v2038 = vld [vmem:[%s5 + $0x178] sm:$0xff]
  %v2039 = vld [vmem:[%s5 + $0x180] sm:$0xff]
  %v2040 = vld [vmem:[%s5 + $0x188] sm:$0xff]
  %v2041 = vld [vmem:[%s5 + $0x190] sm:$0xff]
  %v2042 = vld [vmem:[%s5 + $0x198] sm:$0xff]
  %v2043 = vld [vmem:[%s5 + $0x1a0] sm:$0xff]
  %v2044 = vld [vmem:[%s5 + $0x1a8] sm:$0xff]
  %v2045 = vld [vmem:[%s5 + $0x1b0] sm:$0xff]
  %v2046 = vld [vmem:[%s5 + $0x1b8] sm:$0xff]
  %v2047 = vld [vmem:[%s5 + $0x1c0] sm:$0xff]
  %v2048 = vld [vmem:[%s5 + $0x1c8] sm:$0xff]
  %v2049 = vld [vmem:[%s5 + $0x1d0] sm:$0xff]
  %v2050 = vld [vmem:[%s5 + $0x1d8] sm:$0xff]
  %v2051 = vld [vmem:[%s5 + $0x1e0] sm:$0xff]
  %v2052 = vld [vmem:[%s5 + $0x1e8] sm:$0xff]
  %v2053 = vld [vmem:[%s5 + $0x1f0] sm:$0xff]
  %v2054 = vld [vmem:[%s5 + $0x1f8] sm:$0xff]
  %v2055 = vld [vmem:[%s5 + $0x200] sm:$0xff]
  %v2056 = vld [vmem:[%s5 + $0x208] sm:$0xff]
  %v2057 = vld [vmem:[%s5 + $0x210] sm:$0xff]
  %v2058 = vld [vmem:[%s5 + $0x218] sm:$0xff]
  %v2059 = vld [vmem:[%s5 + $0x220] sm:$0xff]
  %v2060 = vld [vmem:[%s5 + $0x228] sm:$0xff]
  %v2061 = vld [vmem:[%s5 + $0x230] sm:$0xff]
  %v2062 = vld [vmem:[%s5 + $0x238] sm:$0xff]
  %v2063 = vld [vmem:[%s5 + $0x240] sm:$0xff]
  %v2064 = vld [vmem:[%s5 + $0x248] sm:$0xff]
  %v2065 = vld [vmem:[%s5 + $0x250] sm:$0xff]
  %v2066 = vld [vmem:[%s5 + $0x258] sm:$0xff]
  %v2067 = vld [vmem:[%s5 + $0x260] sm:$0xff]
  %v2068 = vld [vmem:[%s5 + $0x268] sm:$0xff]
  %v2069 = vld [vmem:[%s5 + $0x270] sm:$0xff]
  %v2070 = vld [vmem:[%s5 + $0x278] sm:$0xff]
  %v2071 = vld [vmem:[%s5 + $0x280] sm:$0xff]
  %v2072 = vld [vmem:[%s5 + $0x288] sm:$0xff]
  %v2073 = vld [vmem:[%s5 + $0x290] sm:$0xff]
  %v2074 = vld [vmem:[%s5 + $0x298] sm:$0xff]
  %v2075 = vld [vmem:[%s5 + $0x2a0] sm:$0xff]
  %v2076 = vld [vmem:[%s5 + $0x2a8] sm:$0xff]
  %v2077 = vld [vmem:[%s5 + $0x2b0] sm:$0xff]
  %v2078 = vld [vmem:[%s5 + $0x2b8] sm:$0xff]
  %v2079 = vld [vmem:[%s5 + $0x2c0] sm:$0xff]
  %v2080 = vld [vmem:[%s5 + $0x2c8] sm:$0xff]
  %v2081 = vld [vmem:[%s5 + $0x2d0] sm:$0xff]
  %v2082 = vld [vmem:[%s5 + $0x2d8] sm:$0xff]
  %v2083 = vld [vmem:[%s5 + $0x2e0] sm:$0xff]
  %v2084 = vld [vmem:[%s5 + $0x2e8] sm:$0xff]
  %v2085 = vld [vmem:[%s5 + $0x2f0] sm:$0xff]
  %v2086 = vld [vmem:[%s5 + $0x2f8] sm:$0xff]
  %v2087 = vld [vmem:[%s5 + $0x300] sm:$0xff]
  %v2088 = vld [vmem:[%s5 + $0x308] sm:$0xff]
  %v2089 = vld [vmem:[%s5 + $0x310] sm:$0xff]
  %v2090 = vld [vmem:[%s5 + $0x318] sm:$0xff]
  %v2091 = vld [vmem:[%s5 + $0x320] sm:$0xff]
  %v2092 = vld [vmem:[%s5 + $0x328] sm:$0xff]
  %v2093 = vld [vmem:[%s5 + $0x330] sm:$0xff]
  %v2094 = vld [vmem:[%s5 + $0x338] sm:$0xff]
  %v2095 = vld [vmem:[%s5 + $0x340] sm:$0xff]
  %v2096 = vld [vmem:[%s5 + $0x348] sm:$0xff]
  %v2097 = vld [vmem:[%s5 + $0x350] sm:$0xff]
  %v2098 = vld [vmem:[%s5 + $0x358] sm:$0xff]
  %v2099 = vld [vmem:[%s5 + $0x360] sm:$0xff]
  %v2100 = vld [vmem:[%s5 + $0x368] sm:$0xff]
  %v2101 = vld [vmem:[%s5 + $0x370] sm:$0xff]
  %v2102 = vld [vmem:[%s5 + $0x378] sm:$0xff]
  %v2103 = vld [vmem:[%s5 + $0x380] sm:$0xff]
  %v2104 = vld [vmem:[%s5 + $0x388] sm:$0xff]
  %v2105 = vld [vmem:[%s5 + $0x390] sm:$0xff]
  %v2106 = vld [vmem:[%s5 + $0x398] sm:$0xff]
  %v2107 = vld [vmem:[%s5 + $0x3a0] sm:$0xff]
  %v2108 = vld [vmem:[%s5 + $0x3a8] sm:$0xff]
  %v2109 = vld [vmem:[%s5 + $0x3b0] sm:$0xff]
  %v2110 = vld [vmem:[%s5 + $0x3b8] sm:$0xff]
  %v2111 = vld [vmem:[%s5 + $0x3c0] sm:$0xff]
  %v2112 = vld [vmem:[%s5 + $0x3c8] sm:$0xff]
  %v2113 = vld [vmem:[%s5 + $0x3d0] sm:$0xff]
  %v2114 = vld [vmem:[%s5 + $0x3d8] sm:$0xff]
  %v2115 = vld [vmem:[%s5 + $0x3e0] sm:$0xff]
  %v2116 = vld [vmem:[%s5 + $0x3e8] sm:$0xff]
  %v2117 = vld [vmem:[%s5 + $0x3f0] sm:$0xff]
  %v2118 = vld [vmem:[%s5 + $0x3f8] sm:$0xff]
  %v2119 = vld [vmem:[%s5 + $0x400] sm:$0xff]
  %v2120 = vld [vmem:[%s5 + $0x408] sm:$0xff]
  %v2121 = vld [vmem:[%s5 + $0x410] sm:$0xff]
  %v2122 = vld [vmem:[%s5 + $0x418] sm:$0xff]
  %v2123 = vld [vmem:[%s5 + $0x420] sm:$0xff]
  %v2124 = vld [vmem:[%s5 + $0x428] sm:$0xff]
  %v2125 = vld [vmem:[%s5 + $0x430] sm:$0xff]
  %v2126 = vld [vmem:[%s5 + $0x438] sm:$0xff]
  %v2127 = vld [vmem:[%s5 + $0x440] sm:$0xff]
  %v2128 = vld [vmem:[%s5 + $0x448] sm:$0xff]
  %v2129 = vld [vmem:[%s5 + $0x450] sm:$0xff]
  %v2130 = vld [vmem:[%s5 + $0x458] sm:$0xff]
  %v2131 = vld [vmem:[%s5 + $0x460] sm:$0xff]
  %v2132 = vld [vmem:[%s5 + $0x468] sm:$0xff]
  %v2133 = vld [vmem:[%s5 + $0x470] sm:$0xff]
  %v2134 = vld [vmem:[%s5 + $0x478] sm:$0xff]
  %v2135 = vld [vmem:[%s5 + $0x480] sm:$0xff]
  %v2136 = vld [vmem:[%s5 + $0x488] sm:$0xff]
  %v2137 = vld [vmem:[%s5 + $0x490] sm:$0xff]
  %v2138 = vld [vmem:[%s5 + $0x498] sm:$0xff]
  %v2139 = vld [vmem:[%s5 + $0x4a0] sm:$0xff]
  %v2140 = vld [vmem:[%s5 + $0x4a8] sm:$0xff]
  %v2141 = vld [vmem:[%s5 + $0x4b0] sm:$0xff]
  %v2142 = vld [vmem:[%s5 + $0x4b8] sm:$0xff]
  %v2143 = vld [vmem:[%s5 + $0x4c0] sm:$0xff]
  %v2144 = vld [vmem:[%s5 + $0x4c8] sm:$0xff]
  %v2145 = vld [vmem:[%s5 + $0x4d0] sm:$0xff]
  %v2146 = vld [vmem:[%s5 + $0x4d8] sm:$0xff]
  %v2147 = vld [vmem:[%s5 + $0x4e0] sm:$0xff]
  %v2148 = vld [vmem:[%s5 + $0x4e8] sm:$0xff]
  %v2149 = vld [vmem:[%s5 + $0x4f0] sm:$0xff]
  %v2150 = vld [vmem:[%s5 + $0x4f8] sm:$0xff]
  %v2151 = vld [vmem:[%s5 + $0x500] sm:$0xff]
  %v2152 = vld [vmem:[%s5 + $0x508] sm:$0xff]
  %v2153 = vld [vmem:[%s5 + $0x510] sm:$0xff]
  %v2154 = vld [vmem:[%s5 + $0x518] sm:$0xff]
  %v2155 = vld [vmem:[%s5 + $0x520] sm:$0xff]
  %v2156 = vld [vmem:[%s5 + $0x528] sm:$0xff]
  %v2157 = vld [vmem:[%s5 + $0x530] sm:$0xff]
  %v2158 = vld [vmem:[%s5 + $0x538] sm:$0xff]
  %v2159 = vld [vmem:[%s5 + $0x540] sm:$0xff]
  %v2160 = vld [vmem:[%s5 + $0x548] sm:$0xff]
  %v2161 = vld [vmem:[%s5 + $0x550] sm:$0xff]
  %v2162 = vld [vmem:[%s5 + $0x558] sm:$0xff]
  %v2163 = vld [vmem:[%s5 + $0x560] sm:$0xff]
  %v2164 = vld [vmem:[%s5 + $0x568] sm:$0xff]
  %v2165 = vld [vmem:[%s5 + $0x570] sm:$0xff]
  %v2166 = vld [vmem:[%s5 + $0x578] sm:$0xff]
  %v2167 = vld [vmem:[%s5 + $0x580] sm:$0xff]
  %v2168 = vld [vmem:[%s5 + $0x588] sm:$0xff]
  %v2169 = vld [vmem:[%s5 + $0x590] sm:$0xff]
  %v2170 = vld [vmem:[%s5 + $0x598] sm:$0xff]
  %v2171 = vld [vmem:[%s5 + $0x5a0] sm:$0xff]
  %v2172 = vld [vmem:[%s5 + $0x5a8] sm:$0xff]
  %v2173 = vld [vmem:[%s5 + $0x5b0] sm:$0xff]
  %v2174 = vld [vmem:[%s5 + $0x5b8] sm:$0xff]
  %v2175 = vld [vmem:[%s5 + $0x5c0] sm:$0xff]
  %v2176 = vld [vmem:[%s5 + $0x5c8] sm:$0xff]
  %v2177 = vld [vmem:[%s5 + $0x5d0] sm:$0xff]
  %v2178 = vld [vmem:[%s5 + $0x5d8] sm:$0xff]
  %v2179 = vld [vmem:[%s5 + $0x5e0] sm:$0xff]
  %v2180 = vld [vmem:[%s5 + $0x5e8] sm:$0xff]
  %v2181 = vld [vmem:[%s5 + $0x5f0] sm:$0xff]
  %v2182 = vld [vmem:[%s5 + $0x5f8] sm:$0xff]
  %v2183 = vld [vmem:[%s5 + $0x600] sm:$0xff]
  %v2184 = vld [vmem:[%s5 + $0x608] sm:$0xff]
  %v2185 = vld [vmem:[%s5 + $0x610] sm:$0xff]
  %v2186 = vld [vmem:[%s5 + $0x618] sm:$0xff]
  %v2187 = vld [vmem:[%s5 + $0x620] sm:$0xff]
  %v2188 = vld [vmem:[%s5 + $0x628] sm:$0xff]
  %v2189 = vld [vmem:[%s5 + $0x630] sm:$0xff]
  %v2190 = vld [vmem:[%s5 + $0x638] sm:$0xff]
  %v2191 = vld [vmem:[%s5 + $0x640] sm:$0xff]
  %v2192 = vld [vmem:[%s5 + $0x648] sm:$0xff]
  %v2193 = vld [vmem:[%s5 + $0x650] sm:$0xff]
  %v2194 = vld [vmem:[%s5 + $0x658] sm:$0xff]
  %v2195 = vld [vmem:[%s5 + $0x660] sm:$0xff]
  %v2196 = vld [vmem:[%s5 + $0x668] sm:$0xff]
  %v2197 = vld [vmem:[%s5 + $0x670] sm:$0xff]
  %v2198 = vld [vmem:[%s5 + $0x678] sm:$0xff]
  %v2199 = vld [vmem:[%s5 + $0x680] sm:$0xff]
  %v2200 = vld [vmem:[%s5 + $0x688] sm:$0xff]
  %v2201 = vld [vmem:[%s5 + $0x690] sm:$0xff]
  %v2202 = vld [vmem:[%s5 + $0x698] sm:$0xff]
  %v2203 = vld [vmem:[%s5 + $0x6a0] sm:$0xff]
  %v2204 = vld [vmem:[%s5 + $0x6a8] sm:$0xff]
  %v2205 = vld [vmem:[%s5 + $0x6b0] sm:$0xff]
  %v2206 = vld [vmem:[%s5 + $0x6b8] sm:$0xff]
  %v2207 = vld [vmem:[%s5 + $0x6c0] sm:$0xff]
  %v2208 = vld [vmem:[%s5 + $0x6c8] sm:$0xff]
  %v2209 = vld [vmem:[%s5 + $0x6d0] sm:$0xff]
  %v2210 = vld [vmem:[%s5 + $0x6d8] sm:$0xff]
  %v2211 = vld [vmem:[%s5 + $0x6e0] sm:$0xff]
  %v2212 = vld [vmem:[%s5 + $0x6e8] sm:$0xff]
  %v2213 = vld [vmem:[%s5 + $0x6f0] sm:$0xff]
  %v2214 = vld [vmem:[%s5 + $0x6f8] sm:$0xff]
  %v2215 = vld [vmem:[%s5 + $0x700] sm:$0xff]
  %v2216 = vld [vmem:[%s5 + $0x708] sm:$0xff]
  %v2217 = vld [vmem:[%s5 + $0x710] sm:$0xff]
  %v2218 = vld [vmem:[%s5 + $0x718] sm:$0xff]
  %v2219 = vld [vmem:[%s5 + $0x720] sm:$0xff]
  %v2220 = vld [vmem:[%s5 + $0x728] sm:$0xff]
  %v2221 = vld [vmem:[%s5 + $0x730] sm:$0xff]
  %v2222 = vld [vmem:[%s5 + $0x738] sm:$0xff]
  %v2223 = vld [vmem:[%s5 + $0x740] sm:$0xff]
  %v2224 = vld [vmem:[%s5 + $0x748] sm:$0xff]
  %v2225 = vld [vmem:[%s5 + $0x750] sm:$0xff]
  %v2226 = vld [vmem:[%s5 + $0x758] sm:$0xff]
  %v2227 = vld [vmem:[%s5 + $0x760] sm:$0xff]
  %v2228 = vld [vmem:[%s5 + $0x768] sm:$0xff]
  %v2229 = vld [vmem:[%s5 + $0x770] sm:$0xff]
  %v2230 = vld [vmem:[%s5 + $0x778] sm:$0xff]
  %v2231 = vld [vmem:[%s5 + $0x780] sm:$0xff]
  %v2232 = vld [vmem:[%s5 + $0x788] sm:$0xff]
  %v2233 = vld [vmem:[%s5 + $0x790] sm:$0xff]
  %v2234 = vld [vmem:[%s5 + $0x798] sm:$0xff]
  %v2235 = vld [vmem:[%s5 + $0x7a0] sm:$0xff]
  %v2236 = vld [vmem:[%s5 + $0x7a8] sm:$0xff]
  %v2237 = vld [vmem:[%s5 + $0x7b0] sm:$0xff]
  %v2238 = vld [vmem:[%s5 + $0x7b8] sm:$0xff]
  %v2239 = vld [vmem:[%s5 + $0x7c0] sm:$0xff]
  %v2240 = vld [vmem:[%s5 + $0x7c8] sm:$0xff]
  %v2241 = vld [vmem:[%s5 + $0x7d0] sm:$0xff]
  %v2242 = vld [vmem:[%s5 + $0x7d8] sm:$0xff]
  %v2243 = vld [vmem:[%s5 + $0x7e0] sm:$0xff]
  %v2244 = vld [vmem:[%s5 + $0x7e8] sm:$0xff]
  %v2245 = vld [vmem:[%s5 + $0x7f0] sm:$0xff]
  %v2246 = vld [vmem:[%s5 + $0x7f8] sm:$0xff]
  %v2247 = vld [vmem:[%s6] sm:$0x1]
  %v2249 = vperm.slane %v2247, 0
  %2251 = vmatpush.msra.mxu0 %v2006
  %2252 = vmatpush.msra.mxu0 %v2005
  %2253 = vmatpush.msra.mxu0 %v2004
  %2254 = vmatpush.msra.mxu0 %v2003
  %2255 = vmatpush.msra.mxu0 %v2002
  %2256 = vmatpush.msra.mxu0 %v2001
  %2257 = vmatpush.msra.mxu0 %v2000
  %2258 = vmatpush.msra.mxu0 %v1999
  %2259 = vmatpush.msra.mxu0 %v1998
  %2260 = vmatpush.msra.mxu0 %v1997
  %2261 = vmatpush.msra.mxu0 %v1996
  %2262 = vmatpush.msra.mxu0 %v1995
  %2263 = vmatpush.msra.mxu0 %v1994
  %2264 = vmatpush.msra.mxu0 %v1993
  %2265 = vmatpush.msra.mxu0 %v1992
  %2266 = vmatpush.msra.mxu0 %v1991
  %2267 = vmatmul.f32.gmra.mxu0 %v1955
  %v2268 = vpop.f32.mrf.mxu0
  %v2269 = vadd.f32 %v2249, %v2268
  %2270 = vmatmul.f32.gmra.mxu0 %v1957
  %v2271 = vpop.f32.mrf.mxu0
  %v2272 = vadd.f32 %v2249, %v2271
  %2273 = vmatmul.f32.gmra.mxu0 %v1967
  %v2274 = vpop.f32.mrf.mxu0
  %v2275 = vadd.f32 %v2249, %v2274
  %2276 = vmatmul.f32.gmra.mxu0 %v1969
  %v2277 = vpop.f32.mrf.mxu0
  %v2278 = vadd.f32 %v2249, %v2277
  %2279 = vdwg.mxu0
  %2280 = vmatpush.msra.mxu0 %v2022
  %2281 = vmatpush.msra.mxu0 %v2021
  %2282 = vmatpush.msra.mxu0 %v2020
  %2283 = vmatpush.msra.mxu0 %v2019
  %2284 = vmatpush.msra.mxu0 %v2018
  %2285 = vmatpush.msra.mxu0 %v2017
  %2286 = vmatpush.msra.mxu0 %v2016
  %2287 = vmatpush.msra.mxu0 %v2015
  %2288 = vmatpush.msra.mxu0 %v2014
  %2289 = vmatpush.msra.mxu0 %v2013
  %2290 = vmatpush.msra.mxu0 %v2012
  %2291 = vmatpush.msra.mxu0 %v2011
  %2292 = vmatpush.msra.mxu0 %v2010
  %2293 = vmatpush.msra.mxu0 %v2009
  %2294 = vmatpush.msra.mxu0 %v2008
  %2295 = vmatpush.msra.mxu0 %v2007
  %2296 = vmatmul.f32.gmra.mxu0 %v1956
  %v2297 = vpop.f32.mrf.mxu0
  %v2298 = vadd.f32 %v2269, %v2297
  %2299 = vmatmul.f32.gmra.mxu0 %v1958
  %v2300 = vpop.f32.mrf.mxu0
  %v2301 = vadd.f32 %v2272, %v2300
  %2302 = vmatmul.f32.gmra.mxu0 %v1968
  %v2303 = vpop.f32.mrf.mxu0
  %v2304 = vadd.f32 %v2275, %v2303
  %2305 = vmatmul.f32.gmra.mxu0 %v1970
  %v2306 = vpop.f32.mrf.mxu0
  %v2307 = vadd.f32 %v2278, %v2306
  %2308 = vdwg.mxu0
  %2309 = vmatpush.msra.mxu0 %v2038
  %2310 = vmatpush.msra.mxu0 %v2037
  %2311 = vmatpush.msra.mxu0 %v2036
  %2312 = vmatpush.msra.mxu0 %v2035
  %2313 = vmatpush.msra.mxu0 %v2034
  %2314 = vmatpush.msra.mxu0 %v2033
  %2315 = vmatpush.msra.mxu0 %v2032
  %2316 = vmatpush.msra.mxu0 %v2031
  %2317 = vmatpush.msra.mxu0 %v2030
  %2318 = vmatpush.msra.mxu0 %v2029
  %2319 = vmatpush.msra.mxu0 %v2028
  %2320 = vmatpush.msra.mxu0 %v2027
  %2321 = vmatpush.msra.mxu0 %v2026
  %2322 = vmatpush.msra.mxu0 %v2025
  %2323 = vmatpush.msra.mxu0 %v2024
  %2324 = vmatpush.msra.mxu0 %v2023
  %2325 = vmatmul.f32.gmra.mxu0 %v1957
  %v2326 = vpop.f32.mrf.mxu0
  %v2327 = vadd.f32 %v2298, %v2326
  %2328 = vmatmul.f32.gmra.mxu0 %v1959
  %v2329 = vpop.f32.mrf.mxu0
  %v2330 = vadd.f32 %v2301, %v2329
  %2331 = vmatmul.f32.gmra.mxu0 %v1969
  %v2332 = vpop.f32.mrf.mxu0
  %v2333 = vadd.f32 %v2304, %v2332
  %2334 = vmatmul.f32.gmra.mxu0 %v1971
  %v2335 = vpop.f32.mrf.mxu0
  %v2336 = vadd.f32 %v2307, %v2335
  %2337 = vdwg.mxu0
  %2338 = vmatpush.msra.mxu0 %v2054
  %2339 = vmatpush.msra.mxu0 %v2053
  %2340 = vmatpush.msra.mxu0 %v2052
  %2341 = vmatpush.msra.mxu0 %v2051
  %2342 = vmatpush.msra.mxu0 %v2050
  %2343 = vmatpush.msra.mxu0 %v2049
  %2344 = vmatpush.msra.mxu0 %v2048
  %2345 = vmatpush.msra.mxu0 %v2047
  %2346 = vmatpush.msra.mxu0 %v2046
  %2347 = vmatpush.msra.mxu0 %v2045
  %2348 = vmatpush.msra.mxu0 %v2044
  %2349 = vmatpush.msra.mxu0 %v2043
  %2350 = vmatpush.msra.mxu0 %v2042
  %2351 = vmatpush.msra.mxu0 %v2041
  %2352 = vmatpush.msra.mxu0 %v2040
  %2353 = vmatpush.msra.mxu0 %v2039
  %2354 = vmatmul.f32.gmra.mxu0 %v1958
  %v2355 = vpop.f32.mrf.mxu0
  %v2356 = vadd.f32 %v2327, %v2355
  %2357 = vmatmul.f32.gmra.mxu0 %v1960
  %v2358 = vpop.f32.mrf.mxu0
  %v2359 = vadd.f32 %v2330, %v2358
  %2360 = vmatmul.f32.gmra.mxu0 %v1970
  %v2361 = vpop.f32.mrf.mxu0
  %v2362 = vadd.f32 %v2333, %v2361
  %2363 = vmatmul.f32.gmra.mxu0 %v1972
  %v2364 = vpop.f32.mrf.mxu0
  %v2365 = vadd.f32 %v2336, %v2364
  %2366 = vdwg.mxu0
  %2367 = vmatpush.msra.mxu0 %v2070
  %2368 = vmatpush.msra.mxu0 %v2069
  %2369 = vmatpush.msra.mxu0 %v2068
  %2370 = vmatpush.msra.mxu0 %v2067
  %2371 = vmatpush.msra.mxu0 %v2066
  %2372 = vmatpush.msra.mxu0 %v2065
  %2373 = vmatpush.msra.mxu0 %v2064
  %2374 = vmatpush.msra.mxu0 %v2063
  %2375 = vmatpush.msra.mxu0 %v2062
  %2376 = vmatpush.msra.mxu0 %v2061
  %2377 = vmatpush.msra.mxu0 %v2060
  %2378 = vmatpush.msra.mxu0 %v2059
  %2379 = vmatpush.msra.mxu0 %v2058
  %2380 = vmatpush.msra.mxu0 %v2057
  %2381 = vmatpush.msra.mxu0 %v2056
  %2382 = vmatpush.msra.mxu0 %v2055
  %2383 = vmatmul.f32.gmra.mxu0 %v1961
  %v2384 = vpop.f32.mrf.mxu0
  %v2385 = vadd.f32 %v2356, %v2384
  %2386 = vmatmul.f32.gmra.mxu0 %v1963
  %v2387 = vpop.f32.mrf.mxu0
  %v2388 = vadd.f32 %v2359, %v2387
  %2389 = vmatmul.f32.gmra.mxu0 %v1973
  %v2390 = vpop.f32.mrf.mxu0
  %v2391 = vadd.f32 %v2362, %v2390
  %2392 = vmatmul.f32.gmra.mxu0 %v1975
  %v2393 = vpop.f32.mrf.mxu0
  %v2394 = vadd.f32 %v2365, %v2393
  %2395 = vdwg.mxu0
  %2396 = vmatpush.msra.mxu0 %v2086
  %2397 = vmatpush.msra.mxu0 %v2085
  %2398 = vmatpush.msra.mxu0 %v2084
  %2399 = vmatpush.msra.mxu0 %v2083
  %2400 = vmatpush.msra.mxu0 %v2082
  %2401 = vmatpush.msra.mxu0 %v2081
  %2402 = vmatpush.msra.mxu0 %v2080
  %2403 = vmatpush.msra.mxu0 %v2079
  %2404 = vmatpush.msra.mxu0 %v2078
  %2405 = vmatpush.msra.mxu0 %v2077
  %2406 = vmatpush.msra.mxu0 %v2076
  %2407 = vmatpush.msra.mxu0 %v2075
  %2408 = vmatpush.msra.mxu0 %v2074
  %2409 = vmatpush.msra.mxu0 %v2073
  %2410 = vmatpush.msra.mxu0 %v2072
  %2411 = vmatpush.msra.mxu0 %v2071
  %2412 = vmatmul.f32.gmra.mxu0 %v1962
  %v2413 = vpop.f32.mrf.mxu0
  %v2414 = vadd.f32 %v2385, %v2413
  %2415 = vmatmul.f32.gmra.mxu0 %v1964
  %v2416 = vpop.f32.mrf.mxu0
  %v2417 = vadd.f32 %v2388, %v2416
  %2418 = vmatmul.f32.gmra.mxu0 %v1974
  %v2419 = vpop.f32.mrf.mxu0
  %v2420 = vadd.f32 %v2391, %v2419
  %2421 = vmatmul.f32.gmra.mxu0 %v1976
  %v2422 = vpop.f32.mrf.mxu0
  %v2423 = vadd.f32 %v2394, %v2422
  %2424 = vdwg.mxu0
  %2425 = vmatpush.msra.mxu0 %v2102
  %2426 = vmatpush.msra.mxu0 %v2101
  %2427 = vmatpush.msra.mxu0 %v2100
  %2428 = vmatpush.msra.mxu0 %v2099
  %2429 = vmatpush.msra.mxu0 %v2098
  %2430 = vmatpush.msra.mxu0 %v2097
  %2431 = vmatpush.msra.mxu0 %v2096
  %2432 = vmatpush.msra.mxu0 %v2095
  %2433 = vmatpush.msra.mxu0 %v2094
  %2434 = vmatpush.msra.mxu0 %v2093
  %2435 = vmatpush.msra.mxu0 %v2092
  %2436 = vmatpush.msra.mxu0 %v2091
  %2437 = vmatpush.msra.mxu0 %v2090
  %2438 = vmatpush.msra.mxu0 %v2089
  %2439 = vmatpush.msra.mxu0 %v2088
  %2440 = vmatpush.msra.mxu0 %v2087
  %2441 = vmatmul.f32.gmra.mxu0 %v1963
  %v2442 = vpop.f32.mrf.mxu0
  %v2443 = vadd.f32 %v2414, %v2442
  %2444 = vmatmul.f32.gmra.mxu0 %v1965
  %v2445 = vpop.f32.mrf.mxu0
  %v2446 = vadd.f32 %v2417, %v2445
  %2447 = vmatmul.f32.gmra.mxu0 %v1975
  %v2448 = vpop.f32.mrf.mxu0
  %v2449 = vadd.f32 %v2420, %v2448
  %2450 = vmatmul.f32.gmra.mxu0 %v1977
  %v2451 = vpop.f32.mrf.mxu0
  %v2452 = vadd.f32 %v2423, %v2451
  %2453 = vdwg.mxu0
  %2454 = vmatpush.msra.mxu0 %v2118
  %2455 = vmatpush.msra.mxu0 %v2117
  %2456 = vmatpush.msra.mxu0 %v2116
  %2457 = vmatpush.msra.mxu0 %v2115
  %2458 = vmatpush.msra.mxu0 %v2114
  %2459 = vmatpush.msra.mxu0 %v2113
  %2460 = vmatpush.msra.mxu0 %v2112
  %2461 = vmatpush.msra.mxu0 %v2111
  %2462 = vmatpush.msra.mxu0 %v2110
  %2463 = vmatpush.msra.mxu0 %v2109
  %2464 = vmatpush.msra.mxu0 %v2108
  %2465 = vmatpush.msra.mxu0 %v2107
  %2466 = vmatpush.msra.mxu0 %v2106
  %2467 = vmatpush.msra.mxu0 %v2105
  %2468 = vmatpush.msra.mxu0 %v2104
  %2469 = vmatpush.msra.mxu0 %v2103
  %2470 = vmatmul.f32.gmra.mxu0 %v1964
  %v2471 = vpop.f32.mrf.mxu0
  %v2472 = vadd.f32 %v2443, %v2471
  %2473 = vmatmul.f32.gmra.mxu0 %v1966
  %v2474 = vpop.f32.mrf.mxu0
  %v2475 = vadd.f32 %v2446, %v2474
  %2476 = vmatmul.f32.gmra.mxu0 %v1976
  %v2477 = vpop.f32.mrf.mxu0
  %v2478 = vadd.f32 %v2449, %v2477
  %2479 = vmatmul.f32.gmra.mxu0 %v1978
  %v2480 = vpop.f32.mrf.mxu0
  %v2481 = vadd.f32 %v2452, %v2480
  %2482 = vdwg.mxu0
  %2483 = vmatpush.msra.mxu0 %v2134
  %2484 = vmatpush.msra.mxu0 %v2133
  %2485 = vmatpush.msra.mxu0 %v2132
  %2486 = vmatpush.msra.mxu0 %v2131
  %2487 = vmatpush.msra.mxu0 %v2130
  %2488 = vmatpush.msra.mxu0 %v2129
  %2489 = vmatpush.msra.mxu0 %v2128
  %2490 = vmatpush.msra.mxu0 %v2127
  %2491 = vmatpush.msra.mxu0 %v2126
  %2492 = vmatpush.msra.mxu0 %v2125
  %2493 = vmatpush.msra.mxu0 %v2124
  %2494 = vmatpush.msra.mxu0 %v2123
  %2495 = vmatpush.msra.mxu0 %v2122
  %2496 = vmatpush.msra.mxu0 %v2121
  %2497 = vmatpush.msra.mxu0 %v2120
  %2498 = vmatpush.msra.mxu0 %v2119
  %2499 = vmatmul.f32.gmra.mxu0 %v1967
  %v2500 = vpop.f32.mrf.mxu0
  %v2501 = vadd.f32 %v2472, %v2500
  %2502 = vmatmul.f32.gmra.mxu0 %v1969
  %v2503 = vpop.f32.mrf.mxu0
  %v2504 = vadd.f32 %v2475, %v2503
  %2505 = vmatmul.f32.gmra.mxu0 %v1979
  %v2506 = vpop.f32.mrf.mxu0
  %v2507 = vadd.f32 %v2478, %v2506
  %2508 = vmatmul.f32.gmra.mxu0 %v1981
  %v2509 = vpop.f32.mrf.mxu0
  %v2510 = vadd.f32 %v2481, %v2509
  %2511 = vdwg.mxu0
  %2512 = vmatpush.msra.mxu0 %v2150
  %2513 = vmatpush.msra.mxu0 %v2149
  %2514 = vmatpush.msra.mxu0 %v2148
  %2515 = vmatpush.msra.mxu0 %v2147
  %2516 = vmatpush.msra.mxu0 %v2146
  %2517 = vmatpush.msra.mxu0 %v2145
  %2518 = vmatpush.msra.mxu0 %v2144
  %2519 = vmatpush.msra.mxu0 %v2143
  %2520 = vmatpush.msra.mxu0 %v2142
  %2521 = vmatpush.msra.mxu0 %v2141
  %2522 = vmatpush.msra.mxu0 %v2140
  %2523 = vmatpush.msra.mxu0 %v2139
  %2524 = vmatpush.msra.mxu0 %v2138
  %2525 = vmatpush.msra.mxu0 %v2137
  %2526 = vmatpush.msra.mxu0 %v2136
  %2527 = vmatpush.msra.mxu0 %v2135
  %2528 = vmatmul.f32.gmra.mxu0 %v1968
  %v2529 = vpop.f32.mrf.mxu0
  %v2530 = vadd.f32 %v2501, %v2529
  %2531 = vmatmul.f32.gmra.mxu0 %v1970
  %v2532 = vpop.f32.mrf.mxu0
  %v2533 = vadd.f32 %v2504, %v2532
  %2534 = vmatmul.f32.gmra.mxu0 %v1980
  %v2535 = vpop.f32.mrf.mxu0
  %v2536 = vadd.f32 %v2507, %v2535
  %2537 = vmatmul.f32.gmra.mxu0 %v1982
  %v2538 = vpop.f32.mrf.mxu0
  %v2539 = vadd.f32 %v2510, %v2538
  %2540 = vdwg.mxu0
  %2541 = vmatpush.msra.mxu0 %v2166
  %2542 = vmatpush.msra.mxu0 %v2165
  %2543 = vmatpush.msra.mxu0 %v2164
  %2544 = vmatpush.msra.mxu0 %v2163
  %2545 = vmatpush.msra.mxu0 %v2162
  %2546 = vmatpush.msra.mxu0 %v2161
  %2547 = vmatpush.msra.mxu0 %v2160
  %2548 = vmatpush.msra.mxu0 %v2159
  %2549 = vmatpush.msra.mxu0 %v2158
  %2550 = vmatpush.msra.mxu0 %v2157
  %2551 = vmatpush.msra.mxu0 %v2156
  %2552 = vmatpush.msra.mxu0 %v2155
  %2553 = vmatpush.msra.mxu0 %v2154
  %2554 = vmatpush.msra.mxu0 %v2153
  %2555 = vmatpush.msra.mxu0 %v2152
  %2556 = vmatpush.msra.mxu0 %v2151
  %2557 = vmatmul.f32.gmra.mxu0 %v1969
  %v2558 = vpop.f32.mrf.mxu0
  %v2559 = vadd.f32 %v2530, %v2558
  %2560 = vmatmul.f32.gmra.mxu0 %v1971
  %v2561 = vpop.f32.mrf.mxu0
  %v2562 = vadd.f32 %v2533, %v2561
  %2563 = vmatmul.f32.gmra.mxu0 %v1981
  %v2564 = vpop.f32.mrf.mxu0
  %v2565 = vadd.f32 %v2536, %v2564
  %2566 = vmatmul.f32.gmra.mxu0 %v1983
  %v2567 = vpop.f32.mrf.mxu0
  %v2568 = vadd.f32 %v2539, %v2567
  %2569 = vdwg.mxu0
  %2570 = vmatpush.msra.mxu0 %v2182
  %2571 = vmatpush.msra.mxu0 %v2181
  %2572 = vmatpush.msra.mxu0 %v2180
  %2573 = vmatpush.msra.mxu0 %v2179
  %2574 = vmatpush.msra.mxu0 %v2178
  %2575 = vmatpush.msra.mxu0 %v2177
  %2576 = vmatpush.msra.mxu0 %v2176
  %2577 = vmatpush.msra.mxu0 %v2175
  %2578 = vmatpush.msra.mxu0 %v2174
  %2579 = vmatpush.msra.mxu0 %v2173
  %2580 = vmatpush.msra.mxu0 %v2172
  %2581 = vmatpush.msra.mxu0 %v2171
  %2582 = vmatpush.msra.mxu0 %v2170
  %2583 = vmatpush.msra.mxu0 %v2169
  %2584 = vmatpush.msra.mxu0 %v2168
  %2585 = vmatpush.msra.mxu0 %v2167
  %2586 = vmatmul.f32.gmra.mxu0 %v1970
  %v2587 = vpop.f32.mrf.mxu0
  %v2588 = vadd.f32 %v2559, %v2587
  %2589 = vmatmul.f32.gmra.mxu0 %v1972
  %v2590 = vpop.f32.mrf.mxu0
  %v2591 = vadd.f32 %v2562, %v2590
  %2592 = vmatmul.f32.gmra.mxu0 %v1982
  %v2593 = vpop.f32.mrf.mxu0
  %v2594 = vadd.f32 %v2565, %v2593
  %2595 = vmatmul.f32.gmra.mxu0 %v1984
  %v2596 = vpop.f32.mrf.mxu0
  %v2597 = vadd.f32 %v2568, %v2596
  %2598 = vdwg.mxu0
  %2599 = vmatpush.msra.mxu0 %v2198
  %2600 = vmatpush.msra.mxu0 %v2197
  %2601 = vmatpush.msra.mxu0 %v2196
  %2602 = vmatpush.msra.mxu0 %v2195
  %2603 = vmatpush.msra.mxu0 %v2194
  %2604 = vmatpush.msra.mxu0 %v2193
  %2605 = vmatpush.msra.mxu0 %v2192
  %2606 = vmatpush.msra.mxu0 %v2191
  %2607 = vmatpush.msra.mxu0 %v2190
  %2608 = vmatpush.msra.mxu0 %v2189
  %2609 = vmatpush.msra.mxu0 %v2188
  %2610 = vmatpush.msra.mxu0 %v2187
  %2611 = vmatpush.msra.mxu0 %v2186
  %2612 = vmatpush.msra.mxu0 %v2185
  %2613 = vmatpush.msra.mxu0 %v2184
  %2614 = vmatpush.msra.mxu0 %v2183
  %2615 = vmatmul.f32.gmra.mxu0 %v1973
  %v2616 = vpop.f32.mrf.mxu0
  %v2617 = vadd.f32 %v2588, %v2616
  %2618 = vmatmul.f32.gmra.mxu0 %v1975
  %v2619 = vpop.f32.mrf.mxu0
  %v2620 = vadd.f32 %v2591, %v2619
  %2621 = vmatmul.f32.gmra.mxu0 %v1985
  %v2622 = vpop.f32.mrf.mxu0
  %v2623 = vadd.f32 %v2594, %v2622
  %2624 = vmatmul.f32.gmra.mxu0 %v1987
  %v2625 = vpop.f32.mrf.mxu0
  %v2626 = vadd.f32 %v2597, %v2625
  %2627 = vdwg.mxu0
  %2628 = vmatpush.msra.mxu0 %v2214
  %2629 = vmatpush.msra.mxu0 %v2213
  %2630 = vmatpush.msra.mxu0 %v2212
  %2631 = vmatpush.msra.mxu0 %v2211
  %2632 = vmatpush.msra.mxu0 %v2210
  %2633 = vmatpush.msra.mxu0 %v2209
  %2634 = vmatpush.msra.mxu0 %v2208
  %2635 = vmatpush.msra.mxu0 %v2207
  %2636 = vmatpush.msra.mxu0 %v2206
  %2637 = vmatpush.msra.mxu0 %v2205
  %2638 = vmatpush.msra.mxu0 %v2204
  %2639 = vmatpush.msra.mxu0 %v2203
  %2640 = vmatpush.msra.mxu0 %v2202
  %2641 = vmatpush.msra.mxu0 %v2201
  %2642 = vmatpush.msra.mxu0 %v2200
  %2643 = vmatpush.msra.mxu0 %v2199
  %2644 = vmatmul.f32.gmra.mxu0 %v1974
  %v2645 = vpop.f32.mrf.mxu0
  %v2646 = vadd.f32 %v2617, %v2645
  %2647 = vmatmul.f32.gmra.mxu0 %v1976
  %v2648 = vpop.f32.mrf.mxu0
  %v2649 = vadd.f32 %v2620, %v2648
  %2650 = vmatmul.f32.gmra.mxu0 %v1986
  %v2651 = vpop.f32.mrf.mxu0
  %v2652 = vadd.f32 %v2623, %v2651
  %2653 = vmatmul.f32.gmra.mxu0 %v1988
  %v2654 = vpop.f32.mrf.mxu0
  %v2655 = vadd.f32 %v2626, %v2654
  %2656 = vdwg.mxu0
  %2657 = vmatpush.msra.mxu0 %v2230
  %2658 = vmatpush.msra.mxu0 %v2229
  %2659 = vmatpush.msra.mxu0 %v2228
  %2660 = vmatpush.msra.mxu0 %v2227
  %2661 = vmatpush.msra.mxu0 %v2226
  %2662 = vmatpush.msra.mxu0 %v2225
  %2663 = vmatpush.msra.mxu0 %v2224
  %2664 = vmatpush.msra.mxu0 %v2223
  %2665 = vmatpush.msra.mxu0 %v2222
  %2666 = vmatpush.msra.mxu0 %v2221
  %2667 = vmatpush.msra.mxu0 %v2220
  %2668 = vmatpush.msra.mxu0 %v2219
  %2669 = vmatpush.msra.mxu0 %v2218
  %2670 = vmatpush.msra.mxu0 %v2217
  %2671 = vmatpush.msra.mxu0 %v2216
  %2672 = vmatpush.msra.mxu0 %v2215
  %2673 = vmatmul.f32.gmra.mxu0 %v1975
  %v2674 = vpop.f32.mrf.mxu0
  %v2675 = vadd.f32 %v2646, %v2674
  %2676 = vmatmul.f32.gmra.mxu0 %v1977
  %v2677 = vpop.f32.mrf.mxu0
  %v2678 = vadd.f32 %v2649, %v2677
  %2679 = vmatmul.f32.gmra.mxu0 %v1987
  %v2680 = vpop.f32.mrf.mxu0
  %v2681 = vadd.f32 %v2652, %v2680
  %2682 = vmatmul.f32.gmra.mxu0 %v1989
  %v2683 = vpop.f32.mrf.mxu0
  %v2684 = vadd.f32 %v2655, %v2683
  %2685 = vdwg.mxu0
  %2686 = vmatpush.msra.mxu0 %v2246
  %2687 = vmatpush.msra.mxu0 %v2245
  %2688 = vmatpush.msra.mxu0 %v2244
  %2689 = vmatpush.msra.mxu0 %v2243
  %2690 = vmatpush.msra.mxu0 %v2242
  %2691 = vmatpush.msra.mxu0 %v2241
  %2692 = vmatpush.msra.mxu0 %v2240
  %2693 = vmatpush.msra.mxu0 %v2239
  %2694 = vmatpush.msra.mxu0 %v2238
  %2695 = vmatpush.msra.mxu0 %v2237
  %2696 = vmatpush.msra.mxu0 %v2236
  %2697 = vmatpush.msra.mxu0 %v2235
  %2698 = vmatpush.msra.mxu0 %v2234
  %2699 = vmatpush.msra.mxu0 %v2233
  %2700 = vmatpush.msra.mxu0 %v2232
  %2701 = vmatpush.msra.mxu0 %v2231
  %2702 = vmatmul.f32.gmra.mxu0 %v1976
  %v2703 = vpop.f32.mrf.mxu0
  %v2704 = vadd.f32 %v2675, %v2703
  %2705 = vmatmul.f32.gmra.mxu0 %v1978
  %v2706 = vpop.f32.mrf.mxu0
  %v2707 = vadd.f32 %v2678, %v2706
  %2708 = vmatmul.f32.gmra.mxu0 %v1988
  %v2709 = vpop.f32.mrf.mxu0
  %v2710 = vadd.f32 %v2681, %v2709
  %2711 = vmatmul.f32.gmra.mxu0 %v1990
  %v2712 = vpop.f32.mrf.mxu0
  %v2713 = vadd.f32 %v2684, %v2712
  %2714 = vdwg.mxu0
  %v2715 = vmax.f32 %v2704, 0.0
  %v2716 = vmax.f32 %v2707, 0.0
  %v2717 = vmax.f32 %v2710, 0.0
  %v2718 = vmax.f32 %v2713, 0.0
  %2719 = vst [vmem:[#allocation4] sm:$0xff] 0.0
  %2720 = vst [vmem:[#allocation4 + $0x8] sm:$0xff] 0.0
  %2721 = vst [vmem:[#allocation4 + $0x10] sm:$0xff] 0.0
  %2722 = vst [vmem:[#allocation4 + $0x18] sm:$0xff] 0.0
  %s2723 = scalar_lea.vmem [#allocation4], 96
  %2724 = vst [vmem:[%s2723] sm:$0xff] 0.0
  %2725 = vst [vmem:[%s2723 + $0x8] sm:$0xff] 0.0
  %2726 = vst [vmem:[%s2723 + $0x10] sm:$0xff] 0.0
  %2727 = vst [vmem:[%s2723 + $0x18] sm:$0xff] 0.0
  %s2728 = scalar_lea.vmem [#allocation4], 32
  %2729 = vst [vmem:[%s2728] sm:$0xff] 0.0
  %2730 = vst [vmem:[%s2728 + $0x20] sm:$0xff] 0.0
  %s2731 = scalar_lea.vmem [#allocation4], 56
  %2732 = vst [vmem:[%s2731] sm:$0xff] 0.0
  %2733 = vst [vmem:[%s2731 + $0x20] sm:$0xff] 0.0
  %s2734 = scalar_lea.vmem [#allocation4], 40
  %2735 = vst [vmem:[%s2734] sm:$0xff] %v2715
  %2736 = vst [vmem:[%s2734 + $0x8] sm:$0xff] %v2716
  %2737 = vst [vmem:[%s2734 + $0x20] sm:$0xff] %v2717
  %2738 = vst [vmem:[%s2734 + $0x28] sm:$0xff] %v2718
  %v2739 = vld [vmem:[#allocation4] sm:$0xff]
  %v2740 = vld [vmem:[#allocation4 + $0x8] sm:$0xff]
  %v2741 = vld [vmem:[#allocation4 + $0x10] sm:$0xff]
  %v2742 = vld [vmem:[#allocation4 + $0x18] sm:$0xff]
  %v2743 = vld [vmem:[#allocation4 + $0x20] sm:$0xff]
  %v2744 = vld [vmem:[#allocation4 + $0x28] sm:$0xff]
  %v2745 = vld [vmem:[#allocation4 + $0x30] sm:$0xff]
  %v2746 = vld [vmem:[#allocation4 + $0x38] sm:$0xff]
  %v2747 = vld [vmem:[#allocation4 + $0x40] sm:$0xff]
  %v2748 = vld [vmem:[#allocation4 + $0x48] sm:$0xff]
  %v2749 = vld [vmem:[#allocation4 + $0x50] sm:$0xff]
  %v2750 = vld [vmem:[#allocation4 + $0x58] sm:$0xff]
  %v2751 = vld [vmem:[#allocation4 + $0x60] sm:$0xff]
  %v2752 = vld [vmem:[#allocation4 + $0x68] sm:$0xff]
  %v2753 = vld [vmem:[#allocation4 + $0x70] sm:$0xff]
  %v2754 = vld [vmem:[#allocation4 + $0x78] sm:$0xff]
  %v2755 = vld [vmem:[%s7] sm:$0xff]
  %v2756 = vld [vmem:[%s7 + $0x8] sm:$0xff]
  %v2757 = vld [vmem:[%s7 + $0x10] sm:$0xff]
  %v2758 = vld [vmem:[%s7 + $0x18] sm:$0xff]
  %v2759 = vld [vmem:[%s7 + $0x20] sm:$0xff]
  %v2760 = vld [vmem:[%s7 + $0x28] sm:$0xff]
  %v2761 = vld [vmem:[%s7 + $0x30] sm:$0xff]
  %v2762 = vld [vmem:[%s7 + $0x38] sm:$0xff]
  %v2763 = vld [vmem:[%s7 + $0x40] sm:$0xff]
  %v2764 = vld [vmem:[%s7 + $0x48] sm:$0xff]
  %v2765 = vld [vmem:[%s7 + $0x50] sm:$0xff]
  %v2766 = vld [vmem:[%s7 + $0x58] sm:$0xff]
  %v2767 = vld [vmem:[%s7 + $0x60] sm:$0xff]
  %v2768 = vld [vmem:[%s7 + $0x68] sm:$0xff]
  %v2769 = vld [vmem:[%s7 + $0x70] sm:$0xff]
  %v2770 = vld [vmem:[%s7 + $0x78] sm:$0xff]
  %v2771 = vld [vmem:[%s7 + $0x80] sm:$0xff]
  %v2772 = vld [vmem:[%s7 + $0x88] sm:$0xff]
  %v2773 = vld [vmem:[%s7 + $0x90] sm:$0xff]
  %v2774 = vld [vmem:[%s7 + $0x98] sm:$0xff]
  %v2775 = vld [vmem:[%s7 + $0xa0] sm:$0xff]
  %v2776 = vld [vmem:[%s7 + $0xa8] sm:$0xff]
  %v2777 = vld [vmem:[%s7 + $0xb0] sm:$0xff]
  %v2778 = vld [vmem:[%s7 + $0xb8] sm:$0xff]
  %v2779 = vld [vmem:[%s7 + $0xc0] sm:$0xff]
  %v2780 = vld [vmem:[%s7 + $0xc8] sm:$0xff]
  %v2781 = vld [vmem:[%s7 + $0xd0] sm:$0xff]
  %v2782 = vld [vmem:[%s7 + $0xd8] sm:$0xff]
  %v2783 = vld [vmem:[%s7 + $0xe0] sm:$0xff]
  %v2784 = vld [vmem:[%s7 + $0xe8] sm:$0xff]
  %v2785 = vld [vmem:[%s7 + $0xf0] sm:$0xff]
  %v2786 = vld [vmem:[%s7 + $0xf8] sm:$0xff]
  %v2787 = vld [vmem:[%s7 + $0x100] sm:$0xff]
  %v2788 = vld [vmem:[%s7 + $0x108] sm:$0xff]
  %v2789 = vld [vmem:[%s7 + $0x110] sm:$0xff]
  %v2790 = vld [vmem:[%s7 + $0x118] sm:$0xff]
  %v2791 = vld [vmem:[%s7 + $0x120] sm:$0xff]
  %v2792 = vld [vmem:[%s7 + $0x128] sm:$0xff]
  %v2793 = vld [vmem:[%s7 + $0x130] sm:$0xff]
  %v2794 = vld [vmem:[%s7 + $0x138] sm:$0xff]
  %v2795 = vld [vmem:[%s7 + $0x140] sm:$0xff]
  %v2796 = vld [vmem:[%s7 + $0x148] sm:$0xff]
  %v2797 = vld [vmem:[%s7 + $0x150] sm:$0xff]
  %v2798 = vld [vmem:[%s7 + $0x158] sm:$0xff]
  %v2799 = vld [vmem:[%s7 + $0x160] sm:$0xff]
  %v2800 = vld [vmem:[%s7 + $0x168] sm:$0xff]
  %v2801 = vld [vmem:[%s7 + $0x170] sm:$0xff]
  %v2802 = vld [vmem:[%s7 + $0x178] sm:$0xff]
  %v2803 = vld [vmem:[%s7 + $0x180] sm:$0xff]
  %v2804 = vld [vmem:[%s7 + $0x188] sm:$0xff]
  %v2805 = vld [vmem:[%s7 + $0x190] sm:$0xff]
  %v2806 = vld [vmem:[%s7 + $0x198] sm:$0xff]
  %v2807 = vld [vmem:[%s7 + $0x1a0] sm:$0xff]
  %v2808 = vld [vmem:[%s7 + $0x1a8] sm:$0xff]
  %v2809 = vld [vmem:[%s7 + $0x1b0] sm:$0xff]
  %v2810 = vld [vmem:[%s7 + $0x1b8] sm:$0xff]
  %v2811 = vld [vmem:[%s7 + $0x1c0] sm:$0xff]
  %v2812 = vld [vmem:[%s7 + $0x1c8] sm:$0xff]
  %v2813 = vld [vmem:[%s7 + $0x1d0] sm:$0xff]
  %v2814 = vld [vmem:[%s7 + $0x1d8] sm:$0xff]
  %v2815 = vld [vmem:[%s7 + $0x1e0] sm:$0xff]
  %v2816 = vld [vmem:[%s7 + $0x1e8] sm:$0xff]
  %v2817 = vld [vmem:[%s7 + $0x1f0] sm:$0xff]
  %v2818 = vld [vmem:[%s7 + $0x1f8] sm:$0xff]
  %v2819 = vld [vmem:[%s7 + $0x200] sm:$0xff]
  %v2820 = vld [vmem:[%s7 + $0x208] sm:$0xff]
  %v2821 = vld [vmem:[%s7 + $0x210] sm:$0xff]
  %v2822 = vld [vmem:[%s7 + $0x218] sm:$0xff]
  %v2823 = vld [vmem:[%s7 + $0x220] sm:$0xff]
  %v2824 = vld [vmem:[%s7 + $0x228] sm:$0xff]
  %v2825 = vld [vmem:[%s7 + $0x230] sm:$0xff]
  %v2826 = vld [vmem:[%s7 + $0x238] sm:$0xff]
  %v2827 = vld [vmem:[%s7 + $0x240] sm:$0xff]
  %v2828 = vld [vmem:[%s7 + $0x248] sm:$0xff]
  %v2829 = vld [vmem:[%s7 + $0x250] sm:$0xff]
  %v2830 = vld [vmem:[%s7 + $0x258] sm:$0xff]
  %v2831 = vld [vmem:[%s7 + $0x260] sm:$0xff]
  %v2832 = vld [vmem:[%s7 + $0x268] sm:$0xff]
  %v2833 = vld [vmem:[%s7 + $0x270] sm:$0xff]
  %v2834 = vld [vmem:[%s7 + $0x278] sm:$0xff]
  %v2835 = vld [vmem:[%s7 + $0x280] sm:$0xff]
  %v2836 = vld [vmem:[%s7 + $0x288] sm:$0xff]
  %v2837 = vld [vmem:[%s7 + $0x290] sm:$0xff]
  %v2838 = vld [vmem:[%s7 + $0x298] sm:$0xff]
  %v2839 = vld [vmem:[%s7 + $0x2a0] sm:$0xff]
  %v2840 = vld [vmem:[%s7 + $0x2a8] sm:$0xff]
  %v2841 = vld [vmem:[%s7 + $0x2b0] sm:$0xff]
  %v2842 = vld [vmem:[%s7 + $0x2b8] sm:$0xff]
  %v2843 = vld [vmem:[%s7 + $0x2c0] sm:$0xff]
  %v2844 = vld [vmem:[%s7 + $0x2c8] sm:$0xff]
  %v2845 = vld [vmem:[%s7 + $0x2d0] sm:$0xff]
  %v2846 = vld [vmem:[%s7 + $0x2d8] sm:$0xff]
  %v2847 = vld [vmem:[%s7 + $0x2e0] sm:$0xff]
  %v2848 = vld [vmem:[%s7 + $0x2e8] sm:$0xff]
  %v2849 = vld [vmem:[%s7 + $0x2f0] sm:$0xff]
  %v2850 = vld [vmem:[%s7 + $0x2f8] sm:$0xff]
  %v2851 = vld [vmem:[%s7 + $0x300] sm:$0xff]
  %v2852 = vld [vmem:[%s7 + $0x308] sm:$0xff]
  %v2853 = vld [vmem:[%s7 + $0x310] sm:$0xff]
  %v2854 = vld [vmem:[%s7 + $0x318] sm:$0xff]
  %v2855 = vld [vmem:[%s7 + $0x320] sm:$0xff]
  %v2856 = vld [vmem:[%s7 + $0x328] sm:$0xff]
  %v2857 = vld [vmem:[%s7 + $0x330] sm:$0xff]
  %v2858 = vld [vmem:[%s7 + $0x338] sm:$0xff]
  %v2859 = vld [vmem:[%s7 + $0x340] sm:$0xff]
  %v2860 = vld [vmem:[%s7 + $0x348] sm:$0xff]
  %v2861 = vld [vmem:[%s7 + $0x350] sm:$0xff]
  %v2862 = vld [vmem:[%s7 + $0x358] sm:$0xff]
  %v2863 = vld [vmem:[%s7 + $0x360] sm:$0xff]
  %v2864 = vld [vmem:[%s7 + $0x368] sm:$0xff]
  %v2865 = vld [vmem:[%s7 + $0x370] sm:$0xff]
  %v2866 = vld [vmem:[%s7 + $0x378] sm:$0xff]
  %v2867 = vld [vmem:[%s7 + $0x380] sm:$0xff]
  %v2868 = vld [vmem:[%s7 + $0x388] sm:$0xff]
  %v2869 = vld [vmem:[%s7 + $0x390] sm:$0xff]
  %v2870 = vld [vmem:[%s7 + $0x398] sm:$0xff]
  %v2871 = vld [vmem:[%s7 + $0x3a0] sm:$0xff]
  %v2872 = vld [vmem:[%s7 + $0x3a8] sm:$0xff]
  %v2873 = vld [vmem:[%s7 + $0x3b0] sm:$0xff]
  %v2874 = vld [vmem:[%s7 + $0x3b8] sm:$0xff]
  %v2875 = vld [vmem:[%s7 + $0x3c0] sm:$0xff]
  %v2876 = vld [vmem:[%s7 + $0x3c8] sm:$0xff]
  %v2877 = vld [vmem:[%s7 + $0x3d0] sm:$0xff]
  %v2878 = vld [vmem:[%s7 + $0x3d8] sm:$0xff]
  %v2879 = vld [vmem:[%s7 + $0x3e0] sm:$0xff]
  %v2880 = vld [vmem:[%s7 + $0x3e8] sm:$0xff]
  %v2881 = vld [vmem:[%s7 + $0x3f0] sm:$0xff]
  %v2882 = vld [vmem:[%s7 + $0x3f8] sm:$0xff]
  %v2883 = vld [vmem:[%s7 + $0x400] sm:$0xff]
  %v2884 = vld [vmem:[%s7 + $0x408] sm:$0xff]
  %v2885 = vld [vmem:[%s7 + $0x410] sm:$0xff]
  %v2886 = vld [vmem:[%s7 + $0x418] sm:$0xff]
  %v2887 = vld [vmem:[%s7 + $0x420] sm:$0xff]
  %v2888 = vld [vmem:[%s7 + $0x428] sm:$0xff]
  %v2889 = vld [vmem:[%s7 + $0x430] sm:$0xff]
  %v2890 = vld [vmem:[%s7 + $0x438] sm:$0xff]
  %v2891 = vld [vmem:[%s7 + $0x440] sm:$0xff]
  %v2892 = vld [vmem:[%s7 + $0x448] sm:$0xff]
  %v2893 = vld [vmem:[%s7 + $0x450] sm:$0xff]
  %v2894 = vld [vmem:[%s7 + $0x458] sm:$0xff]
  %v2895 = vld [vmem:[%s7 + $0x460] sm:$0xff]
  %v2896 = vld [vmem:[%s7 + $0x468] sm:$0xff]
  %v2897 = vld [vmem:[%s7 + $0x470] sm:$0xff]
  %v2898 = vld [vmem:[%s7 + $0x478] sm:$0xff]
  %v2899 = vld [vmem:[%s7 + $0x480] sm:$0xff]
  %v2900 = vld [vmem:[%s7 + $0x488] sm:$0xff]
  %v2901 = vld [vmem:[%s7 + $0x490] sm:$0xff]
  %v2902 = vld [vmem:[%s7 + $0x498] sm:$0xff]
  %v2903 = vld [vmem:[%s7 + $0x4a0] sm:$0xff]
  %v2904 = vld [vmem:[%s7 + $0x4a8] sm:$0xff]
  %v2905 = vld [vmem:[%s7 + $0x4b0] sm:$0xff]
  %v2906 = vld [vmem:[%s7 + $0x4b8] sm:$0xff]
  %v2907 = vld [vmem:[%s7 + $0x4c0] sm:$0xff]
  %v2908 = vld [vmem:[%s7 + $0x4c8] sm:$0xff]
  %v2909 = vld [vmem:[%s7 + $0x4d0] sm:$0xff]
  %v2910 = vld [vmem:[%s7 + $0x4d8] sm:$0xff]
  %v2911 = vld [vmem:[%s7 + $0x4e0] sm:$0xff]
  %v2912 = vld [vmem:[%s7 + $0x4e8] sm:$0xff]
  %v2913 = vld [vmem:[%s7 + $0x4f0] sm:$0xff]
  %v2914 = vld [vmem:[%s7 + $0x4f8] sm:$0xff]
  %v2915 = vld [vmem:[%s7 + $0x500] sm:$0xff]
  %v2916 = vld [vmem:[%s7 + $0x508] sm:$0xff]
  %v2917 = vld [vmem:[%s7 + $0x510] sm:$0xff]
  %v2918 = vld [vmem:[%s7 + $0x518] sm:$0xff]
  %v2919 = vld [vmem:[%s7 + $0x520] sm:$0xff]
  %v2920 = vld [vmem:[%s7 + $0x528] sm:$0xff]
  %v2921 = vld [vmem:[%s7 + $0x530] sm:$0xff]
  %v2922 = vld [vmem:[%s7 + $0x538] sm:$0xff]
  %v2923 = vld [vmem:[%s7 + $0x540] sm:$0xff]
  %v2924 = vld [vmem:[%s7 + $0x548] sm:$0xff]
  %v2925 = vld [vmem:[%s7 + $0x550] sm:$0xff]
  %v2926 = vld [vmem:[%s7 + $0x558] sm:$0xff]
  %v2927 = vld [vmem:[%s7 + $0x560] sm:$0xff]
  %v2928 = vld [vmem:[%s7 + $0x568] sm:$0xff]
  %v2929 = vld [vmem:[%s7 + $0x570] sm:$0xff]
  %v2930 = vld [vmem:[%s7 + $0x578] sm:$0xff]
  %v2931 = vld [vmem:[%s7 + $0x580] sm:$0xff]
  %v2932 = vld [vmem:[%s7 + $0x588] sm:$0xff]
  %v2933 = vld [vmem:[%s7 + $0x590] sm:$0xff]
  %v2934 = vld [vmem:[%s7 + $0x598] sm:$0xff]
  %v2935 = vld [vmem:[%s7 + $0x5a0] sm:$0xff]
  %v2936 = vld [vmem:[%s7 + $0x5a8] sm:$0xff]
  %v2937 = vld [vmem:[%s7 + $0x5b0] sm:$0xff]
  %v2938 = vld [vmem:[%s7 + $0x5b8] sm:$0xff]
  %v2939 = vld [vmem:[%s7 + $0x5c0] sm:$0xff]
  %v2940 = vld [vmem:[%s7 + $0x5c8] sm:$0xff]
  %v2941 = vld [vmem:[%s7 + $0x5d0] sm:$0xff]
  %v2942 = vld [vmem:[%s7 + $0x5d8] sm:$0xff]
  %v2943 = vld [vmem:[%s7 + $0x5e0] sm:$0xff]
  %v2944 = vld [vmem:[%s7 + $0x5e8] sm:$0xff]
  %v2945 = vld [vmem:[%s7 + $0x5f0] sm:$0xff]
  %v2946 = vld [vmem:[%s7 + $0x5f8] sm:$0xff]
  %v2947 = vld [vmem:[%s7 + $0x600] sm:$0xff]
  %v2948 = vld [vmem:[%s7 + $0x608] sm:$0xff]
  %v2949 = vld [vmem:[%s7 + $0x610] sm:$0xff]
  %v2950 = vld [vmem:[%s7 + $0x618] sm:$0xff]
  %v2951 = vld [vmem:[%s7 + $0x620] sm:$0xff]
  %v2952 = vld [vmem:[%s7 + $0x628] sm:$0xff]
  %v2953 = vld [vmem:[%s7 + $0x630] sm:$0xff]
  %v2954 = vld [vmem:[%s7 + $0x638] sm:$0xff]
  %v2955 = vld [vmem:[%s7 + $0x640] sm:$0xff]
  %v2956 = vld [vmem:[%s7 + $0x648] sm:$0xff]
  %v2957 = vld [vmem:[%s7 + $0x650] sm:$0xff]
  %v2958 = vld [vmem:[%s7 + $0x658] sm:$0xff]
  %v2959 = vld [vmem:[%s7 + $0x660] sm:$0xff]
  %v2960 = vld [vmem:[%s7 + $0x668] sm:$0xff]
  %v2961 = vld [vmem:[%s7 + $0x670] sm:$0xff]
  %v2962 = vld [vmem:[%s7 + $0x678] sm:$0xff]
  %v2963 = vld [vmem:[%s7 + $0x680] sm:$0xff]
  %v2964 = vld [vmem:[%s7 + $0x688] sm:$0xff]
  %v2965 = vld [vmem:[%s7 + $0x690] sm:$0xff]
  %v2966 = vld [vmem:[%s7 + $0x698] sm:$0xff]
  %v2967 = vld [vmem:[%s7 + $0x6a0] sm:$0xff]
  %v2968 = vld [vmem:[%s7 + $0x6a8] sm:$0xff]
  %v2969 = vld [vmem:[%s7 + $0x6b0] sm:$0xff]
  %v2970 = vld [vmem:[%s7 + $0x6b8] sm:$0xff]
  %v2971 = vld [vmem:[%s7 + $0x6c0] sm:$0xff]
  %v2972 = vld [vmem:[%s7 + $0x6c8] sm:$0xff]
  %v2973 = vld [vmem:[%s7 + $0x6d0] sm:$0xff]
  %v2974 = vld [vmem:[%s7 + $0x6d8] sm:$0xff]
  %v2975 = vld [vmem:[%s7 + $0x6e0] sm:$0xff]
  %v2976 = vld [vmem:[%s7 + $0x6e8] sm:$0xff]
  %v2977 = vld [vmem:[%s7 + $0x6f0] sm:$0xff]
  %v2978 = vld [vmem:[%s7 + $0x6f8] sm:$0xff]
  %v2979 = vld [vmem:[%s7 + $0x700] sm:$0xff]
  %v2980 = vld [vmem:[%s7 + $0x708] sm:$0xff]
  %v2981 = vld [vmem:[%s7 + $0x710] sm:$0xff]
  %v2982 = vld [vmem:[%s7 + $0x718] sm:$0xff]
  %v2983 = vld [vmem:[%s7 + $0x720] sm:$0xff]
  %v2984 = vld [vmem:[%s7 + $0x728] sm:$0xff]
  %v2985 = vld [vmem:[%s7 + $0x730] sm:$0xff]
  %v2986 = vld [vmem:[%s7 + $0x738] sm:$0xff]
  %v2987 = vld [vmem:[%s7 + $0x740] sm:$0xff]
  %v2988 = vld [vmem:[%s7 + $0x748] sm:$0xff]
  %v2989 = vld [vmem:[%s7 + $0x750] sm:$0xff]
  %v2990 = vld [vmem:[%s7 + $0x758] sm:$0xff]
  %v2991 = vld [vmem:[%s7 + $0x760] sm:$0xff]
  %v2992 = vld [vmem:[%s7 + $0x768] sm:$0xff]
  %v2993 = vld [vmem:[%s7 + $0x770] sm:$0xff]
  %v2994 = vld [vmem:[%s7 + $0x778] sm:$0xff]
  %v2995 = vld [vmem:[%s7 + $0x780] sm:$0xff]
  %v2996 = vld [vmem:[%s7 + $0x788] sm:$0xff]
  %v2997 = vld [vmem:[%s7 + $0x790] sm:$0xff]
  %v2998 = vld [vmem:[%s7 + $0x798] sm:$0xff]
  %v2999 = vld [vmem:[%s7 + $0x7a0] sm:$0xff]
  %v3000 = vld [vmem:[%s7 + $0x7a8] sm:$0xff]
  %v3001 = vld [vmem:[%s7 + $0x7b0] sm:$0xff]
  %v3002 = vld [vmem:[%s7 + $0x7b8] sm:$0xff]
  %v3003 = vld [vmem:[%s7 + $0x7c0] sm:$0xff]
  %v3004 = vld [vmem:[%s7 + $0x7c8] sm:$0xff]
  %v3005 = vld [vmem:[%s7 + $0x7d0] sm:$0xff]
  %v3006 = vld [vmem:[%s7 + $0x7d8] sm:$0xff]
  %v3007 = vld [vmem:[%s7 + $0x7e0] sm:$0xff]
  %v3008 = vld [vmem:[%s7 + $0x7e8] sm:$0xff]
  %v3009 = vld [vmem:[%s7 + $0x7f0] sm:$0xff]
  %v3010 = vld [vmem:[%s7 + $0x7f8] sm:$0xff]
  %v3011 = vld [vmem:[%s8] sm:$0x1]
  %v3013 = vperm.slane %v3011, 0
  %3015 = vmatpush.msra.mxu0 %v2770
  %3016 = vmatpush.msra.mxu0 %v2769
  %3017 = vmatpush.msra.mxu0 %v2768
  %3018 = vmatpush.msra.mxu0 %v2767
  %3019 = vmatpush.msra.mxu0 %v2766
  %3020 = vmatpush.msra.mxu0 %v2765
  %3021 = vmatpush.msra.mxu0 %v2764
  %3022 = vmatpush.msra.mxu0 %v2763
  %3023 = vmatpush.msra.mxu0 %v2762
  %3024 = vmatpush.msra.mxu0 %v2761
  %3025 = vmatpush.msra.mxu0 %v2760
  %3026 = vmatpush.msra.mxu0 %v2759
  %3027 = vmatpush.msra.mxu0 %v2758
  %3028 = vmatpush.msra.mxu0 %v2757
  %3029 = vmatpush.msra.mxu0 %v2756
  %3030 = vmatpush.msra.mxu0 %v2755
  %3031 = vmatmul.f32.gmra.mxu0 %v2739
  %v3032 = vpop.f32.mrf.mxu0
  %v3033 = vadd.f32 %v3013, %v3032
  %3034 = vdwg.mxu0
  %3035 = vmatpush.msra.mxu0 %v2786
  %3036 = vmatpush.msra.mxu0 %v2785
  %3037 = vmatpush.msra.mxu0 %v2784
  %3038 = vmatpush.msra.mxu0 %v2783
  %3039 = vmatpush.msra.mxu0 %v2782
  %3040 = vmatpush.msra.mxu0 %v2781
  %3041 = vmatpush.msra.mxu0 %v2780
  %3042 = vmatpush.msra.mxu0 %v2779
  %3043 = vmatpush.msra.mxu0 %v2778
  %3044 = vmatpush.msra.mxu0 %v2777
  %3045 = vmatpush.msra.mxu0 %v2776
  %3046 = vmatpush.msra.mxu0 %v2775
  %3047 = vmatpush.msra.mxu0 %v2774
  %3048 = vmatpush.msra.mxu0 %v2773
  %3049 = vmatpush.msra.mxu0 %v2772
  %3050 = vmatpush.msra.mxu0 %v2771
  %3051 = vmatmul.f32.gmra.mxu0 %v2740
  %v3052 = vpop.f32.mrf.mxu0
  %v3053 = vadd.f32 %v3033, %v3052
  %3054 = vdwg.mxu0
  %3055 = vmatpush.msra.mxu0 %v2802
  %3056 = vmatpush.msra.mxu0 %v2801
  %3057 = vmatpush.msra.mxu0 %v2800
  %3058 = vmatpush.msra.mxu0 %v2799
  %3059 = vmatpush.msra.mxu0 %v2798
  %3060 = vmatpush.msra.mxu0 %v2797
  %3061 = vmatpush.msra.mxu0 %v2796
  %3062 = vmatpush.msra.mxu0 %v2795
  %3063 = vmatpush.msra.mxu0 %v2794
  %3064 = vmatpush.msra.mxu0 %v2793
  %3065 = vmatpush.msra.mxu0 %v2792
  %3066 = vmatpush.msra.mxu0 %v2791
  %3067 = vmatpush.msra.mxu0 %v2790
  %3068 = vmatpush.msra.mxu0 %v2789
  %3069 = vmatpush.msra.mxu0 %v2788
  %3070 = vmatpush.msra.mxu0 %v2787
  %3071 = vmatmul.f32.gmra.mxu0 %v2741
  %v3072 = vpop.f32.mrf.mxu0
  %v3073 = vadd.f32 %v3053, %v3072
  %3074 = vdwg.mxu0
  %3075 = vmatpush.msra.mxu0 %v2818
  %3076 = vmatpush.msra.mxu0 %v2817
  %3077 = vmatpush.msra.mxu0 %v2816
  %3078 = vmatpush.msra.mxu0 %v2815
  %3079 = vmatpush.msra.mxu0 %v2814
  %3080 = vmatpush.msra.mxu0 %v2813
  %3081 = vmatpush.msra.mxu0 %v2812
  %3082 = vmatpush.msra.mxu0 %v2811
  %3083 = vmatpush.msra.mxu0 %v2810
  %3084 = vmatpush.msra.mxu0 %v2809
  %3085 = vmatpush.msra.mxu0 %v2808
  %3086 = vmatpush.msra.mxu0 %v2807
  %3087 = vmatpush.msra.mxu0 %v2806
  %3088 = vmatpush.msra.mxu0 %v2805
  %3089 = vmatpush.msra.mxu0 %v2804
  %3090 = vmatpush.msra.mxu0 %v2803
  %3091 = vmatmul.f32.gmra.mxu0 %v2742
  %v3092 = vpop.f32.mrf.mxu0
  %v3093 = vadd.f32 %v3073, %v3092
  %3094 = vdwg.mxu0
  %3095 = vmatpush.msra.mxu0 %v2834
  %3096 = vmatpush.msra.mxu0 %v2833
  %3097 = vmatpush.msra.mxu0 %v2832
  %3098 = vmatpush.msra.mxu0 %v2831
  %3099 = vmatpush.msra.mxu0 %v2830
  %3100 = vmatpush.msra.mxu0 %v2829
  %3101 = vmatpush.msra.mxu0 %v2828
  %3102 = vmatpush.msra.mxu0 %v2827
  %3103 = vmatpush.msra.mxu0 %v2826
  %3104 = vmatpush.msra.mxu0 %v2825
  %3105 = vmatpush.msra.mxu0 %v2824
  %3106 = vmatpush.msra.mxu0 %v2823
  %3107 = vmatpush.msra.mxu0 %v2822
  %3108 = vmatpush.msra.mxu0 %v2821
  %3109 = vmatpush.msra.mxu0 %v2820
  %3110 = vmatpush.msra.mxu0 %v2819
  %3111 = vmatmul.f32.gmra.mxu0 %v2743
  %v3112 = vpop.f32.mrf.mxu0
  %v3113 = vadd.f32 %v3093, %v3112
  %3114 = vdwg.mxu0
  %3115 = vmatpush.msra.mxu0 %v2850
  %3116 = vmatpush.msra.mxu0 %v2849
  %3117 = vmatpush.msra.mxu0 %v2848
  %3118 = vmatpush.msra.mxu0 %v2847
  %3119 = vmatpush.msra.mxu0 %v2846
  %3120 = vmatpush.msra.mxu0 %v2845
  %3121 = vmatpush.msra.mxu0 %v2844
  %3122 = vmatpush.msra.mxu0 %v2843
  %3123 = vmatpush.msra.mxu0 %v2842
  %3124 = vmatpush.msra.mxu0 %v2841
  %3125 = vmatpush.msra.mxu0 %v2840
  %3126 = vmatpush.msra.mxu0 %v2839
  %3127 = vmatpush.msra.mxu0 %v2838
  %3128 = vmatpush.msra.mxu0 %v2837
  %3129 = vmatpush.msra.mxu0 %v2836
  %3130 = vmatpush.msra.mxu0 %v2835
  %3131 = vmatmul.f32.gmra.mxu0 %v2744
  %v3132 = vpop.f32.mrf.mxu0
  %v3133 = vadd.f32 %v3113, %v3132
  %3134 = vdwg.mxu0
  %3135 = vmatpush.msra.mxu0 %v2866
  %3136 = vmatpush.msra.mxu0 %v2865
  %3137 = vmatpush.msra.mxu0 %v2864
  %3138 = vmatpush.msra.mxu0 %v2863
  %3139 = vmatpush.msra.mxu0 %v2862
  %3140 = vmatpush.msra.mxu0 %v2861
  %3141 = vmatpush.msra.mxu0 %v2860
  %3142 = vmatpush.msra.mxu0 %v2859
  %3143 = vmatpush.msra.mxu0 %v2858
  %3144 = vmatpush.msra.mxu0 %v2857
  %3145 = vmatpush.msra.mxu0 %v2856
  %3146 = vmatpush.msra.mxu0 %v2855
  %3147 = vmatpush.msra.mxu0 %v2854
  %3148 = vmatpush.msra.mxu0 %v2853
  %3149 = vmatpush.msra.mxu0 %v2852
  %3150 = vmatpush.msra.mxu0 %v2851
  %3151 = vmatmul.f32.gmra.mxu0 %v2745
  %v3152 = vpop.f32.mrf.mxu0
  %v3153 = vadd.f32 %v3133, %v3152
  %3154 = vdwg.mxu0
  %3155 = vmatpush.msra.mxu0 %v2882
  %3156 = vmatpush.msra.mxu0 %v2881
  %3157 = vmatpush.msra.mxu0 %v2880
  %3158 = vmatpush.msra.mxu0 %v2879
  %3159 = vmatpush.msra.mxu0 %v2878
  %3160 = vmatpush.msra.mxu0 %v2877
  %3161 = vmatpush.msra.mxu0 %v2876
  %3162 = vmatpush.msra.mxu0 %v2875
  %3163 = vmatpush.msra.mxu0 %v2874
  %3164 = vmatpush.msra.mxu0 %v2873
  %3165 = vmatpush.msra.mxu0 %v2872
  %3166 = vmatpush.msra.mxu0 %v2871
  %3167 = vmatpush.msra.mxu0 %v2870
  %3168 = vmatpush.msra.mxu0 %v2869
  %3169 = vmatpush.msra.mxu0 %v2868
  %3170 = vmatpush.msra.mxu0 %v2867
  %3171 = vmatmul.f32.gmra.mxu0 %v2746
  %v3172 = vpop.f32.mrf.mxu0
  %v3173 = vadd.f32 %v3153, %v3172
  %3174 = vdwg.mxu0
  %3175 = vmatpush.msra.mxu0 %v2898
  %3176 = vmatpush.msra.mxu0 %v2897
  %3177 = vmatpush.msra.mxu0 %v2896
  %3178 = vmatpush.msra.mxu0 %v2895
  %3179 = vmatpush.msra.mxu0 %v2894
  %3180 = vmatpush.msra.mxu0 %v2893
  %3181 = vmatpush.msra.mxu0 %v2892
  %3182 = vmatpush.msra.mxu0 %v2891
  %3183 = vmatpush.msra.mxu0 %v2890
  %3184 = vmatpush.msra.mxu0 %v2889
  %3185 = vmatpush.msra.mxu0 %v2888
  %3186 = vmatpush.msra.mxu0 %v2887
  %3187 = vmatpush.msra.mxu0 %v2886
  %3188 = vmatpush.msra.mxu0 %v2885
  %3189 = vmatpush.msra.mxu0 %v2884
  %3190 = vmatpush.msra.mxu0 %v2883
  %3191 = vmatmul.f32.gmra.mxu0 %v2747
  %v3192 = vpop.f32.mrf.mxu0
  %v3193 = vadd.f32 %v3173, %v3192
  %3194 = vdwg.mxu0
  %3195 = vmatpush.msra.mxu0 %v2914
  %3196 = vmatpush.msra.mxu0 %v2913
  %3197 = vmatpush.msra.mxu0 %v2912
  %3198 = vmatpush.msra.mxu0 %v2911
  %3199 = vmatpush.msra.mxu0 %v2910
  %3200 = vmatpush.msra.mxu0 %v2909
  %3201 = vmatpush.msra.mxu0 %v2908
  %3202 = vmatpush.msra.mxu0 %v2907
  %3203 = vmatpush.msra.mxu0 %v2906
  %3204 = vmatpush.msra.mxu0 %v2905
  %3205 = vmatpush.msra.mxu0 %v2904
  %3206 = vmatpush.msra.mxu0 %v2903
  %3207 = vmatpush.msra.mxu0 %v2902
  %3208 = vmatpush.msra.mxu0 %v2901
  %3209 = vmatpush.msra.mxu0 %v2900
  %3210 = vmatpush.msra.mxu0 %v2899
  %3211 = vmatmul.f32.gmra.mxu0 %v2748
  %v3212 = vpop.f32.mrf.mxu0
  %v3213 = vadd.f32 %v3193, %v3212
  %3214 = vdwg.mxu0
  %3215 = vmatpush.msra.mxu0 %v2930
  %3216 = vmatpush.msra.mxu0 %v2929
  %3217 = vmatpush.msra.mxu0 %v2928
  %3218 = vmatpush.msra.mxu0 %v2927
  %3219 = vmatpush.msra.mxu0 %v2926
  %3220 = vmatpush.msra.mxu0 %v2925
  %3221 = vmatpush.msra.mxu0 %v2924
  %3222 = vmatpush.msra.mxu0 %v2923
  %3223 = vmatpush.msra.mxu0 %v2922
  %3224 = vmatpush.msra.mxu0 %v2921
  %3225 = vmatpush.msra.mxu0 %v2920
  %3226 = vmatpush.msra.mxu0 %v2919
  %3227 = vmatpush.msra.mxu0 %v2918
  %3228 = vmatpush.msra.mxu0 %v2917
  %3229 = vmatpush.msra.mxu0 %v2916
  %3230 = vmatpush.msra.mxu0 %v2915
  %3231 = vmatmul.f32.gmra.mxu0 %v2749
  %v3232 = vpop.f32.mrf.mxu0
  %v3233 = vadd.f32 %v3213, %v3232
  %3234 = vdwg.mxu0
  %3235 = vmatpush.msra.mxu0 %v2946
  %3236 = vmatpush.msra.mxu0 %v2945
  %3237 = vmatpush.msra.mxu0 %v2944
  %3238 = vmatpush.msra.mxu0 %v2943
  %3239 = vmatpush.msra.mxu0 %v2942
  %3240 = vmatpush.msra.mxu0 %v2941
  %3241 = vmatpush.msra.mxu0 %v2940
  %3242 = vmatpush.msra.mxu0 %v2939
  %3243 = vmatpush.msra.mxu0 %v2938
  %3244 = vmatpush.msra.mxu0 %v2937
  %3245 = vmatpush.msra.mxu0 %v2936
  %3246 = vmatpush.msra.mxu0 %v2935
  %3247 = vmatpush.msra.mxu0 %v2934
  %3248 = vmatpush.msra.mxu0 %v2933
  %3249 = vmatpush.msra.mxu0 %v2932
  %3250 = vmatpush.msra.mxu0 %v2931
  %3251 = vmatmul.f32.gmra.mxu0 %v2750
  %v3252 = vpop.f32.mrf.mxu0
  %v3253 = vadd.f32 %v3233, %v3252
  %3254 = vdwg.mxu0
  %3255 = vmatpush.msra.mxu0 %v2962
  %3256 = vmatpush.msra.mxu0 %v2961
  %3257 = vmatpush.msra.mxu0 %v2960
  %3258 = vmatpush.msra.mxu0 %v2959
  %3259 = vmatpush.msra.mxu0 %v2958
  %3260 = vmatpush.msra.mxu0 %v2957
  %3261 = vmatpush.msra.mxu0 %v2956
  %3262 = vmatpush.msra.mxu0 %v2955
  %3263 = vmatpush.msra.mxu0 %v2954
  %3264 = vmatpush.msra.mxu0 %v2953
  %3265 = vmatpush.msra.mxu0 %v2952
  %3266 = vmatpush.msra.mxu0 %v2951
  %3267 = vmatpush.msra.mxu0 %v2950
  %3268 = vmatpush.msra.mxu0 %v2949
  %3269 = vmatpush.msra.mxu0 %v2948
  %3270 = vmatpush.msra.mxu0 %v2947
  %3271 = vmatmul.f32.gmra.mxu0 %v2751
  %v3272 = vpop.f32.mrf.mxu0
  %v3273 = vadd.f32 %v3253, %v3272
  %3274 = vdwg.mxu0
  %3275 = vmatpush.msra.mxu0 %v2978
  %3276 = vmatpush.msra.mxu0 %v2977
  %3277 = vmatpush.msra.mxu0 %v2976
  %3278 = vmatpush.msra.mxu0 %v2975
  %3279 = vmatpush.msra.mxu0 %v2974
  %3280 = vmatpush.msra.mxu0 %v2973
  %3281 = vmatpush.msra.mxu0 %v2972
  %3282 = vmatpush.msra.mxu0 %v2971
  %3283 = vmatpush.msra.mxu0 %v2970
  %3284 = vmatpush.msra.mxu0 %v2969
  %3285 = vmatpush.msra.mxu0 %v2968
  %3286 = vmatpush.msra.mxu0 %v2967
  %3287 = vmatpush.msra.mxu0 %v2966
  %3288 = vmatpush.msra.mxu0 %v2965
  %3289 = vmatpush.msra.mxu0 %v2964
  %3290 = vmatpush.msra.mxu0 %v2963
  %3291 = vmatmul.f32.gmra.mxu0 %v2752
  %v3292 = vpop.f32.mrf.mxu0
  %v3293 = vadd.f32 %v3273, %v3292
  %3294 = vdwg.mxu0
  %3295 = vmatpush.msra.mxu0 %v2994
  %3296 = vmatpush.msra.mxu0 %v2993
  %3297 = vmatpush.msra.mxu0 %v2992
  %3298 = vmatpush.msra.mxu0 %v2991
  %3299 = vmatpush.msra.mxu0 %v2990
  %3300 = vmatpush.msra.mxu0 %v2989
  %3301 = vmatpush.msra.mxu0 %v2988
  %3302 = vmatpush.msra.mxu0 %v2987
  %3303 = vmatpush.msra.mxu0 %v2986
  %3304 = vmatpush.msra.mxu0 %v2985
  %3305 = vmatpush.msra.mxu0 %v2984
  %3306 = vmatpush.msra.mxu0 %v2983
  %3307 = vmatpush.msra.mxu0 %v2982
  %3308 = vmatpush.msra.mxu0 %v2981
  %3309 = vmatpush.msra.mxu0 %v2980
  %3310 = vmatpush.msra.mxu0 %v2979
  %3311 = vmatmul.f32.gmra.mxu0 %v2753
  %v3312 = vpop.f32.mrf.mxu0
  %v3313 = vadd.f32 %v3293, %v3312
  %3314 = vdwg.mxu0
  %3315 = vmatpush.msra.mxu0 %v3010
  %3316 = vmatpush.msra.mxu0 %v3009
  %3317 = vmatpush.msra.mxu0 %v3008
  %3318 = vmatpush.msra.mxu0 %v3007
  %3319 = vmatpush.msra.mxu0 %v3006
  %3320 = vmatpush.msra.mxu0 %v3005
  %3321 = vmatpush.msra.mxu0 %v3004
  %3322 = vmatpush.msra.mxu0 %v3003
  %3323 = vmatpush.msra.mxu0 %v3002
  %3324 = vmatpush.msra.mxu0 %v3001
  %3325 = vmatpush.msra.mxu0 %v3000
  %3326 = vmatpush.msra.mxu0 %v2999
  %3327 = vmatpush.msra.mxu0 %v2998
  %3328 = vmatpush.msra.mxu0 %v2997
  %3329 = vmatpush.msra.mxu0 %v2996
  %3330 = vmatpush.msra.mxu0 %v2995
  %3331 = vmatmul.f32.gmra.mxu0 %v2754
  %v3332 = vpop.f32.mrf.mxu0
  %v3333 = vadd.f32 %v3313, %v3332
  %3334 = vdwg.mxu0
  %v3335 = vmax.f32 %v3333, 0.0
  %v3336 = vld [vmem:[%s9] sm:$0xff]
  %v3337 = vld [vmem:[%s9 + $0x8] sm:$0xff]
  %v3338 = vld [vmem:[%s9 + $0x10] sm:$0xff]
  %v3339 = vld [vmem:[%s9 + $0x18] sm:$0xff]
  %v3340 = vld [vmem:[%s9 + $0x20] sm:$0xff]
  %v3341 = vld [vmem:[%s9 + $0x28] sm:$0xff]
  %v3342 = vld [vmem:[%s9 + $0x30] sm:$0xff]
  %v3343 = vld [vmem:[%s9 + $0x38] sm:$0xff]
  %v3344 = vld [vmem:[%s9 + $0x40] sm:$0xff]
  %v3345 = vld [vmem:[%s9 + $0x48] sm:$0xff]
  %v3346 = vld [vmem:[%s9 + $0x50] sm:$0xff]
  %v3347 = vld [vmem:[%s9 + $0x58] sm:$0xff]
  %v3348 = vld [vmem:[%s9 + $0x60] sm:$0xff]
  %v3349 = vld [vmem:[%s9 + $0x68] sm:$0xff]
  %v3350 = vld [vmem:[%s9 + $0x70] sm:$0xff]
  %v3351 = vld [vmem:[%s9 + $0x78] sm:$0xff]
  %v3352 = vld [vmem:[%s10] sm:$0x1]
  %v3354 = vperm.slane %v3352, 0
  %3356 = vmatpush.msra.mxu0 %v3351
  %3357 = vmatpush.msra.mxu0 %v3350
  %3358 = vmatpush.msra.mxu0 %v3349
  %3359 = vmatpush.msra.mxu0 %v3348
  %3360 = vmatpush.msra.mxu0 %v3347
  %3361 = vmatpush.msra.mxu0 %v3346
  %3362 = vmatpush.msra.mxu0 %v3345
  %3363 = vmatpush.msra.mxu0 %v3344
  %3364 = vmatpush.msra.mxu0 %v3343
  %3365 = vmatpush.msra.mxu0 %v3342
  %3366 = vmatpush.msra.mxu0 %v3341
  %3367 = vmatpush.msra.mxu0 %v3340
  %3368 = vmatpush.msra.mxu0 %v3339
  %3369 = vmatpush.msra.mxu0 %v3338
  %3370 = vmatpush.msra.mxu0 %v3337
  %3371 = vmatpush.msra.mxu0 %v3336
  %3372 = vmatmul.f32.gmra.mxu0 %v3335
  %v3373 = vpop.f32.mrf.mxu0
  %v3374 = vadd.f32 %v3354, %v3373
  %3375 = vdwg.mxu0
  %3376 = vst [vmem:[%s11] sm:$0xff] %v3374
  // Predicated region
  $region46: #{_lambda_.1} parent=0 // pred_check
    _
  $region47: #{_lambda_.1} parent=0 // pred_check_branch
    %3378 = sbr.rel (0) target = $region49
  $region48: #{_lambda_.1} parent=0 // pred_region
    _
  $region49: #{_lambda_.1} parent=0 // pred_fallthru
    _
  // Predicated region
  $region50: #{_lambda_.1} parent=0 // pred_check
    _
  $region51: #{_lambda_.1} parent=0 // pred_check_branch
    %3380 = sbr.rel (0) target = $region53
  $region52: #{_lambda_.1} parent=0 // pred_region
    _
  $region53: #{_lambda_.1} parent=0 // pred_fallthru
    _

</llo_original>
